<compile_context>
chip_gen: v7x
topology: tpu7x:2x2x1
jax: 0.10.0
libtpu: 0.0.40
codegen_flags: <defaults>
</compile_context>

<pallas_src>
import math
import jax
import jax.numpy as jnp
from jax.experimental import pallas as pl
from jax.experimental.pallas import tpu as pltpu


# ----------------------------- helpers --------------------------------------

def _round_up(x, m):
    return ((x + m - 1) // m) * m


def _gate_act(gates, hp, c_prev):
    """PyTorch gate order i, f, g, o; each gate block is hp lanes wide."""
    i = jax.nn.sigmoid(gates[:, 0 * hp:1 * hp])
    f = jax.nn.sigmoid(gates[:, 1 * hp:2 * hp])
    g = jnp.tanh(gates[:, 2 * hp:3 * hp])
    o = jax.nn.sigmoid(gates[:, 3 * hp:4 * hp])
    c_new = f * c_prev + i * g
    h_new = o * jnp.tanh(c_new)
    return h_new, c_new


# ----------------------------- fused kernel ---------------------------------

def make_fused_kernel(T, B):
    f32 = jnp.float32

    def kernel(xa_ref, xb_ref, c_ref,
               a_wih1, a_whh1, a_b1, a_wcat2, a_b2, a_wfc, a_bfc,
               b_wih1, b_whh1, b_b1, b_wcat2, b_b2, b_wfc, b_bfc,
               w1a, w1b, w1c, bh1, w2, bh2,
               out_ref):
        hp_a = a_whh1.shape[0]          # padded hidden size of LSTM a
        hp_b = b_whh1.shape[0]          # padded hidden size of LSTM b

        # ---- hoisted layer-1 input projections (off the serial path) ----
        ih1_a = jnp.dot(xa_ref[...], a_wih1[...],
                        preferred_element_type=f32) + a_b1[...]   # (T*B, 4Hp)
        ih1_b = jnp.dot(xb_ref[...], b_wih1[...],
                        preferred_element_type=f32) + b_b1[...]   # (T*B, 4Hp)

        a_whh1_v = a_whh1[...]; a_wcat2_v = a_wcat2[...]; a_b2_v = a_b2[...]
        b_whh1_v = b_whh1[...]; b_wcat2_v = b_wcat2[...]; b_b2_v = b_b2[...]

        def chain_step(t, carry, ih1, whh1, wcat2, b2, hp):
            h1, c1, h2, c2 = carry
            # layer 1: precomputed input term + recurrent matmul
            g1 = ih1[t * B:(t + 1) * B, :] + jnp.dot(
                h1, whh1, preferred_element_type=f32)
            h1, c1 = _gate_act(g1, hp, c1)
            # layer 2: fused [x|h] @ [W_ih; W_hh] matmul
            g2 = jnp.dot(jnp.concatenate([h1, h2], axis=-1), wcat2,
                         preferred_element_type=f32) + b2
            h2, c2 = _gate_act(g2, hp, c2)
            return (h1, c1, h2, c2)

        car_a = tuple(jnp.zeros((B, hp_a), f32) for _ in range(4))
        car_b = tuple(jnp.zeros((B, hp_b), f32) for _ in range(4))

        rows_a, rows_b = [], []
        # Fully unrolled time loop; both independent recurrences interleave
        # so the LLO scheduler can overlap their MXU / EUP work.
        for t in range(T):
            car_a = chain_step(t, car_a, ih1_a, a_whh1_v, a_wcat2_v, a_b2_v, hp_a)
            car_b = chain_step(t, car_b, ih1_b, b_whh1_v, b_wcat2_v, b_b2_v, hp_b)
            rows_a.append(car_a[2][B - 1:B, :])   # h2_a of last batch element
            rows_b.append(car_b[2][B - 1:B, :])   # h2_b of last batch element

        last_a = jnp.concatenate(rows_a, axis=0)            # (T, Hp_a)
        last_b = jnp.concatenate(rows_b, axis=0)            # (T, Hp_b)

        # fc heads applied once (padded hidden rows of wfc are zero)
        fa = jnp.dot(last_a, a_wfc[...], preferred_element_type=f32) + a_bfc[...]
        fb = jnp.dot(last_b, b_wfc[...], preferred_element_type=f32) + b_bfc[...]

        # header: split-w1 matmuls summed (no lane-axis concatenate)
        z = (jnp.dot(fa, w1a[...], preferred_element_type=f32)
             + jnp.dot(fb, w1b[...], preferred_element_type=f32)
             + jnp.dot(c_ref[...], w1c[...], preferred_element_type=f32)
             + bh1[...])
        h = jnp.maximum(z, 0.0)
        o = jnp.dot(h, w2[...], preferred_element_type=f32) + bh2[...]
        out_ref[...] = jax.nn.sigmoid(o)

    return kernel


# ------------------------------- wrapper -------------------------------------

_VMEM = pl.BlockSpec(memory_space=pltpu.MemorySpace.VMEM)


@jax.jit
def lstm_model_forward(packed, a, b, c):
    """a,b: (B, T, D) batch-first; c: (T, dim_c). Returns (T, 1)."""
    B, T, Da = a.shape
    _, _, Db = b.shape
    # time-major, flattened to (T*B, D) so step t reads rows [t*B:(t+1)*B]
    xa = jnp.transpose(a, (1, 0, 2)).reshape(T * B, Da)
    xb = jnp.transpose(b, (1, 0, 2)).reshape(T * B, Db)

    args = ([xa, xb, c]
            + list(packed["layer_a"])
            + list(packed["layer_b"])
            + list(packed["header"]))
    return pl.pallas_call(
        make_fused_kernel(T, B),
        out_shape=jax.ShapeDtypeStruct((T, 1), jnp.float32),
        in_specs=[_VMEM] * len(args),
        out_specs=_VMEM,
    )(*args)


# ----------------------- parameter packing (wrapper side) --------------------

def _pad_gate_cols(w, H, Hp):
    """(din, 4H) -> (din, 4Hp): pad each of the i,f,g,o blocks to Hp columns."""
    din = w.shape[0]
    w4 = w.reshape(din, 4, H)
    return jnp.pad(w4, ((0, 0), (0, 0), (0, Hp - H))).reshape(din, 4 * Hp)


def _pad_rows(w, H, Hp):
    return jnp.pad(w, ((0, Hp - H), (0, 0)))


def pack_lstm(p, D):
    """Math-layout params -> padded / fused kernel layout."""
    H = 3 * D
    Hp = _round_up(H, 32)                                        # gates -> 4*Hp lanes
    wih1 = _pad_gate_cols(p["wih1"], H, Hp)                      # (D, 4Hp)
    whh1 = _pad_gate_cols(_pad_rows(p["whh1"], H, Hp), H, Hp)    # (Hp, 4Hp)
    b1 = _pad_gate_cols(p["b1"], H, Hp)                          # (1, 4Hp)
    wih2 = _pad_gate_cols(_pad_rows(p["wih2"], H, Hp), H, Hp)    # (Hp, 4Hp)
    whh2 = _pad_gate_cols(_pad_rows(p["whh2"], H, Hp), H, Hp)    # (Hp, 4Hp)
    wcat2 = jnp.concatenate([wih2, whh2], axis=0)                # (2Hp, 4Hp)
    b2 = _pad_gate_cols(p["b2"], H, Hp)                          # (1, 4Hp)
    wfc = _pad_rows(p["wfc"], H, Hp)                             # (Hp, D)
    bfc = p["bfc"]                                               # (1, D)
    return (wih1, whh1, b1, wcat2, b2, wfc, bfc)


def pack_header(p, dim_a, dim_b, dim_c):
    w1 = p["w1"]                                                 # (da+db+dc, h)
    w1a = w1[:dim_a]
    w1b = w1[dim_a:dim_a + dim_b]
    w1c = w1[dim_a + dim_b:]
    return (w1a, w1b, w1c, p["b1"], p["w2"], p["b2"])


# --------------------------- parameter creation -------------------------------

def _uniform(key, shape, bound):
    return jax.random.uniform(key, shape, jnp.float32, -bound, bound)


def init_two_layer_lstm(key, D):
    """nn.LSTM(D, 3D, num_layers=2) + nn.Linear(3D, D), PyTorch-style init.
    Weights stored math-layout: (in_features, out_features)."""
    H = 3 * D
    stdv = 1.0 / math.sqrt(H)
    ks = jax.random.split(key, 10)
    wih1 = _uniform(ks[0], (4 * H, D), stdv).T          # (D, 4H)
    whh1 = _uniform(ks[1], (4 * H, H), stdv).T          # (H, 4H)
    b1 = (_uniform(ks[2], (4 * H,), stdv)
          + _uniform(ks[3], (4 * H,), stdv)).reshape(1, 4 * H)
    wih2 = _uniform(ks[4], (4 * H, H), stdv).T          # (H, 4H)
    whh2 = _uniform(ks[5], (4 * H, H), stdv).T          # (H, 4H)
    b2 = (_uniform(ks[6], (4 * H,), stdv)
          + _uniform(ks[7], (4 * H,), stdv)).reshape(1, 4 * H)
    fstd = 1.0 / math.sqrt(H)
    wfc = _uniform(ks[8], (D, H), fstd).T               # (H, D)
    bfc = _uniform(ks[9], (D,), fstd).reshape(1, D)
    return dict(wih1=wih1, whh1=whh1, b1=b1,
                wih2=wih2, whh2=whh2, b2=b2, wfc=wfc, bfc=bfc)


def init_header(key, d_in):
    h = math.floor(d_in / 2)
    ks = jax.random.split(key, 4)
    s1 = 1.0 / math.sqrt(d_in)
    s2 = 1.0 / math.sqrt(h)
    return dict(
        w1=_uniform(ks[0], (h, d_in), s1).T,            # (d_in, h)
        b1=_uniform(ks[1], (h,), s1).reshape(1, h),
        w2=_uniform(ks[2], (1, h), s2).T,               # (h, 1)
        b2=_uniform(ks[3], (1,), s2).reshape(1, 1),
    )


# --------------------------- pure-JAX reference --------------------------------

def _lstm_step_ref(x_t, h, c, w_ih, w_hh, b):
    H = h.shape[-1]
    gates = x_t @ w_ih + h @ w_hh + b
    i = jax.nn.sigmoid(gates[:, 0 * H:1 * H])
    f = jax.nn.sigmoid(gates[:, 1 * H:2 * H])
    g = jnp.tanh(gates[:, 2 * H:3 * H])
    o = jax.nn.sigmoid(gates[:, 3 * H:4 * H])
    c_new = f * c + i * g
    return o * jnp.tanh(c_new), c_new


def _ref_lstm(x, p):
    B, T, D = x.shape
    H = p["whh1"].shape[0]
    h1 = c1 = h2 = c2 = jnp.zeros((B, H), jnp.float32)
    outs = []
    for t in range(T):
        x_t = x[:, t, :]
        h1, c1 = _lstm_step_ref(x_t, h1, c1, p["wih1"], p["whh1"], p["b1"])
        h2, c2 = _lstm_step_ref(h1, h2, c2, p["wih2"], p["whh2"], p["b2"])
        outs.append(h2[B - 1])
    lstm_last_batch = jnp.stack(outs, axis=0)           # (T, H)
    return lstm_last_batch @ p["wfc"] + p["bfc"]


def _ref_model(params, a, b, c):
    a_out = _ref_lstm(a, params["layer_a"])
    b_out = _ref_lstm(b, params["layer_b"])
    z = jnp.concatenate([a_out, b_out, c], axis=-1)
    h = jnp.maximum(z @ params["header"]["w1"] + params["header"]["b1"], 0.0)
    return jax.nn.sigmoid(h @ params["header"]["w2"] + params["header"]["b2"])


# ---------------------------------- main ---------------------------------------

if __name__ == "__main__":
    dim_a, dim_b, dim_c = 8, 8, 8
    batch, seq = 2, 8

    root = jax.random.PRNGKey(0)
    k_pa, k_pb, k_ph, k_a, k_b, k_c = jax.random.split(root, 6)

    params = {
        "layer_a": init_two_layer_lstm(k_pa, dim_a),
        "layer_b": init_two_layer_lstm(k_pb, dim_b),
        "header": init_header(k_ph, dim_a + dim_b + dim_c),
    }
    packed = {
        "layer_a": pack_lstm(params["layer_a"], dim_a),
        "layer_b": pack_lstm(params["layer_b"], dim_b),
        "header": pack_header(params["header"], dim_a, dim_b, dim_c),
    }

    a = jax.random.normal(k_a, (batch, seq, dim_a), jnp.float32)
    b = jax.random.normal(k_b, (batch, seq, dim_b), jnp.float32)
    c = jax.random.normal(k_c, (seq, dim_c), jnp.float32)

    out = jax.block_until_ready(lstm_model_forward(packed, a, b, c))
    assert out.shape == (seq, 1), out.shape

    ref = jax.block_until_ready(_ref_model(params, a, b, c))
    assert jnp.allclose(out, ref, rtol=1e-3, atol=1e-3), (out, ref)

    print("KERNEL_OK")
</pallas_src>

<mosaic_0001>
module attributes {stable_mosaic.version = 11 : i64} {
  func.func @kernel(%arg0: memref<16x8xf32, #tpu.memory_space<vmem>>, %arg1: memref<16x8xf32, #tpu.memory_space<vmem>>, %arg2: memref<8x8xf32, #tpu.memory_space<vmem>>, %arg3: memref<8x128xf32, #tpu.memory_space<vmem>>, %arg4: memref<32x128xf32, #tpu.memory_space<vmem>>, %arg5: memref<1x128xf32, #tpu.memory_space<vmem>>, %arg6: memref<64x128xf32, #tpu.memory_space<vmem>>, %arg7: memref<1x128xf32, #tpu.memory_space<vmem>>, %arg8: memref<32x8xf32, #tpu.memory_space<vmem>>, %arg9: memref<1x8xf32, #tpu.memory_space<vmem>>, %arg10: memref<8x128xf32, #tpu.memory_space<vmem>>, %arg11: memref<32x128xf32, #tpu.memory_space<vmem>>, %arg12: memref<1x128xf32, #tpu.memory_space<vmem>>, %arg13: memref<64x128xf32, #tpu.memory_space<vmem>>, %arg14: memref<1x128xf32, #tpu.memory_space<vmem>>, %arg15: memref<32x8xf32, #tpu.memory_space<vmem>>, %arg16: memref<1x8xf32, #tpu.memory_space<vmem>>, %arg17: memref<8x12xf32, #tpu.memory_space<vmem>>, %arg18: memref<8x12xf32, #tpu.memory_space<vmem>>, %arg19: memref<8x12xf32, #tpu.memory_space<vmem>>, %arg20: memref<1x12xf32, #tpu.memory_space<vmem>>, %arg21: memref<12x1xf32, #tpu.memory_space<vmem>>, %arg22: memref<1x1xf32, #tpu.memory_space<vmem>>, %arg23: memref<8x1xf32, #tpu.memory_space<vmem>>) attributes {dimension_semantics = [], scalar_prefetch = 0 : i64, scratch_operands = 0 : i64, tpu.core_type = #tpu.core_type<tc>} {
    %c0 = arith.constant 0 : index
    %c0_0 = arith.constant 0 : index
    %0 = vector.load %arg0[%c0, %c0_0] : memref<16x8xf32, #tpu.memory_space<vmem>>, vector<16x8xf32>
    %c0_1 = arith.constant 0 : index
    %c0_2 = arith.constant 0 : index
    %1 = vector.load %arg3[%c0_1, %c0_2] : memref<8x128xf32, #tpu.memory_space<vmem>>, vector<8x128xf32>
    %cst = arith.constant dense<0.000000e+00> : vector<16x128xf32>
    %2 = tpu.matmul %0, %1, %cst {dimension_numbers = #tpu.dot_dimension_numbers<[1], [0], [0], [1], [0, 0, 1, 1], [], []>} : vector<16x8xf32>, vector<8x128xf32>, vector<16x128xf32> -> vector<16x128xf32>
    %c0_3 = arith.constant 0 : index
    %c0_4 = arith.constant 0 : index
    %3 = vector.load %arg5[%c0_3, %c0_4] : memref<1x128xf32, #tpu.memory_space<vmem>>, vector<1x128xf32>
    %4 = vector.broadcast %3 : vector<1x128xf32> to vector<16x128xf32>
    %5 = arith.addf %2, %4 : vector<16x128xf32>
    %c0_5 = arith.constant 0 : index
    %c0_6 = arith.constant 0 : index
    %6 = vector.load %arg1[%c0_5, %c0_6] : memref<16x8xf32, #tpu.memory_space<vmem>>, vector<16x8xf32>
    %c0_7 = arith.constant 0 : index
    %c0_8 = arith.constant 0 : index
    %7 = vector.load %arg10[%c0_7, %c0_8] : memref<8x128xf32, #tpu.memory_space<vmem>>, vector<8x128xf32>
    %cst_9 = arith.constant dense<0.000000e+00> : vector<16x128xf32>
    %8 = tpu.matmul %6, %7, %cst_9 {dimension_numbers = #tpu.dot_dimension_numbers<[1], [0], [0], [1], [0, 0, 1, 1], [], []>} : vector<16x8xf32>, vector<8x128xf32>, vector<16x128xf32> -> vector<16x128xf32>
    %c0_10 = arith.constant 0 : index
    %c0_11 = arith.constant 0 : index
    %9 = vector.load %arg12[%c0_10, %c0_11] : memref<1x128xf32, #tpu.memory_space<vmem>>, vector<1x128xf32>
    %10 = vector.broadcast %9 : vector<1x128xf32> to vector<16x128xf32>
    %11 = arith.addf %8, %10 : vector<16x128xf32>
    %c0_12 = arith.constant 0 : index
    %c0_13 = arith.constant 0 : index
    %12 = vector.load %arg4[%c0_12, %c0_13] : memref<32x128xf32, #tpu.memory_space<vmem>>, vector<32x128xf32>
    %c0_14 = arith.constant 0 : index
    %c0_15 = arith.constant 0 : index
    %13 = vector.load %arg6[%c0_14, %c0_15] : memref<64x128xf32, #tpu.memory_space<vmem>>, vector<64x128xf32>
    %c0_16 = arith.constant 0 : index
    %c0_17 = arith.constant 0 : index
    %14 = vector.load %arg7[%c0_16, %c0_17] : memref<1x128xf32, #tpu.memory_space<vmem>>, vector<1x128xf32>
    %c0_18 = arith.constant 0 : index
    %c0_19 = arith.constant 0 : index
    %15 = vector.load %arg11[%c0_18, %c0_19] : memref<32x128xf32, #tpu.memory_space<vmem>>, vector<32x128xf32>
    %c0_20 = arith.constant 0 : index
    %c0_21 = arith.constant 0 : index
    %16 = vector.load %arg13[%c0_20, %c0_21] : memref<64x128xf32, #tpu.memory_space<vmem>>, vector<64x128xf32>
    %c0_22 = arith.constant 0 : index
    %c0_23 = arith.constant 0 : index
    %17 = vector.load %arg14[%c0_22, %c0_23] : memref<1x128xf32, #tpu.memory_space<vmem>>, vector<1x128xf32>
    %cst_24 = arith.constant 0.000000e+00 : f32
    %18 = vector.broadcast %cst_24 : f32 to vector<2x32xf32>
    %cst_25 = arith.constant 0.000000e+00 : f32
    %19 = vector.broadcast %cst_25 : f32 to vector<2x32xf32>
    %cst_26 = arith.constant 0.000000e+00 : f32
    %20 = vector.broadcast %cst_26 : f32 to vector<2x32xf32>
    %cst_27 = arith.constant 0.000000e+00 : f32
    %21 = vector.broadcast %cst_27 : f32 to vector<2x32xf32>
    %cst_28 = arith.constant 0.000000e+00 : f32
    %22 = vector.broadcast %cst_28 : f32 to vector<2x32xf32>
    %cst_29 = arith.constant 0.000000e+00 : f32
    %23 = vector.broadcast %cst_29 : f32 to vector<2x32xf32>
    %cst_30 = arith.constant 0.000000e+00 : f32
    %24 = vector.broadcast %cst_30 : f32 to vector<2x32xf32>
    %cst_31 = arith.constant 0.000000e+00 : f32
    %25 = vector.broadcast %cst_31 : f32 to vector<2x32xf32>
    %26 = vector.extract_strided_slice %5 {offsets = [0, 0], sizes = [2, 128], strides = [1, 1]} : vector<16x128xf32> to vector<2x128xf32>
    %cst_32 = arith.constant dense<0.000000e+00> : vector<2x128xf32>
    %27 = tpu.matmul %18, %12, %cst_32 {dimension_numbers = #tpu.dot_dimension_numbers<[1], [0], [0], [1], [0, 0, 1, 1], [], []>} : vector<2x32xf32>, vector<32x128xf32>, vector<2x128xf32> -> vector<2x128xf32>
    %28 = arith.addf %26, %27 : vector<2x128xf32>
    %29 = vector.extract_strided_slice %28 {offsets = [0, 0], sizes = [2, 32], strides = [1, 1]} : vector<2x128xf32> to vector<2x32xf32>
    %30 = arith.negf %29 : vector<2x32xf32>
    %31 = math.exp %30 : vector<2x32xf32>
    %cst_33 = arith.constant 1.000000e+00 : f32
    %32 = vector.broadcast %cst_33 : f32 to vector<2x32xf32>
    %33 = arith.addf %32, %31 : vector<2x32xf32>
    %34 = arith.divf %32, %33 : vector<2x32xf32>
    %35 = vector.extract_strided_slice %28 {offsets = [0, 32], sizes = [2, 32], strides = [1, 1]} : vector<2x128xf32> to vector<2x32xf32>
    %36 = arith.negf %35 : vector<2x32xf32>
    %37 = math.exp %36 : vector<2x32xf32>
    %cst_34 = arith.constant 1.000000e+00 : f32
    %38 = vector.broadcast %cst_34 : f32 to vector<2x32xf32>
    %39 = arith.addf %38, %37 : vector<2x32xf32>
    %40 = arith.divf %38, %39 : vector<2x32xf32>
    %41 = vector.extract_strided_slice %28 {offsets = [0, 64], sizes = [2, 32], strides = [1, 1]} : vector<2x128xf32> to vector<2x32xf32>
    %42 = math.tanh %41 : vector<2x32xf32>
    %43 = vector.extract_strided_slice %28 {offsets = [0, 96], sizes = [2, 32], strides = [1, 1]} : vector<2x128xf32> to vector<2x32xf32>
    %44 = arith.negf %43 : vector<2x32xf32>
    %45 = math.exp %44 : vector<2x32xf32>
    %cst_35 = arith.constant 1.000000e+00 : f32
    %46 = vector.broadcast %cst_35 : f32 to vector<2x32xf32>
    %47 = arith.addf %46, %45 : vector<2x32xf32>
    %48 = arith.divf %46, %47 : vector<2x32xf32>
    %49 = arith.mulf %40, %19 : vector<2x32xf32>
    %50 = arith.mulf %34, %42 : vector<2x32xf32>
    %51 = arith.addf %49, %50 : vector<2x32xf32>
    %52 = math.tanh %51 : vector<2x32xf32>
    %53 = arith.mulf %48, %52 : vector<2x32xf32>
    %54 = tpu.concatenate %53, %20 in 1 : vector<2x32xf32>, vector<2x32xf32> -> vector<2x64xf32>
    %cst_36 = arith.constant dense<0.000000e+00> : vector<2x128xf32>
    %55 = tpu.matmul %54, %13, %cst_36 {dimension_numbers = #tpu.dot_dimension_numbers<[1], [0], [0], [1], [0, 0, 1, 1], [], []>} : vector<2x64xf32>, vector<64x128xf32>, vector<2x128xf32> -> vector<2x128xf32>
    %56 = vector.broadcast %14 : vector<1x128xf32> to vector<2x128xf32>
    %57 = arith.addf %55, %56 : vector<2x128xf32>
    %58 = vector.extract_strided_slice %57 {offsets = [0, 0], sizes = [2, 32], strides = [1, 1]} : vector<2x128xf32> to vector<2x32xf32>
    %59 = arith.negf %58 : vector<2x32xf32>
    %60 = math.exp %59 : vector<2x32xf32>
    %cst_37 = arith.constant 1.000000e+00 : f32
    %61 = vector.broadcast %cst_37 : f32 to vector<2x32xf32>
    %62 = arith.addf %61, %60 : vector<2x32xf32>
    %63 = arith.divf %61, %62 : vector<2x32xf32>
    %64 = vector.extract_strided_slice %57 {offsets = [0, 32], sizes = [2, 32], strides = [1, 1]} : vector<2x128xf32> to vector<2x32xf32>
    %65 = arith.negf %64 : vector<2x32xf32>
    %66 = math.exp %65 : vector<2x32xf32>
    %cst_38 = arith.constant 1.000000e+00 : f32
    %67 = vector.broadcast %cst_38 : f32 to vector<2x32xf32>
    %68 = arith.addf %67, %66 : vector<2x32xf32>
    %69 = arith.divf %67, %68 : vector<2x32xf32>
    %70 = vector.extract_strided_slice %57 {offsets = [0, 64], sizes = [2, 32], strides = [1, 1]} : vector<2x128xf32> to vector<2x32xf32>
    %71 = math.tanh %70 : vector<2x32xf32>
    %72 = vector.extract_strided_slice %57 {offsets = [0, 96], sizes = [2, 32], strides = [1, 1]} : vector<2x128xf32> to vector<2x32xf32>
    %73 = arith.negf %72 : vector<2x32xf32>
    %74 = math.exp %73 : vector<2x32xf32>
    %cst_39 = arith.constant 1.000000e+00 : f32
    %75 = vector.broadcast %cst_39 : f32 to vector<2x32xf32>
    %76 = arith.addf %75, %74 : vector<2x32xf32>
    %77 = arith.divf %75, %76 : vector<2x32xf32>
    %78 = arith.mulf %69, %21 : vector<2x32xf32>
    %79 = arith.mulf %63, %71 : vector<2x32xf32>
    %80 = arith.addf %78, %79 : vector<2x32xf32>
    %81 = math.tanh %80 : vector<2x32xf32>
    %82 = arith.mulf %77, %81 : vector<2x32xf32>
    %83 = vector.extract_strided_slice %11 {offsets = [0, 0], sizes = [2, 128], strides = [1, 1]} : vector<16x128xf32> to vector<2x128xf32>
    %cst_40 = arith.constant dense<0.000000e+00> : vector<2x128xf32>
    %84 = tpu.matmul %22, %15, %cst_40 {dimension_numbers = #tpu.dot_dimension_numbers<[1], [0], [0], [1], [0, 0, 1, 1], [], []>} : vector<2x32xf32>, vector<32x128xf32>, vector<2x128xf32> -> vector<2x128xf32>
    %85 = arith.addf %83, %84 : vector<2x128xf32>
    %86 = vector.extract_strided_slice %85 {offsets = [0, 0], sizes = [2, 32], strides = [1, 1]} : vector<2x128xf32> to vector<2x32xf32>
    %87 = arith.negf %86 : vector<2x32xf32>
    %88 = math.exp %87 : vector<2x32xf32>
    %cst_41 = arith.constant 1.000000e+00 : f32
    %89 = vector.broadcast %cst_41 : f32 to vector<2x32xf32>
    %90 = arith.addf %89, %88 : vector<2x32xf32>
    %91 = arith.divf %89, %90 : vector<2x32xf32>
    %92 = vector.extract_strided_slice %85 {offsets = [0, 32], sizes = [2, 32], strides = [1, 1]} : vector<2x128xf32> to vector<2x32xf32>
    %93 = arith.negf %92 : vector<2x32xf32>
    %94 = math.exp %93 : vector<2x32xf32>
    %cst_42 = arith.constant 1.000000e+00 : f32
    %95 = vector.broadcast %cst_42 : f32 to vector<2x32xf32>
    %96 = arith.addf %95, %94 : vector<2x32xf32>
    %97 = arith.divf %95, %96 : vector<2x32xf32>
    %98 = vector.extract_strided_slice %85 {offsets = [0, 64], sizes = [2, 32], strides = [1, 1]} : vector<2x128xf32> to vector<2x32xf32>
    %99 = math.tanh %98 : vector<2x32xf32>
    %100 = vector.extract_strided_slice %85 {offsets = [0, 96], sizes = [2, 32], strides = [1, 1]} : vector<2x128xf32> to vector<2x32xf32>
    %101 = arith.negf %100 : vector<2x32xf32>
    %102 = math.exp %101 : vector<2x32xf32>
    %cst_43 = arith.constant 1.000000e+00 : f32
    %103 = vector.broadcast %cst_43 : f32 to vector<2x32xf32>
    %104 = arith.addf %103, %102 : vector<2x32xf32>
    %105 = arith.divf %103, %104 : vector<2x32xf32>
    %106 = arith.mulf %97, %23 : vector<2x32xf32>
    %107 = arith.mulf %91, %99 : vector<2x32xf32>
    %108 = arith.addf %106, %107 : vector<2x32xf32>
    %109 = math.tanh %108 : vector<2x32xf32>
    %110 = arith.mulf %105, %109 : vector<2x32xf32>
    %111 = tpu.concatenate %110, %24 in 1 : vector<2x32xf32>, vector<2x32xf32> -> vector<2x64xf32>
    %cst_44 = arith.constant dense<0.000000e+00> : vector<2x128xf32>
    %112 = tpu.matmul %111, %16, %cst_44 {dimension_numbers = #tpu.dot_dimension_numbers<[1], [0], [0], [1], [0, 0, 1, 1], [], []>} : vector<2x64xf32>, vector<64x128xf32>, vector<2x128xf32> -> vector<2x128xf32>
    %113 = vector.broadcast %17 : vector<1x128xf32> to vector<2x128xf32>
    %114 = arith.addf %112, %113 : vector<2x128xf32>
    %115 = vector.extract_strided_slice %114 {offsets = [0, 0], sizes = [2, 32], strides = [1, 1]} : vector<2x128xf32> to vector<2x32xf32>
    %116 = arith.negf %115 : vector<2x32xf32>
    %117 = math.exp %116 : vector<2x32xf32>
    %cst_45 = arith.constant 1.000000e+00 : f32
    %118 = vector.broadcast %cst_45 : f32 to vector<2x32xf32>
    %119 = arith.addf %118, %117 : vector<2x32xf32>
    %120 = arith.divf %118, %119 : vector<2x32xf32>
    %121 = vector.extract_strided_slice %114 {offsets = [0, 32], sizes = [2, 32], strides = [1, 1]} : vector<2x128xf32> to vector<2x32xf32>
    %122 = arith.negf %121 : vector<2x32xf32>
    %123 = math.exp %122 : vector<2x32xf32>
    %cst_46 = arith.constant 1.000000e+00 : f32
    %124 = vector.broadcast %cst_46 : f32 to vector<2x32xf32>
    %125 = arith.addf %124, %123 : vector<2x32xf32>
    %126 = arith.divf %124, %125 : vector<2x32xf32>
    %127 = vector.extract_strided_slice %114 {offsets = [0, 64], sizes = [2, 32], strides = [1, 1]} : vector<2x128xf32> to vector<2x32xf32>
    %128 = math.tanh %127 : vector<2x32xf32>
    %129 = vector.extract_strided_slice %114 {offsets = [0, 96], sizes = [2, 32], strides = [1, 1]} : vector<2x128xf32> to vector<2x32xf32>
    %130 = arith.negf %129 : vector<2x32xf32>
    %131 = math.exp %130 : vector<2x32xf32>
    %cst_47 = arith.constant 1.000000e+00 : f32
    %132 = vector.broadcast %cst_47 : f32 to vector<2x32xf32>
    %133 = arith.addf %132, %131 : vector<2x32xf32>
    %134 = arith.divf %132, %133 : vector<2x32xf32>
    %135 = arith.mulf %126, %25 : vector<2x32xf32>
    %136 = arith.mulf %120, %128 : vector<2x32xf32>
    %137 = arith.addf %135, %136 : vector<2x32xf32>
    %138 = math.tanh %137 : vector<2x32xf32>
    %139 = arith.mulf %134, %138 : vector<2x32xf32>
    %140 = vector.extract_strided_slice %82 {offsets = [1, 0], sizes = [1, 32], strides = [1, 1]} : vector<2x32xf32> to vector<1x32xf32>
    %141 = vector.extract_strided_slice %139 {offsets = [1, 0], sizes = [1, 32], strides = [1, 1]} : vector<2x32xf32> to vector<1x32xf32>
    %142 = vector.extract_strided_slice %5 {offsets = [2, 0], sizes = [2, 128], strides = [1, 1]} : vector<16x128xf32> to vector<2x128xf32>
    %cst_48 = arith.constant dense<0.000000e+00> : vector<2x128xf32>
    %143 = tpu.matmul %53, %12, %cst_48 {dimension_numbers = #tpu.dot_dimension_numbers<[1], [0], [0], [1], [0, 0, 1, 1], [], []>} : vector<2x32xf32>, vector<32x128xf32>, vector<2x128xf32> -> vector<2x128xf32>
    %144 = arith.addf %142, %143 : vector<2x128xf32>
    %145 = vector.extract_strided_slice %144 {offsets = [0, 0], sizes = [2, 32], strides = [1, 1]} : vector<2x128xf32> to vector<2x32xf32>
    %146 = arith.negf %145 : vector<2x32xf32>
    %147 = math.exp %146 : vector<2x32xf32>
    %cst_49 = arith.constant 1.000000e+00 : f32
    %148 = vector.broadcast %cst_49 : f32 to vector<2x32xf32>
    %149 = arith.addf %148, %147 : vector<2x32xf32>
    %150 = arith.divf %148, %149 : vector<2x32xf32>
    %151 = vector.extract_strided_slice %144 {offsets = [0, 32], sizes = [2, 32], strides = [1, 1]} : vector<2x128xf32> to vector<2x32xf32>
    %152 = arith.negf %151 : vector<2x32xf32>
    %153 = math.exp %152 : vector<2x32xf32>
    %cst_50 = arith.constant 1.000000e+00 : f32
    %154 = vector.broadcast %cst_50 : f32 to vector<2x32xf32>
    %155 = arith.addf %154, %153 : vector<2x32xf32>
    %156 = arith.divf %154, %155 : vector<2x32xf32>
    %157 = vector.extract_strided_slice %144 {offsets = [0, 64], sizes = [2, 32], strides = [1, 1]} : vector<2x128xf32> to vector<2x32xf32>
    %158 = math.tanh %157 : vector<2x32xf32>
    %159 = vector.extract_strided_slice %144 {offsets = [0, 96], sizes = [2, 32], strides = [1, 1]} : vector<2x128xf32> to vector<2x32xf32>
    %160 = arith.negf %159 : vector<2x32xf32>
    %161 = math.exp %160 : vector<2x32xf32>
    %cst_51 = arith.constant 1.000000e+00 : f32
    %162 = vector.broadcast %cst_51 : f32 to vector<2x32xf32>
    %163 = arith.addf %162, %161 : vector<2x32xf32>
    %164 = arith.divf %162, %163 : vector<2x32xf32>
    %165 = arith.mulf %156, %51 : vector<2x32xf32>
    %166 = arith.mulf %150, %158 : vector<2x32xf32>
    %167 = arith.addf %165, %166 : vector<2x32xf32>
    %168 = math.tanh %167 : vector<2x32xf32>
    %169 = arith.mulf %164, %168 : vector<2x32xf32>
    %170 = tpu.concatenate %169, %82 in 1 : vector<2x32xf32>, vector<2x32xf32> -> vector<2x64xf32>
    %cst_52 = arith.constant dense<0.000000e+00> : vector<2x128xf32>
    %171 = tpu.matmul %170, %13, %cst_52 {dimension_numbers = #tpu.dot_dimension_numbers<[1], [0], [0], [1], [0, 0, 1, 1], [], []>} : vector<2x64xf32>, vector<64x128xf32>, vector<2x128xf32> -> vector<2x128xf32>
    %172 = vector.broadcast %14 : vector<1x128xf32> to vector<2x128xf32>
    %173 = arith.addf %171, %172 : vector<2x128xf32>
    %174 = vector.extract_strided_slice %173 {offsets = [0, 0], sizes = [2, 32], strides = [1, 1]} : vector<2x128xf32> to vector<2x32xf32>
    %175 = arith.negf %174 : vector<2x32xf32>
    %176 = math.exp %175 : vector<2x32xf32>
    %cst_53 = arith.constant 1.000000e+00 : f32
    %177 = vector.broadcast %cst_53 : f32 to vector<2x32xf32>
    %178 = arith.addf %177, %176 : vector<2x32xf32>
    %179 = arith.divf %177, %178 : vector<2x32xf32>
    %180 = vector.extract_strided_slice %173 {offsets = [0, 32], sizes = [2, 32], strides = [1, 1]} : vector<2x128xf32> to vector<2x32xf32>
    %181 = arith.negf %180 : vector<2x32xf32>
    %182 = math.exp %181 : vector<2x32xf32>
    %cst_54 = arith.constant 1.000000e+00 : f32
    %183 = vector.broadcast %cst_54 : f32 to vector<2x32xf32>
    %184 = arith.addf %183, %182 : vector<2x32xf32>
    %185 = arith.divf %183, %184 : vector<2x32xf32>
    %186 = vector.extract_strided_slice %173 {offsets = [0, 64], sizes = [2, 32], strides = [1, 1]} : vector<2x128xf32> to vector<2x32xf32>
    %187 = math.tanh %186 : vector<2x32xf32>
    %188 = vector.extract_strided_slice %173 {offsets = [0, 96], sizes = [2, 32], strides = [1, 1]} : vector<2x128xf32> to vector<2x32xf32>
    %189 = arith.negf %188 : vector<2x32xf32>
    %190 = math.exp %189 : vector<2x32xf32>
    %cst_55 = arith.constant 1.000000e+00 : f32
    %191 = vector.broadcast %cst_55 : f32 to vector<2x32xf32>
    %192 = arith.addf %191, %190 : vector<2x32xf32>
    %193 = arith.divf %191, %192 : vector<2x32xf32>
    %194 = arith.mulf %185, %80 : vector<2x32xf32>
    %195 = arith.mulf %179, %187 : vector<2x32xf32>
    %196 = arith.addf %194, %195 : vector<2x32xf32>
    %197 = math.tanh %196 : vector<2x32xf32>
    %198 = arith.mulf %193, %197 : vector<2x32xf32>
    %199 = vector.extract_strided_slice %11 {offsets = [2, 0], sizes = [2, 128], strides = [1, 1]} : vector<16x128xf32> to vector<2x128xf32>
    %cst_56 = arith.constant dense<0.000000e+00> : vector<2x128xf32>
    %200 = tpu.matmul %110, %15, %cst_56 {dimension_numbers = #tpu.dot_dimension_numbers<[1], [0], [0], [1], [0, 0, 1, 1], [], []>} : vector<2x32xf32>, vector<32x128xf32>, vector<2x128xf32> -> vector<2x128xf32>
    %201 = arith.addf %199, %200 : vector<2x128xf32>
    %202 = vector.extract_strided_slice %201 {offsets = [0, 0], sizes = [2, 32], strides = [1, 1]} : vector<2x128xf32> to vector<2x32xf32>
    %203 = arith.negf %202 : vector<2x32xf32>
    %204 = math.exp %203 : vector<2x32xf32>
    %cst_57 = arith.constant 1.000000e+00 : f32
    %205 = vector.broadcast %cst_57 : f32 to vector<2x32xf32>
    %206 = arith.addf %205, %204 : vector<2x32xf32>
    %207 = arith.divf %205, %206 : vector<2x32xf32>
    %208 = vector.extract_strided_slice %201 {offsets = [0, 32], sizes = [2, 32], strides = [1, 1]} : vector<2x128xf32> to vector<2x32xf32>
    %209 = arith.negf %208 : vector<2x32xf32>
    %210 = math.exp %209 : vector<2x32xf32>
    %cst_58 = arith.constant 1.000000e+00 : f32
    %211 = vector.broadcast %cst_58 : f32 to vector<2x32xf32>
    %212 = arith.addf %211, %210 : vector<2x32xf32>
    %213 = arith.divf %211, %212 : vector<2x32xf32>
    %214 = vector.extract_strided_slice %201 {offsets = [0, 64], sizes = [2, 32], strides = [1, 1]} : vector<2x128xf32> to vector<2x32xf32>
    %215 = math.tanh %214 : vector<2x32xf32>
    %216 = vector.extract_strided_slice %201 {offsets = [0, 96], sizes = [2, 32], strides = [1, 1]} : vector<2x128xf32> to vector<2x32xf32>
    %217 = arith.negf %216 : vector<2x32xf32>
    %218 = math.exp %217 : vector<2x32xf32>
    %cst_59 = arith.constant 1.000000e+00 : f32
    %219 = vector.broadcast %cst_59 : f32 to vector<2x32xf32>
    %220 = arith.addf %219, %218 : vector<2x32xf32>
    %221 = arith.divf %219, %220 : vector<2x32xf32>
    %222 = arith.mulf %213, %108 : vector<2x32xf32>
    %223 = arith.mulf %207, %215 : vector<2x32xf32>
    %224 = arith.addf %222, %223 : vector<2x32xf32>
    %225 = math.tanh %224 : vector<2x32xf32>
    %226 = arith.mulf %221, %225 : vector<2x32xf32>
    %227 = tpu.concatenate %226, %139 in 1 : vector<2x32xf32>, vector<2x32xf32> -> vector<2x64xf32>
    %cst_60 = arith.constant dense<0.000000e+00> : vector<2x128xf32>
    %228 = tpu.matmul %227, %16, %cst_60 {dimension_numbers = #tpu.dot_dimension_numbers<[1], [0], [0], [1], [0, 0, 1, 1], [], []>} : vector<2x64xf32>, vector<64x128xf32>, vector<2x128xf32> -> vector<2x128xf32>
    %229 = vector.broadcast %17 : vector<1x128xf32> to vector<2x128xf32>
    %230 = arith.addf %228, %229 : vector<2x128xf32>
    %231 = vector.extract_strided_slice %230 {offsets = [0, 0], sizes = [2, 32], strides = [1, 1]} : vector<2x128xf32> to vector<2x32xf32>
    %232 = arith.negf %231 : vector<2x32xf32>
    %233 = math.exp %232 : vector<2x32xf32>
    %cst_61 = arith.constant 1.000000e+00 : f32
    %234 = vector.broadcast %cst_61 : f32 to vector<2x32xf32>
    %235 = arith.addf %234, %233 : vector<2x32xf32>
    %236 = arith.divf %234, %235 : vector<2x32xf32>
    %237 = vector.extract_strided_slice %230 {offsets = [0, 32], sizes = [2, 32], strides = [1, 1]} : vector<2x128xf32> to vector<2x32xf32>
    %238 = arith.negf %237 : vector<2x32xf32>
    %239 = math.exp %238 : vector<2x32xf32>
    %cst_62 = arith.constant 1.000000e+00 : f32
    %240 = vector.broadcast %cst_62 : f32 to vector<2x32xf32>
    %241 = arith.addf %240, %239 : vector<2x32xf32>
    %242 = arith.divf %240, %241 : vector<2x32xf32>
    %243 = vector.extract_strided_slice %230 {offsets = [0, 64], sizes = [2, 32], strides = [1, 1]} : vector<2x128xf32> to vector<2x32xf32>
    %244 = math.tanh %243 : vector<2x32xf32>
    %245 = vector.extract_strided_slice %230 {offsets = [0, 96], sizes = [2, 32], strides = [1, 1]} : vector<2x128xf32> to vector<2x32xf32>
    %246 = arith.negf %245 : vector<2x32xf32>
    %247 = math.exp %246 : vector<2x32xf32>
    %cst_63 = arith.constant 1.000000e+00 : f32
    %248 = vector.broadcast %cst_63 : f32 to vector<2x32xf32>
    %249 = arith.addf %248, %247 : vector<2x32xf32>
    %250 = arith.divf %248, %249 : vector<2x32xf32>
    %251 = arith.mulf %242, %137 : vector<2x32xf32>
    %252 = arith.mulf %236, %244 : vector<2x32xf32>
    %253 = arith.addf %251, %252 : vector<2x32xf32>
    %254 = math.tanh %253 : vector<2x32xf32>
    %255 = arith.mulf %250, %254 : vector<2x32xf32>
    %256 = vector.extract_strided_slice %198 {offsets = [1, 0], sizes = [1, 32], strides = [1, 1]} : vector<2x32xf32> to vector<1x32xf32>
    %257 = vector.extract_strided_slice %255 {offsets = [1, 0], sizes = [1, 32], strides = [1, 1]} : vector<2x32xf32> to vector<1x32xf32>
    %258 = vector.extract_strided_slice %5 {offsets = [4, 0], sizes = [2, 128], strides = [1, 1]} : vector<16x128xf32> to vector<2x128xf32>
    %cst_64 = arith.constant dense<0.000000e+00> : vector<2x128xf32>
    %259 = tpu.matmul %169, %12, %cst_64 {dimension_numbers = #tpu.dot_dimension_numbers<[1], [0], [0], [1], [0, 0, 1, 1], [], []>} : vector<2x32xf32>, vector<32x128xf32>, vector<2x128xf32> -> vector<2x128xf32>
    %260 = arith.addf %258, %259 : vector<2x128xf32>
    %261 = vector.extract_strided_slice %260 {offsets = [0, 0], sizes = [2, 32], strides = [1, 1]} : vector<2x128xf32> to vector<2x32xf32>
    %262 = arith.negf %261 : vector<2x32xf32>
    %263 = math.exp %262 : vector<2x32xf32>
    %cst_65 = arith.constant 1.000000e+00 : f32
    %264 = vector.broadcast %cst_65 : f32 to vector<2x32xf32>
    %265 = arith.addf %264, %263 : vector<2x32xf32>
    %266 = arith.divf %264, %265 : vector<2x32xf32>
    %267 = vector.extract_strided_slice %260 {offsets = [0, 32], sizes = [2, 32], strides = [1, 1]} : vector<2x128xf32> to vector<2x32xf32>
    %268 = arith.negf %267 : vector<2x32xf32>
    %269 = math.exp %268 : vector<2x32xf32>
    %cst_66 = arith.constant 1.000000e+00 : f32
    %270 = vector.broadcast %cst_66 : f32 to vector<2x32xf32>
    %271 = arith.addf %270, %269 : vector<2x32xf32>
    %272 = arith.divf %270, %271 : vector<2x32xf32>
    %273 = vector.extract_strided_slice %260 {offsets = [0, 64], sizes = [2, 32], strides = [1, 1]} : vector<2x128xf32> to vector<2x32xf32>
    %274 = math.tanh %273 : vector<2x32xf32>
    %275 = vector.extract_strided_slice %260 {offsets = [0, 96], sizes = [2, 32], strides = [1, 1]} : vector<2x128xf32> to vector<2x32xf32>
    %276 = arith.negf %275 : vector<2x32xf32>
    %277 = math.exp %276 : vector<2x32xf32>
    %cst_67 = arith.constant 1.000000e+00 : f32
    %278 = vector.broadcast %cst_67 : f32 to vector<2x32xf32>
    %279 = arith.addf %278, %277 : vector<2x32xf32>
    %280 = arith.divf %278, %279 : vector<2x32xf32>
    %281 = arith.mulf %272, %167 : vector<2x32xf32>
    %282 = arith.mulf %266, %274 : vector<2x32xf32>
    %283 = arith.addf %281, %282 : vector<2x32xf32>
    %284 = math.tanh %283 : vector<2x32xf32>
    %285 = arith.mulf %280, %284 : vector<2x32xf32>
    %286 = tpu.concatenate %285, %198 in 1 : vector<2x32xf32>, vector<2x32xf32> -> vector<2x64xf32>
    %cst_68 = arith.constant dense<0.000000e+00> : vector<2x128xf32>
    %287 = tpu.matmul %286, %13, %cst_68 {dimension_numbers = #tpu.dot_dimension_numbers<[1], [0], [0], [1], [0, 0, 1, 1], [], []>} : vector<2x64xf32>, vector<64x128xf32>, vector<2x128xf32> -> vector<2x128xf32>
    %288 = vector.broadcast %14 : vector<1x128xf32> to vector<2x128xf32>
    %289 = arith.addf %287, %288 : vector<2x128xf32>
    %290 = vector.extract_strided_slice %289 {offsets = [0, 0], sizes = [2, 32], strides = [1, 1]} : vector<2x128xf32> to vector<2x32xf32>
    %291 = arith.negf %290 : vector<2x32xf32>
    %292 = math.exp %291 : vector<2x32xf32>
    %cst_69 = arith.constant 1.000000e+00 : f32
    %293 = vector.broadcast %cst_69 : f32 to vector<2x32xf32>
    %294 = arith.addf %293, %292 : vector<2x32xf32>
    %295 = arith.divf %293, %294 : vector<2x32xf32>
    %296 = vector.extract_strided_slice %289 {offsets = [0, 32], sizes = [2, 32], strides = [1, 1]} : vector<2x128xf32> to vector<2x32xf32>
    %297 = arith.negf %296 : vector<2x32xf32>
    %298 = math.exp %297 : vector<2x32xf32>
    %cst_70 = arith.constant 1.000000e+00 : f32
    %299 = vector.broadcast %cst_70 : f32 to vector<2x32xf32>
    %300 = arith.addf %299, %298 : vector<2x32xf32>
    %301 = arith.divf %299, %300 : vector<2x32xf32>
    %302 = vector.extract_strided_slice %289 {offsets = [0, 64], sizes = [2, 32], strides = [1, 1]} : vector<2x128xf32> to vector<2x32xf32>
    %303 = math.tanh %302 : vector<2x32xf32>
    %304 = vector.extract_strided_slice %289 {offsets = [0, 96], sizes = [2, 32], strides = [1, 1]} : vector<2x128xf32> to vector<2x32xf32>
    %305 = arith.negf %304 : vector<2x32xf32>
    %306 = math.exp %305 : vector<2x32xf32>
    %cst_71 = arith.constant 1.000000e+00 : f32
    %307 = vector.broadcast %cst_71 : f32 to vector<2x32xf32>
    %308 = arith.addf %307, %306 : vector<2x32xf32>
    %309 = arith.divf %307, %308 : vector<2x32xf32>
    %310 = arith.mulf %301, %196 : vector<2x32xf32>
    %311 = arith.mulf %295, %303 : vector<2x32xf32>
    %312 = arith.addf %310, %311 : vector<2x32xf32>
    %313 = math.tanh %312 : vector<2x32xf32>
    %314 = arith.mulf %309, %313 : vector<2x32xf32>
    %315 = vector.extract_strided_slice %11 {offsets = [4, 0], sizes = [2, 128], strides = [1, 1]} : vector<16x128xf32> to vector<2x128xf32>
    %cst_72 = arith.constant dense<0.000000e+00> : vector<2x128xf32>
    %316 = tpu.matmul %226, %15, %cst_72 {dimension_numbers = #tpu.dot_dimension_numbers<[1], [0], [0], [1], [0, 0, 1, 1], [], []>} : vector<2x32xf32>, vector<32x128xf32>, vector<2x128xf32> -> vector<2x128xf32>
    %317 = arith.addf %315, %316 : vector<2x128xf32>
    %318 = vector.extract_strided_slice %317 {offsets = [0, 0], sizes = [2, 32], strides = [1, 1]} : vector<2x128xf32> to vector<2x32xf32>
    %319 = arith.negf %318 : vector<2x32xf32>
    %320 = math.exp %319 : vector<2x32xf32>
    %cst_73 = arith.constant 1.000000e+00 : f32
    %321 = vector.broadcast %cst_73 : f32 to vector<2x32xf32>
    %322 = arith.addf %321, %320 : vector<2x32xf32>
    %323 = arith.divf %321, %322 : vector<2x32xf32>
    %324 = vector.extract_strided_slice %317 {offsets = [0, 32], sizes = [2, 32], strides = [1, 1]} : vector<2x128xf32> to vector<2x32xf32>
    %325 = arith.negf %324 : vector<2x32xf32>
    %326 = math.exp %325 : vector<2x32xf32>
    %cst_74 = arith.constant 1.000000e+00 : f32
    %327 = vector.broadcast %cst_74 : f32 to vector<2x32xf32>
    %328 = arith.addf %327, %326 : vector<2x32xf32>
    %329 = arith.divf %327, %328 : vector<2x32xf32>
    %330 = vector.extract_strided_slice %317 {offsets = [0, 64], sizes = [2, 32], strides = [1, 1]} : vector<2x128xf32> to vector<2x32xf32>
    %331 = math.tanh %330 : vector<2x32xf32>
    %332 = vector.extract_strided_slice %317 {offsets = [0, 96], sizes = [2, 32], strides = [1, 1]} : vector<2x128xf32> to vector<2x32xf32>
    %333 = arith.negf %332 : vector<2x32xf32>
    %334 = math.exp %333 : vector<2x32xf32>
    %cst_75 = arith.constant 1.000000e+00 : f32
    %335 = vector.broadcast %cst_75 : f32 to vector<2x32xf32>
    %336 = arith.addf %335, %334 : vector<2x32xf32>
    %337 = arith.divf %335, %336 : vector<2x32xf32>
    %338 = arith.mulf %329, %224 : vector<2x32xf32>
    %339 = arith.mulf %323, %331 : vector<2x32xf32>
    %340 = arith.addf %338, %339 : vector<2x32xf32>
    %341 = math.tanh %340 : vector<2x32xf32>
    %342 = arith.mulf %337, %341 : vector<2x32xf32>
    %343 = tpu.concatenate %342, %255 in 1 : vector<2x32xf32>, vector<2x32xf32> -> vector<2x64xf32>
    %cst_76 = arith.constant dense<0.000000e+00> : vector<2x128xf32>
    %344 = tpu.matmul %343, %16, %cst_76 {dimension_numbers = #tpu.dot_dimension_numbers<[1], [0], [0], [1], [0, 0, 1, 1], [], []>} : vector<2x64xf32>, vector<64x128xf32>, vector<2x128xf32> -> vector<2x128xf32>
    %345 = vector.broadcast %17 : vector<1x128xf32> to vector<2x128xf32>
    %346 = arith.addf %344, %345 : vector<2x128xf32>
    %347 = vector.extract_strided_slice %346 {offsets = [0, 0], sizes = [2, 32], strides = [1, 1]} : vector<2x128xf32> to vector<2x32xf32>
    %348 = arith.negf %347 : vector<2x32xf32>
    %349 = math.exp %348 : vector<2x32xf32>
    %cst_77 = arith.constant 1.000000e+00 : f32
    %350 = vector.broadcast %cst_77 : f32 to vector<2x32xf32>
    %351 = arith.addf %350, %349 : vector<2x32xf32>
    %352 = arith.divf %350, %351 : vector<2x32xf32>
    %353 = vector.extract_strided_slice %346 {offsets = [0, 32], sizes = [2, 32], strides = [1, 1]} : vector<2x128xf32> to vector<2x32xf32>
    %354 = arith.negf %353 : vector<2x32xf32>
    %355 = math.exp %354 : vector<2x32xf32>
    %cst_78 = arith.constant 1.000000e+00 : f32
    %356 = vector.broadcast %cst_78 : f32 to vector<2x32xf32>
    %357 = arith.addf %356, %355 : vector<2x32xf32>
    %358 = arith.divf %356, %357 : vector<2x32xf32>
    %359 = vector.extract_strided_slice %346 {offsets = [0, 64], sizes = [2, 32], strides = [1, 1]} : vector<2x128xf32> to vector<2x32xf32>
    %360 = math.tanh %359 : vector<2x32xf32>
    %361 = vector.extract_strided_slice %346 {offsets = [0, 96], sizes = [2, 32], strides = [1, 1]} : vector<2x128xf32> to vector<2x32xf32>
    %362 = arith.negf %361 : vector<2x32xf32>
    %363 = math.exp %362 : vector<2x32xf32>
    %cst_79 = arith.constant 1.000000e+00 : f32
    %364 = vector.broadcast %cst_79 : f32 to vector<2x32xf32>
    %365 = arith.addf %364, %363 : vector<2x32xf32>
    %366 = arith.divf %364, %365 : vector<2x32xf32>
    %367 = arith.mulf %358, %253 : vector<2x32xf32>
    %368 = arith.mulf %352, %360 : vector<2x32xf32>
    %369 = arith.addf %367, %368 : vector<2x32xf32>
    %370 = math.tanh %369 : vector<2x32xf32>
    %371 = arith.mulf %366, %370 : vector<2x32xf32>
    %372 = vector.extract_strided_slice %314 {offsets = [1, 0], sizes = [1, 32], strides = [1, 1]} : vector<2x32xf32> to vector<1x32xf32>
    %373 = vector.extract_strided_slice %371 {offsets = [1, 0], sizes = [1, 32], strides = [1, 1]} : vector<2x32xf32> to vector<1x32xf32>
    %374 = vector.extract_strided_slice %5 {offsets = [6, 0], sizes = [2, 128], strides = [1, 1]} : vector<16x128xf32> to vector<2x128xf32>
    %cst_80 = arith.constant dense<0.000000e+00> : vector<2x128xf32>
    %375 = tpu.matmul %285, %12, %cst_80 {dimension_numbers = #tpu.dot_dimension_numbers<[1], [0], [0], [1], [0, 0, 1, 1], [], []>} : vector<2x32xf32>, vector<32x128xf32>, vector<2x128xf32> -> vector<2x128xf32>
    %376 = arith.addf %374, %375 : vector<2x128xf32>
    %377 = vector.extract_strided_slice %376 {offsets = [0, 0], sizes = [2, 32], strides = [1, 1]} : vector<2x128xf32> to vector<2x32xf32>
    %378 = arith.negf %377 : vector<2x32xf32>
    %379 = math.exp %378 : vector<2x32xf32>
    %cst_81 = arith.constant 1.000000e+00 : f32
    %380 = vector.broadcast %cst_81 : f32 to vector<2x32xf32>
    %381 = arith.addf %380, %379 : vector<2x32xf32>
    %382 = arith.divf %380, %381 : vector<2x32xf32>
    %383 = vector.extract_strided_slice %376 {offsets = [0, 32], sizes = [2, 32], strides = [1, 1]} : vector<2x128xf32> to vector<2x32xf32>
    %384 = arith.negf %383 : vector<2x32xf32>
    %385 = math.exp %384 : vector<2x32xf32>
    %cst_82 = arith.constant 1.000000e+00 : f32
    %386 = vector.broadcast %cst_82 : f32 to vector<2x32xf32>
    %387 = arith.addf %386, %385 : vector<2x32xf32>
    %388 = arith.divf %386, %387 : vector<2x32xf32>
    %389 = vector.extract_strided_slice %376 {offsets = [0, 64], sizes = [2, 32], strides = [1, 1]} : vector<2x128xf32> to vector<2x32xf32>
    %390 = math.tanh %389 : vector<2x32xf32>
    %391 = vector.extract_strided_slice %376 {offsets = [0, 96], sizes = [2, 32], strides = [1, 1]} : vector<2x128xf32> to vector<2x32xf32>
    %392 = arith.negf %391 : vector<2x32xf32>
    %393 = math.exp %392 : vector<2x32xf32>
    %cst_83 = arith.constant 1.000000e+00 : f32
    %394 = vector.broadcast %cst_83 : f32 to vector<2x32xf32>
    %395 = arith.addf %394, %393 : vector<2x32xf32>
    %396 = arith.divf %394, %395 : vector<2x32xf32>
    %397 = arith.mulf %388, %283 : vector<2x32xf32>
    %398 = arith.mulf %382, %390 : vector<2x32xf32>
    %399 = arith.addf %397, %398 : vector<2x32xf32>
    %400 = math.tanh %399 : vector<2x32xf32>
    %401 = arith.mulf %396, %400 : vector<2x32xf32>
    %402 = tpu.concatenate %401, %314 in 1 : vector<2x32xf32>, vector<2x32xf32> -> vector<2x64xf32>
    %cst_84 = arith.constant dense<0.000000e+00> : vector<2x128xf32>
    %403 = tpu.matmul %402, %13, %cst_84 {dimension_numbers = #tpu.dot_dimension_numbers<[1], [0], [0], [1], [0, 0, 1, 1], [], []>} : vector<2x64xf32>, vector<64x128xf32>, vector<2x128xf32> -> vector<2x128xf32>
    %404 = vector.broadcast %14 : vector<1x128xf32> to vector<2x128xf32>
    %405 = arith.addf %403, %404 : vector<2x128xf32>
    %406 = vector.extract_strided_slice %405 {offsets = [0, 0], sizes = [2, 32], strides = [1, 1]} : vector<2x128xf32> to vector<2x32xf32>
    %407 = arith.negf %406 : vector<2x32xf32>
    %408 = math.exp %407 : vector<2x32xf32>
    %cst_85 = arith.constant 1.000000e+00 : f32
    %409 = vector.broadcast %cst_85 : f32 to vector<2x32xf32>
    %410 = arith.addf %409, %408 : vector<2x32xf32>
    %411 = arith.divf %409, %410 : vector<2x32xf32>
    %412 = vector.extract_strided_slice %405 {offsets = [0, 32], sizes = [2, 32], strides = [1, 1]} : vector<2x128xf32> to vector<2x32xf32>
    %413 = arith.negf %412 : vector<2x32xf32>
    %414 = math.exp %413 : vector<2x32xf32>
    %cst_86 = arith.constant 1.000000e+00 : f32
    %415 = vector.broadcast %cst_86 : f32 to vector<2x32xf32>
    %416 = arith.addf %415, %414 : vector<2x32xf32>
    %417 = arith.divf %415, %416 : vector<2x32xf32>
    %418 = vector.extract_strided_slice %405 {offsets = [0, 64], sizes = [2, 32], strides = [1, 1]} : vector<2x128xf32> to vector<2x32xf32>
    %419 = math.tanh %418 : vector<2x32xf32>
    %420 = vector.extract_strided_slice %405 {offsets = [0, 96], sizes = [2, 32], strides = [1, 1]} : vector<2x128xf32> to vector<2x32xf32>
    %421 = arith.negf %420 : vector<2x32xf32>
    %422 = math.exp %421 : vector<2x32xf32>
    %cst_87 = arith.constant 1.000000e+00 : f32
    %423 = vector.broadcast %cst_87 : f32 to vector<2x32xf32>
    %424 = arith.addf %423, %422 : vector<2x32xf32>
    %425 = arith.divf %423, %424 : vector<2x32xf32>
    %426 = arith.mulf %417, %312 : vector<2x32xf32>
    %427 = arith.mulf %411, %419 : vector<2x32xf32>
    %428 = arith.addf %426, %427 : vector<2x32xf32>
    %429 = math.tanh %428 : vector<2x32xf32>
    %430 = arith.mulf %425, %429 : vector<2x32xf32>
    %431 = vector.extract_strided_slice %11 {offsets = [6, 0], sizes = [2, 128], strides = [1, 1]} : vector<16x128xf32> to vector<2x128xf32>
    %cst_88 = arith.constant dense<0.000000e+00> : vector<2x128xf32>
    %432 = tpu.matmul %342, %15, %cst_88 {dimension_numbers = #tpu.dot_dimension_numbers<[1], [0], [0], [1], [0, 0, 1, 1], [], []>} : vector<2x32xf32>, vector<32x128xf32>, vector<2x128xf32> -> vector<2x128xf32>
    %433 = arith.addf %431, %432 : vector<2x128xf32>
    %434 = vector.extract_strided_slice %433 {offsets = [0, 0], sizes = [2, 32], strides = [1, 1]} : vector<2x128xf32> to vector<2x32xf32>
    %435 = arith.negf %434 : vector<2x32xf32>
    %436 = math.exp %435 : vector<2x32xf32>
    %cst_89 = arith.constant 1.000000e+00 : f32
    %437 = vector.broadcast %cst_89 : f32 to vector<2x32xf32>
    %438 = arith.addf %437, %436 : vector<2x32xf32>
    %439 = arith.divf %437, %438 : vector<2x32xf32>
    %440 = vector.extract_strided_slice %433 {offsets = [0, 32], sizes = [2, 32], strides = [1, 1]} : vector<2x128xf32> to vector<2x32xf32>
    %441 = arith.negf %440 : vector<2x32xf32>
    %442 = math.exp %441 : vector<2x32xf32>
    %cst_90 = arith.constant 1.000000e+00 : f32
    %443 = vector.broadcast %cst_90 : f32 to vector<2x32xf32>
    %444 = arith.addf %443, %442 : vector<2x32xf32>
    %445 = arith.divf %443, %444 : vector<2x32xf32>
    %446 = vector.extract_strided_slice %433 {offsets = [0, 64], sizes = [2, 32], strides = [1, 1]} : vector<2x128xf32> to vector<2x32xf32>
    %447 = math.tanh %446 : vector<2x32xf32>
    %448 = vector.extract_strided_slice %433 {offsets = [0, 96], sizes = [2, 32], strides = [1, 1]} : vector<2x128xf32> to vector<2x32xf32>
    %449 = arith.negf %448 : vector<2x32xf32>
    %450 = math.exp %449 : vector<2x32xf32>
    %cst_91 = arith.constant 1.000000e+00 : f32
    %451 = vector.broadcast %cst_91 : f32 to vector<2x32xf32>
    %452 = arith.addf %451, %450 : vector<2x32xf32>
    %453 = arith.divf %451, %452 : vector<2x32xf32>
    %454 = arith.mulf %445, %340 : vector<2x32xf32>
    %455 = arith.mulf %439, %447 : vector<2x32xf32>
    %456 = arith.addf %454, %455 : vector<2x32xf32>
    %457 = math.tanh %456 : vector<2x32xf32>
    %458 = arith.mulf %453, %457 : vector<2x32xf32>
    %459 = tpu.concatenate %458, %371 in 1 : vector<2x32xf32>, vector<2x32xf32> -> vector<2x64xf32>
    %cst_92 = arith.constant dense<0.000000e+00> : vector<2x128xf32>
    %460 = tpu.matmul %459, %16, %cst_92 {dimension_numbers = #tpu.dot_dimension_numbers<[1], [0], [0], [1], [0, 0, 1, 1], [], []>} : vector<2x64xf32>, vector<64x128xf32>, vector<2x128xf32> -> vector<2x128xf32>
    %461 = vector.broadcast %17 : vector<1x128xf32> to vector<2x128xf32>
    %462 = arith.addf %460, %461 : vector<2x128xf32>
    %463 = vector.extract_strided_slice %462 {offsets = [0, 0], sizes = [2, 32], strides = [1, 1]} : vector<2x128xf32> to vector<2x32xf32>
    %464 = arith.negf %463 : vector<2x32xf32>
    %465 = math.exp %464 : vector<2x32xf32>
    %cst_93 = arith.constant 1.000000e+00 : f32
    %466 = vector.broadcast %cst_93 : f32 to vector<2x32xf32>
    %467 = arith.addf %466, %465 : vector<2x32xf32>
    %468 = arith.divf %466, %467 : vector<2x32xf32>
    %469 = vector.extract_strided_slice %462 {offsets = [0, 32], sizes = [2, 32], strides = [1, 1]} : vector<2x128xf32> to vector<2x32xf32>
    %470 = arith.negf %469 : vector<2x32xf32>
    %471 = math.exp %470 : vector<2x32xf32>
    %cst_94 = arith.constant 1.000000e+00 : f32
    %472 = vector.broadcast %cst_94 : f32 to vector<2x32xf32>
    %473 = arith.addf %472, %471 : vector<2x32xf32>
    %474 = arith.divf %472, %473 : vector<2x32xf32>
    %475 = vector.extract_strided_slice %462 {offsets = [0, 64], sizes = [2, 32], strides = [1, 1]} : vector<2x128xf32> to vector<2x32xf32>
    %476 = math.tanh %475 : vector<2x32xf32>
    %477 = vector.extract_strided_slice %462 {offsets = [0, 96], sizes = [2, 32], strides = [1, 1]} : vector<2x128xf32> to vector<2x32xf32>
    %478 = arith.negf %477 : vector<2x32xf32>
    %479 = math.exp %478 : vector<2x32xf32>
    %cst_95 = arith.constant 1.000000e+00 : f32
    %480 = vector.broadcast %cst_95 : f32 to vector<2x32xf32>
    %481 = arith.addf %480, %479 : vector<2x32xf32>
    %482 = arith.divf %480, %481 : vector<2x32xf32>
    %483 = arith.mulf %474, %369 : vector<2x32xf32>
    %484 = arith.mulf %468, %476 : vector<2x32xf32>
    %485 = arith.addf %483, %484 : vector<2x32xf32>
    %486 = math.tanh %485 : vector<2x32xf32>
    %487 = arith.mulf %482, %486 : vector<2x32xf32>
    %488 = vector.extract_strided_slice %430 {offsets = [1, 0], sizes = [1, 32], strides = [1, 1]} : vector<2x32xf32> to vector<1x32xf32>
    %489 = vector.extract_strided_slice %487 {offsets = [1, 0], sizes = [1, 32], strides = [1, 1]} : vector<2x32xf32> to vector<1x32xf32>
    %490 = vector.extract_strided_slice %5 {offsets = [8, 0], sizes = [2, 128], strides = [1, 1]} : vector<16x128xf32> to vector<2x128xf32>
    %cst_96 = arith.constant dense<0.000000e+00> : vector<2x128xf32>
    %491 = tpu.matmul %401, %12, %cst_96 {dimension_numbers = #tpu.dot_dimension_numbers<[1], [0], [0], [1], [0, 0, 1, 1], [], []>} : vector<2x32xf32>, vector<32x128xf32>, vector<2x128xf32> -> vector<2x128xf32>
    %492 = arith.addf %490, %491 : vector<2x128xf32>
    %493 = vector.extract_strided_slice %492 {offsets = [0, 0], sizes = [2, 32], strides = [1, 1]} : vector<2x128xf32> to vector<2x32xf32>
    %494 = arith.negf %493 : vector<2x32xf32>
    %495 = math.exp %494 : vector<2x32xf32>
    %cst_97 = arith.constant 1.000000e+00 : f32
    %496 = vector.broadcast %cst_97 : f32 to vector<2x32xf32>
    %497 = arith.addf %496, %495 : vector<2x32xf32>
    %498 = arith.divf %496, %497 : vector<2x32xf32>
    %499 = vector.extract_strided_slice %492 {offsets = [0, 32], sizes = [2, 32], strides = [1, 1]} : vector<2x128xf32> to vector<2x32xf32>
    %500 = arith.negf %499 : vector<2x32xf32>
    %501 = math.exp %500 : vector<2x32xf32>
    %cst_98 = arith.constant 1.000000e+00 : f32
    %502 = vector.broadcast %cst_98 : f32 to vector<2x32xf32>
    %503 = arith.addf %502, %501 : vector<2x32xf32>
    %504 = arith.divf %502, %503 : vector<2x32xf32>
    %505 = vector.extract_strided_slice %492 {offsets = [0, 64], sizes = [2, 32], strides = [1, 1]} : vector<2x128xf32> to vector<2x32xf32>
    %506 = math.tanh %505 : vector<2x32xf32>
    %507 = vector.extract_strided_slice %492 {offsets = [0, 96], sizes = [2, 32], strides = [1, 1]} : vector<2x128xf32> to vector<2x32xf32>
    %508 = arith.negf %507 : vector<2x32xf32>
    %509 = math.exp %508 : vector<2x32xf32>
    %cst_99 = arith.constant 1.000000e+00 : f32
    %510 = vector.broadcast %cst_99 : f32 to vector<2x32xf32>
    %511 = arith.addf %510, %509 : vector<2x32xf32>
    %512 = arith.divf %510, %511 : vector<2x32xf32>
    %513 = arith.mulf %504, %399 : vector<2x32xf32>
    %514 = arith.mulf %498, %506 : vector<2x32xf32>
    %515 = arith.addf %513, %514 : vector<2x32xf32>
    %516 = math.tanh %515 : vector<2x32xf32>
    %517 = arith.mulf %512, %516 : vector<2x32xf32>
    %518 = tpu.concatenate %517, %430 in 1 : vector<2x32xf32>, vector<2x32xf32> -> vector<2x64xf32>
    %cst_100 = arith.constant dense<0.000000e+00> : vector<2x128xf32>
    %519 = tpu.matmul %518, %13, %cst_100 {dimension_numbers = #tpu.dot_dimension_numbers<[1], [0], [0], [1], [0, 0, 1, 1], [], []>} : vector<2x64xf32>, vector<64x128xf32>, vector<2x128xf32> -> vector<2x128xf32>
    %520 = vector.broadcast %14 : vector<1x128xf32> to vector<2x128xf32>
    %521 = arith.addf %519, %520 : vector<2x128xf32>
    %522 = vector.extract_strided_slice %521 {offsets = [0, 0], sizes = [2, 32], strides = [1, 1]} : vector<2x128xf32> to vector<2x32xf32>
    %523 = arith.negf %522 : vector<2x32xf32>
    %524 = math.exp %523 : vector<2x32xf32>
    %cst_101 = arith.constant 1.000000e+00 : f32
    %525 = vector.broadcast %cst_101 : f32 to vector<2x32xf32>
    %526 = arith.addf %525, %524 : vector<2x32xf32>
    %527 = arith.divf %525, %526 : vector<2x32xf32>
    %528 = vector.extract_strided_slice %521 {offsets = [0, 32], sizes = [2, 32], strides = [1, 1]} : vector<2x128xf32> to vector<2x32xf32>
    %529 = arith.negf %528 : vector<2x32xf32>
    %530 = math.exp %529 : vector<2x32xf32>
    %cst_102 = arith.constant 1.000000e+00 : f32
    %531 = vector.broadcast %cst_102 : f32 to vector<2x32xf32>
    %532 = arith.addf %531, %530 : vector<2x32xf32>
    %533 = arith.divf %531, %532 : vector<2x32xf32>
    %534 = vector.extract_strided_slice %521 {offsets = [0, 64], sizes = [2, 32], strides = [1, 1]} : vector<2x128xf32> to vector<2x32xf32>
    %535 = math.tanh %534 : vector<2x32xf32>
    %536 = vector.extract_strided_slice %521 {offsets = [0, 96], sizes = [2, 32], strides = [1, 1]} : vector<2x128xf32> to vector<2x32xf32>
    %537 = arith.negf %536 : vector<2x32xf32>
    %538 = math.exp %537 : vector<2x32xf32>
    %cst_103 = arith.constant 1.000000e+00 : f32
    %539 = vector.broadcast %cst_103 : f32 to vector<2x32xf32>
    %540 = arith.addf %539, %538 : vector<2x32xf32>
    %541 = arith.divf %539, %540 : vector<2x32xf32>
    %542 = arith.mulf %533, %428 : vector<2x32xf32>
    %543 = arith.mulf %527, %535 : vector<2x32xf32>
    %544 = arith.addf %542, %543 : vector<2x32xf32>
    %545 = math.tanh %544 : vector<2x32xf32>
    %546 = arith.mulf %541, %545 : vector<2x32xf32>
    %547 = vector.extract_strided_slice %11 {offsets = [8, 0], sizes = [2, 128], strides = [1, 1]} : vector<16x128xf32> to vector<2x128xf32>
    %cst_104 = arith.constant dense<0.000000e+00> : vector<2x128xf32>
    %548 = tpu.matmul %458, %15, %cst_104 {dimension_numbers = #tpu.dot_dimension_numbers<[1], [0], [0], [1], [0, 0, 1, 1], [], []>} : vector<2x32xf32>, vector<32x128xf32>, vector<2x128xf32> -> vector<2x128xf32>
    %549 = arith.addf %547, %548 : vector<2x128xf32>
    %550 = vector.extract_strided_slice %549 {offsets = [0, 0], sizes = [2, 32], strides = [1, 1]} : vector<2x128xf32> to vector<2x32xf32>
    %551 = arith.negf %550 : vector<2x32xf32>
    %552 = math.exp %551 : vector<2x32xf32>
    %cst_105 = arith.constant 1.000000e+00 : f32
    %553 = vector.broadcast %cst_105 : f32 to vector<2x32xf32>
    %554 = arith.addf %553, %552 : vector<2x32xf32>
    %555 = arith.divf %553, %554 : vector<2x32xf32>
    %556 = vector.extract_strided_slice %549 {offsets = [0, 32], sizes = [2, 32], strides = [1, 1]} : vector<2x128xf32> to vector<2x32xf32>
    %557 = arith.negf %556 : vector<2x32xf32>
    %558 = math.exp %557 : vector<2x32xf32>
    %cst_106 = arith.constant 1.000000e+00 : f32
    %559 = vector.broadcast %cst_106 : f32 to vector<2x32xf32>
    %560 = arith.addf %559, %558 : vector<2x32xf32>
    %561 = arith.divf %559, %560 : vector<2x32xf32>
    %562 = vector.extract_strided_slice %549 {offsets = [0, 64], sizes = [2, 32], strides = [1, 1]} : vector<2x128xf32> to vector<2x32xf32>
    %563 = math.tanh %562 : vector<2x32xf32>
    %564 = vector.extract_strided_slice %549 {offsets = [0, 96], sizes = [2, 32], strides = [1, 1]} : vector<2x128xf32> to vector<2x32xf32>
    %565 = arith.negf %564 : vector<2x32xf32>
    %566 = math.exp %565 : vector<2x32xf32>
    %cst_107 = arith.constant 1.000000e+00 : f32
    %567 = vector.broadcast %cst_107 : f32 to vector<2x32xf32>
    %568 = arith.addf %567, %566 : vector<2x32xf32>
    %569 = arith.divf %567, %568 : vector<2x32xf32>
    %570 = arith.mulf %561, %456 : vector<2x32xf32>
    %571 = arith.mulf %555, %563 : vector<2x32xf32>
    %572 = arith.addf %570, %571 : vector<2x32xf32>
    %573 = math.tanh %572 : vector<2x32xf32>
    %574 = arith.mulf %569, %573 : vector<2x32xf32>
    %575 = tpu.concatenate %574, %487 in 1 : vector<2x32xf32>, vector<2x32xf32> -> vector<2x64xf32>
    %cst_108 = arith.constant dense<0.000000e+00> : vector<2x128xf32>
    %576 = tpu.matmul %575, %16, %cst_108 {dimension_numbers = #tpu.dot_dimension_numbers<[1], [0], [0], [1], [0, 0, 1, 1], [], []>} : vector<2x64xf32>, vector<64x128xf32>, vector<2x128xf32> -> vector<2x128xf32>
    %577 = vector.broadcast %17 : vector<1x128xf32> to vector<2x128xf32>
    %578 = arith.addf %576, %577 : vector<2x128xf32>
    %579 = vector.extract_strided_slice %578 {offsets = [0, 0], sizes = [2, 32], strides = [1, 1]} : vector<2x128xf32> to vector<2x32xf32>
    %580 = arith.negf %579 : vector<2x32xf32>
    %581 = math.exp %580 : vector<2x32xf32>
    %cst_109 = arith.constant 1.000000e+00 : f32
    %582 = vector.broadcast %cst_109 : f32 to vector<2x32xf32>
    %583 = arith.addf %582, %581 : vector<2x32xf32>
    %584 = arith.divf %582, %583 : vector<2x32xf32>
    %585 = vector.extract_strided_slice %578 {offsets = [0, 32], sizes = [2, 32], strides = [1, 1]} : vector<2x128xf32> to vector<2x32xf32>
    %586 = arith.negf %585 : vector<2x32xf32>
    %587 = math.exp %586 : vector<2x32xf32>
    %cst_110 = arith.constant 1.000000e+00 : f32
    %588 = vector.broadcast %cst_110 : f32 to vector<2x32xf32>
    %589 = arith.addf %588, %587 : vector<2x32xf32>
    %590 = arith.divf %588, %589 : vector<2x32xf32>
    %591 = vector.extract_strided_slice %578 {offsets = [0, 64], sizes = [2, 32], strides = [1, 1]} : vector<2x128xf32> to vector<2x32xf32>
    %592 = math.tanh %591 : vector<2x32xf32>
    %593 = vector.extract_strided_slice %578 {offsets = [0, 96], sizes = [2, 32], strides = [1, 1]} : vector<2x128xf32> to vector<2x32xf32>
    %594 = arith.negf %593 : vector<2x32xf32>
    %595 = math.exp %594 : vector<2x32xf32>
    %cst_111 = arith.constant 1.000000e+00 : f32
    %596 = vector.broadcast %cst_111 : f32 to vector<2x32xf32>
    %597 = arith.addf %596, %595 : vector<2x32xf32>
    %598 = arith.divf %596, %597 : vector<2x32xf32>
    %599 = arith.mulf %590, %485 : vector<2x32xf32>
    %600 = arith.mulf %584, %592 : vector<2x32xf32>
    %601 = arith.addf %599, %600 : vector<2x32xf32>
    %602 = math.tanh %601 : vector<2x32xf32>
    %603 = arith.mulf %598, %602 : vector<2x32xf32>
    %604 = vector.extract_strided_slice %546 {offsets = [1, 0], sizes = [1, 32], strides = [1, 1]} : vector<2x32xf32> to vector<1x32xf32>
    %605 = vector.extract_strided_slice %603 {offsets = [1, 0], sizes = [1, 32], strides = [1, 1]} : vector<2x32xf32> to vector<1x32xf32>
    %606 = vector.extract_strided_slice %5 {offsets = [10, 0], sizes = [2, 128], strides = [1, 1]} : vector<16x128xf32> to vector<2x128xf32>
    %cst_112 = arith.constant dense<0.000000e+00> : vector<2x128xf32>
    %607 = tpu.matmul %517, %12, %cst_112 {dimension_numbers = #tpu.dot_dimension_numbers<[1], [0], [0], [1], [0, 0, 1, 1], [], []>} : vector<2x32xf32>, vector<32x128xf32>, vector<2x128xf32> -> vector<2x128xf32>
    %608 = arith.addf %606, %607 : vector<2x128xf32>
    %609 = vector.extract_strided_slice %608 {offsets = [0, 0], sizes = [2, 32], strides = [1, 1]} : vector<2x128xf32> to vector<2x32xf32>
    %610 = arith.negf %609 : vector<2x32xf32>
    %611 = math.exp %610 : vector<2x32xf32>
    %cst_113 = arith.constant 1.000000e+00 : f32
    %612 = vector.broadcast %cst_113 : f32 to vector<2x32xf32>
    %613 = arith.addf %612, %611 : vector<2x32xf32>
    %614 = arith.divf %612, %613 : vector<2x32xf32>
    %615 = vector.extract_strided_slice %608 {offsets = [0, 32], sizes = [2, 32], strides = [1, 1]} : vector<2x128xf32> to vector<2x32xf32>
    %616 = arith.negf %615 : vector<2x32xf32>
    %617 = math.exp %616 : vector<2x32xf32>
    %cst_114 = arith.constant 1.000000e+00 : f32
    %618 = vector.broadcast %cst_114 : f32 to vector<2x32xf32>
    %619 = arith.addf %618, %617 : vector<2x32xf32>
    %620 = arith.divf %618, %619 : vector<2x32xf32>
    %621 = vector.extract_strided_slice %608 {offsets = [0, 64], sizes = [2, 32], strides = [1, 1]} : vector<2x128xf32> to vector<2x32xf32>
    %622 = math.tanh %621 : vector<2x32xf32>
    %623 = vector.extract_strided_slice %608 {offsets = [0, 96], sizes = [2, 32], strides = [1, 1]} : vector<2x128xf32> to vector<2x32xf32>
    %624 = arith.negf %623 : vector<2x32xf32>
    %625 = math.exp %624 : vector<2x32xf32>
    %cst_115 = arith.constant 1.000000e+00 : f32
    %626 = vector.broadcast %cst_115 : f32 to vector<2x32xf32>
    %627 = arith.addf %626, %625 : vector<2x32xf32>
    %628 = arith.divf %626, %627 : vector<2x32xf32>
    %629 = arith.mulf %620, %515 : vector<2x32xf32>
    %630 = arith.mulf %614, %622 : vector<2x32xf32>
    %631 = arith.addf %629, %630 : vector<2x32xf32>
    %632 = math.tanh %631 : vector<2x32xf32>
    %633 = arith.mulf %628, %632 : vector<2x32xf32>
    %634 = tpu.concatenate %633, %546 in 1 : vector<2x32xf32>, vector<2x32xf32> -> vector<2x64xf32>
    %cst_116 = arith.constant dense<0.000000e+00> : vector<2x128xf32>
    %635 = tpu.matmul %634, %13, %cst_116 {dimension_numbers = #tpu.dot_dimension_numbers<[1], [0], [0], [1], [0, 0, 1, 1], [], []>} : vector<2x64xf32>, vector<64x128xf32>, vector<2x128xf32> -> vector<2x128xf32>
    %636 = vector.broadcast %14 : vector<1x128xf32> to vector<2x128xf32>
    %637 = arith.addf %635, %636 : vector<2x128xf32>
    %638 = vector.extract_strided_slice %637 {offsets = [0, 0], sizes = [2, 32], strides = [1, 1]} : vector<2x128xf32> to vector<2x32xf32>
    %639 = arith.negf %638 : vector<2x32xf32>
    %640 = math.exp %639 : vector<2x32xf32>
    %cst_117 = arith.constant 1.000000e+00 : f32
    %641 = vector.broadcast %cst_117 : f32 to vector<2x32xf32>
    %642 = arith.addf %641, %640 : vector<2x32xf32>
    %643 = arith.divf %641, %642 : vector<2x32xf32>
    %644 = vector.extract_strided_slice %637 {offsets = [0, 32], sizes = [2, 32], strides = [1, 1]} : vector<2x128xf32> to vector<2x32xf32>
    %645 = arith.negf %644 : vector<2x32xf32>
    %646 = math.exp %645 : vector<2x32xf32>
    %cst_118 = arith.constant 1.000000e+00 : f32
    %647 = vector.broadcast %cst_118 : f32 to vector<2x32xf32>
    %648 = arith.addf %647, %646 : vector<2x32xf32>
    %649 = arith.divf %647, %648 : vector<2x32xf32>
    %650 = vector.extract_strided_slice %637 {offsets = [0, 64], sizes = [2, 32], strides = [1, 1]} : vector<2x128xf32> to vector<2x32xf32>
    %651 = math.tanh %650 : vector<2x32xf32>
    %652 = vector.extract_strided_slice %637 {offsets = [0, 96], sizes = [2, 32], strides = [1, 1]} : vector<2x128xf32> to vector<2x32xf32>
    %653 = arith.negf %652 : vector<2x32xf32>
    %654 = math.exp %653 : vector<2x32xf32>
    %cst_119 = arith.constant 1.000000e+00 : f32
    %655 = vector.broadcast %cst_119 : f32 to vector<2x32xf32>
    %656 = arith.addf %655, %654 : vector<2x32xf32>
    %657 = arith.divf %655, %656 : vector<2x32xf32>
    %658 = arith.mulf %649, %544 : vector<2x32xf32>
    %659 = arith.mulf %643, %651 : vector<2x32xf32>
    %660 = arith.addf %658, %659 : vector<2x32xf32>
    %661 = math.tanh %660 : vector<2x32xf32>
    %662 = arith.mulf %657, %661 : vector<2x32xf32>
    %663 = vector.extract_strided_slice %11 {offsets = [10, 0], sizes = [2, 128], strides = [1, 1]} : vector<16x128xf32> to vector<2x128xf32>
    %cst_120 = arith.constant dense<0.000000e+00> : vector<2x128xf32>
    %664 = tpu.matmul %574, %15, %cst_120 {dimension_numbers = #tpu.dot_dimension_numbers<[1], [0], [0], [1], [0, 0, 1, 1], [], []>} : vector<2x32xf32>, vector<32x128xf32>, vector<2x128xf32> -> vector<2x128xf32>
    %665 = arith.addf %663, %664 : vector<2x128xf32>
    %666 = vector.extract_strided_slice %665 {offsets = [0, 0], sizes = [2, 32], strides = [1, 1]} : vector<2x128xf32> to vector<2x32xf32>
    %667 = arith.negf %666 : vector<2x32xf32>
    %668 = math.exp %667 : vector<2x32xf32>
    %cst_121 = arith.constant 1.000000e+00 : f32
    %669 = vector.broadcast %cst_121 : f32 to vector<2x32xf32>
    %670 = arith.addf %669, %668 : vector<2x32xf32>
    %671 = arith.divf %669, %670 : vector<2x32xf32>
    %672 = vector.extract_strided_slice %665 {offsets = [0, 32], sizes = [2, 32], strides = [1, 1]} : vector<2x128xf32> to vector<2x32xf32>
    %673 = arith.negf %672 : vector<2x32xf32>
    %674 = math.exp %673 : vector<2x32xf32>
    %cst_122 = arith.constant 1.000000e+00 : f32
    %675 = vector.broadcast %cst_122 : f32 to vector<2x32xf32>
    %676 = arith.addf %675, %674 : vector<2x32xf32>
    %677 = arith.divf %675, %676 : vector<2x32xf32>
    %678 = vector.extract_strided_slice %665 {offsets = [0, 64], sizes = [2, 32], strides = [1, 1]} : vector<2x128xf32> to vector<2x32xf32>
    %679 = math.tanh %678 : vector<2x32xf32>
    %680 = vector.extract_strided_slice %665 {offsets = [0, 96], sizes = [2, 32], strides = [1, 1]} : vector<2x128xf32> to vector<2x32xf32>
    %681 = arith.negf %680 : vector<2x32xf32>
    %682 = math.exp %681 : vector<2x32xf32>
    %cst_123 = arith.constant 1.000000e+00 : f32
    %683 = vector.broadcast %cst_123 : f32 to vector<2x32xf32>
    %684 = arith.addf %683, %682 : vector<2x32xf32>
    %685 = arith.divf %683, %684 : vector<2x32xf32>
    %686 = arith.mulf %677, %572 : vector<2x32xf32>
    %687 = arith.mulf %671, %679 : vector<2x32xf32>
    %688 = arith.addf %686, %687 : vector<2x32xf32>
    %689 = math.tanh %688 : vector<2x32xf32>
    %690 = arith.mulf %685, %689 : vector<2x32xf32>
    %691 = tpu.concatenate %690, %603 in 1 : vector<2x32xf32>, vector<2x32xf32> -> vector<2x64xf32>
    %cst_124 = arith.constant dense<0.000000e+00> : vector<2x128xf32>
    %692 = tpu.matmul %691, %16, %cst_124 {dimension_numbers = #tpu.dot_dimension_numbers<[1], [0], [0], [1], [0, 0, 1, 1], [], []>} : vector<2x64xf32>, vector<64x128xf32>, vector<2x128xf32> -> vector<2x128xf32>
    %693 = vector.broadcast %17 : vector<1x128xf32> to vector<2x128xf32>
    %694 = arith.addf %692, %693 : vector<2x128xf32>
    %695 = vector.extract_strided_slice %694 {offsets = [0, 0], sizes = [2, 32], strides = [1, 1]} : vector<2x128xf32> to vector<2x32xf32>
    %696 = arith.negf %695 : vector<2x32xf32>
    %697 = math.exp %696 : vector<2x32xf32>
    %cst_125 = arith.constant 1.000000e+00 : f32
    %698 = vector.broadcast %cst_125 : f32 to vector<2x32xf32>
    %699 = arith.addf %698, %697 : vector<2x32xf32>
    %700 = arith.divf %698, %699 : vector<2x32xf32>
    %701 = vector.extract_strided_slice %694 {offsets = [0, 32], sizes = [2, 32], strides = [1, 1]} : vector<2x128xf32> to vector<2x32xf32>
    %702 = arith.negf %701 : vector<2x32xf32>
    %703 = math.exp %702 : vector<2x32xf32>
    %cst_126 = arith.constant 1.000000e+00 : f32
    %704 = vector.broadcast %cst_126 : f32 to vector<2x32xf32>
    %705 = arith.addf %704, %703 : vector<2x32xf32>
    %706 = arith.divf %704, %705 : vector<2x32xf32>
    %707 = vector.extract_strided_slice %694 {offsets = [0, 64], sizes = [2, 32], strides = [1, 1]} : vector<2x128xf32> to vector<2x32xf32>
    %708 = math.tanh %707 : vector<2x32xf32>
    %709 = vector.extract_strided_slice %694 {offsets = [0, 96], sizes = [2, 32], strides = [1, 1]} : vector<2x128xf32> to vector<2x32xf32>
    %710 = arith.negf %709 : vector<2x32xf32>
    %711 = math.exp %710 : vector<2x32xf32>
    %cst_127 = arith.constant 1.000000e+00 : f32
    %712 = vector.broadcast %cst_127 : f32 to vector<2x32xf32>
    %713 = arith.addf %712, %711 : vector<2x32xf32>
    %714 = arith.divf %712, %713 : vector<2x32xf32>
    %715 = arith.mulf %706, %601 : vector<2x32xf32>
    %716 = arith.mulf %700, %708 : vector<2x32xf32>
    %717 = arith.addf %715, %716 : vector<2x32xf32>
    %718 = math.tanh %717 : vector<2x32xf32>
    %719 = arith.mulf %714, %718 : vector<2x32xf32>
    %720 = vector.extract_strided_slice %662 {offsets = [1, 0], sizes = [1, 32], strides = [1, 1]} : vector<2x32xf32> to vector<1x32xf32>
    %721 = vector.extract_strided_slice %719 {offsets = [1, 0], sizes = [1, 32], strides = [1, 1]} : vector<2x32xf32> to vector<1x32xf32>
    %722 = vector.extract_strided_slice %5 {offsets = [12, 0], sizes = [2, 128], strides = [1, 1]} : vector<16x128xf32> to vector<2x128xf32>
    %cst_128 = arith.constant dense<0.000000e+00> : vector<2x128xf32>
    %723 = tpu.matmul %633, %12, %cst_128 {dimension_numbers = #tpu.dot_dimension_numbers<[1], [0], [0], [1], [0, 0, 1, 1], [], []>} : vector<2x32xf32>, vector<32x128xf32>, vector<2x128xf32> -> vector<2x128xf32>
    %724 = arith.addf %722, %723 : vector<2x128xf32>
    %725 = vector.extract_strided_slice %724 {offsets = [0, 0], sizes = [2, 32], strides = [1, 1]} : vector<2x128xf32> to vector<2x32xf32>
    %726 = arith.negf %725 : vector<2x32xf32>
    %727 = math.exp %726 : vector<2x32xf32>
    %cst_129 = arith.constant 1.000000e+00 : f32
    %728 = vector.broadcast %cst_129 : f32 to vector<2x32xf32>
    %729 = arith.addf %728, %727 : vector<2x32xf32>
    %730 = arith.divf %728, %729 : vector<2x32xf32>
    %731 = vector.extract_strided_slice %724 {offsets = [0, 32], sizes = [2, 32], strides = [1, 1]} : vector<2x128xf32> to vector<2x32xf32>
    %732 = arith.negf %731 : vector<2x32xf32>
    %733 = math.exp %732 : vector<2x32xf32>
    %cst_130 = arith.constant 1.000000e+00 : f32
    %734 = vector.broadcast %cst_130 : f32 to vector<2x32xf32>
    %735 = arith.addf %734, %733 : vector<2x32xf32>
    %736 = arith.divf %734, %735 : vector<2x32xf32>
    %737 = vector.extract_strided_slice %724 {offsets = [0, 64], sizes = [2, 32], strides = [1, 1]} : vector<2x128xf32> to vector<2x32xf32>
    %738 = math.tanh %737 : vector<2x32xf32>
    %739 = vector.extract_strided_slice %724 {offsets = [0, 96], sizes = [2, 32], strides = [1, 1]} : vector<2x128xf32> to vector<2x32xf32>
    %740 = arith.negf %739 : vector<2x32xf32>
    %741 = math.exp %740 : vector<2x32xf32>
    %cst_131 = arith.constant 1.000000e+00 : f32
    %742 = vector.broadcast %cst_131 : f32 to vector<2x32xf32>
    %743 = arith.addf %742, %741 : vector<2x32xf32>
    %744 = arith.divf %742, %743 : vector<2x32xf32>
    %745 = arith.mulf %736, %631 : vector<2x32xf32>
    %746 = arith.mulf %730, %738 : vector<2x32xf32>
    %747 = arith.addf %745, %746 : vector<2x32xf32>
    %748 = math.tanh %747 : vector<2x32xf32>
    %749 = arith.mulf %744, %748 : vector<2x32xf32>
    %750 = tpu.concatenate %749, %662 in 1 : vector<2x32xf32>, vector<2x32xf32> -> vector<2x64xf32>
    %cst_132 = arith.constant dense<0.000000e+00> : vector<2x128xf32>
    %751 = tpu.matmul %750, %13, %cst_132 {dimension_numbers = #tpu.dot_dimension_numbers<[1], [0], [0], [1], [0, 0, 1, 1], [], []>} : vector<2x64xf32>, vector<64x128xf32>, vector<2x128xf32> -> vector<2x128xf32>
    %752 = vector.broadcast %14 : vector<1x128xf32> to vector<2x128xf32>
    %753 = arith.addf %751, %752 : vector<2x128xf32>
    %754 = vector.extract_strided_slice %753 {offsets = [0, 0], sizes = [2, 32], strides = [1, 1]} : vector<2x128xf32> to vector<2x32xf32>
    %755 = arith.negf %754 : vector<2x32xf32>
    %756 = math.exp %755 : vector<2x32xf32>
    %cst_133 = arith.constant 1.000000e+00 : f32
    %757 = vector.broadcast %cst_133 : f32 to vector<2x32xf32>
    %758 = arith.addf %757, %756 : vector<2x32xf32>
    %759 = arith.divf %757, %758 : vector<2x32xf32>
    %760 = vector.extract_strided_slice %753 {offsets = [0, 32], sizes = [2, 32], strides = [1, 1]} : vector<2x128xf32> to vector<2x32xf32>
    %761 = arith.negf %760 : vector<2x32xf32>
    %762 = math.exp %761 : vector<2x32xf32>
    %cst_134 = arith.constant 1.000000e+00 : f32
    %763 = vector.broadcast %cst_134 : f32 to vector<2x32xf32>
    %764 = arith.addf %763, %762 : vector<2x32xf32>
    %765 = arith.divf %763, %764 : vector<2x32xf32>
    %766 = vector.extract_strided_slice %753 {offsets = [0, 64], sizes = [2, 32], strides = [1, 1]} : vector<2x128xf32> to vector<2x32xf32>
    %767 = math.tanh %766 : vector<2x32xf32>
    %768 = vector.extract_strided_slice %753 {offsets = [0, 96], sizes = [2, 32], strides = [1, 1]} : vector<2x128xf32> to vector<2x32xf32>
    %769 = arith.negf %768 : vector<2x32xf32>
    %770 = math.exp %769 : vector<2x32xf32>
    %cst_135 = arith.constant 1.000000e+00 : f32
    %771 = vector.broadcast %cst_135 : f32 to vector<2x32xf32>
    %772 = arith.addf %771, %770 : vector<2x32xf32>
    %773 = arith.divf %771, %772 : vector<2x32xf32>
    %774 = arith.mulf %765, %660 : vector<2x32xf32>
    %775 = arith.mulf %759, %767 : vector<2x32xf32>
    %776 = arith.addf %774, %775 : vector<2x32xf32>
    %777 = math.tanh %776 : vector<2x32xf32>
    %778 = arith.mulf %773, %777 : vector<2x32xf32>
    %779 = vector.extract_strided_slice %11 {offsets = [12, 0], sizes = [2, 128], strides = [1, 1]} : vector<16x128xf32> to vector<2x128xf32>
    %cst_136 = arith.constant dense<0.000000e+00> : vector<2x128xf32>
    %780 = tpu.matmul %690, %15, %cst_136 {dimension_numbers = #tpu.dot_dimension_numbers<[1], [0], [0], [1], [0, 0, 1, 1], [], []>} : vector<2x32xf32>, vector<32x128xf32>, vector<2x128xf32> -> vector<2x128xf32>
    %781 = arith.addf %779, %780 : vector<2x128xf32>
    %782 = vector.extract_strided_slice %781 {offsets = [0, 0], sizes = [2, 32], strides = [1, 1]} : vector<2x128xf32> to vector<2x32xf32>
    %783 = arith.negf %782 : vector<2x32xf32>
    %784 = math.exp %783 : vector<2x32xf32>
    %cst_137 = arith.constant 1.000000e+00 : f32
    %785 = vector.broadcast %cst_137 : f32 to vector<2x32xf32>
    %786 = arith.addf %785, %784 : vector<2x32xf32>
    %787 = arith.divf %785, %786 : vector<2x32xf32>
    %788 = vector.extract_strided_slice %781 {offsets = [0, 32], sizes = [2, 32], strides = [1, 1]} : vector<2x128xf32> to vector<2x32xf32>
    %789 = arith.negf %788 : vector<2x32xf32>
    %790 = math.exp %789 : vector<2x32xf32>
    %cst_138 = arith.constant 1.000000e+00 : f32
    %791 = vector.broadcast %cst_138 : f32 to vector<2x32xf32>
    %792 = arith.addf %791, %790 : vector<2x32xf32>
    %793 = arith.divf %791, %792 : vector<2x32xf32>
    %794 = vector.extract_strided_slice %781 {offsets = [0, 64], sizes = [2, 32], strides = [1, 1]} : vector<2x128xf32> to vector<2x32xf32>
    %795 = math.tanh %794 : vector<2x32xf32>
    %796 = vector.extract_strided_slice %781 {offsets = [0, 96], sizes = [2, 32], strides = [1, 1]} : vector<2x128xf32> to vector<2x32xf32>
    %797 = arith.negf %796 : vector<2x32xf32>
    %798 = math.exp %797 : vector<2x32xf32>
    %cst_139 = arith.constant 1.000000e+00 : f32
    %799 = vector.broadcast %cst_139 : f32 to vector<2x32xf32>
    %800 = arith.addf %799, %798 : vector<2x32xf32>
    %801 = arith.divf %799, %800 : vector<2x32xf32>
    %802 = arith.mulf %793, %688 : vector<2x32xf32>
    %803 = arith.mulf %787, %795 : vector<2x32xf32>
    %804 = arith.addf %802, %803 : vector<2x32xf32>
    %805 = math.tanh %804 : vector<2x32xf32>
    %806 = arith.mulf %801, %805 : vector<2x32xf32>
    %807 = tpu.concatenate %806, %719 in 1 : vector<2x32xf32>, vector<2x32xf32> -> vector<2x64xf32>
    %cst_140 = arith.constant dense<0.000000e+00> : vector<2x128xf32>
    %808 = tpu.matmul %807, %16, %cst_140 {dimension_numbers = #tpu.dot_dimension_numbers<[1], [0], [0], [1], [0, 0, 1, 1], [], []>} : vector<2x64xf32>, vector<64x128xf32>, vector<2x128xf32> -> vector<2x128xf32>
    %809 = vector.broadcast %17 : vector<1x128xf32> to vector<2x128xf32>
    %810 = arith.addf %808, %809 : vector<2x128xf32>
    %811 = vector.extract_strided_slice %810 {offsets = [0, 0], sizes = [2, 32], strides = [1, 1]} : vector<2x128xf32> to vector<2x32xf32>
    %812 = arith.negf %811 : vector<2x32xf32>
    %813 = math.exp %812 : vector<2x32xf32>
    %cst_141 = arith.constant 1.000000e+00 : f32
    %814 = vector.broadcast %cst_141 : f32 to vector<2x32xf32>
    %815 = arith.addf %814, %813 : vector<2x32xf32>
    %816 = arith.divf %814, %815 : vector<2x32xf32>
    %817 = vector.extract_strided_slice %810 {offsets = [0, 32], sizes = [2, 32], strides = [1, 1]} : vector<2x128xf32> to vector<2x32xf32>
    %818 = arith.negf %817 : vector<2x32xf32>
    %819 = math.exp %818 : vector<2x32xf32>
    %cst_142 = arith.constant 1.000000e+00 : f32
    %820 = vector.broadcast %cst_142 : f32 to vector<2x32xf32>
    %821 = arith.addf %820, %819 : vector<2x32xf32>
    %822 = arith.divf %820, %821 : vector<2x32xf32>
    %823 = vector.extract_strided_slice %810 {offsets = [0, 64], sizes = [2, 32], strides = [1, 1]} : vector<2x128xf32> to vector<2x32xf32>
    %824 = math.tanh %823 : vector<2x32xf32>
    %825 = vector.extract_strided_slice %810 {offsets = [0, 96], sizes = [2, 32], strides = [1, 1]} : vector<2x128xf32> to vector<2x32xf32>
    %826 = arith.negf %825 : vector<2x32xf32>
    %827 = math.exp %826 : vector<2x32xf32>
    %cst_143 = arith.constant 1.000000e+00 : f32
    %828 = vector.broadcast %cst_143 : f32 to vector<2x32xf32>
    %829 = arith.addf %828, %827 : vector<2x32xf32>
    %830 = arith.divf %828, %829 : vector<2x32xf32>
    %831 = arith.mulf %822, %717 : vector<2x32xf32>
    %832 = arith.mulf %816, %824 : vector<2x32xf32>
    %833 = arith.addf %831, %832 : vector<2x32xf32>
    %834 = math.tanh %833 : vector<2x32xf32>
    %835 = arith.mulf %830, %834 : vector<2x32xf32>
    %836 = vector.extract_strided_slice %778 {offsets = [1, 0], sizes = [1, 32], strides = [1, 1]} : vector<2x32xf32> to vector<1x32xf32>
    %837 = vector.extract_strided_slice %835 {offsets = [1, 0], sizes = [1, 32], strides = [1, 1]} : vector<2x32xf32> to vector<1x32xf32>
    %838 = vector.extract_strided_slice %5 {offsets = [14, 0], sizes = [2, 128], strides = [1, 1]} : vector<16x128xf32> to vector<2x128xf32>
    %cst_144 = arith.constant dense<0.000000e+00> : vector<2x128xf32>
    %839 = tpu.matmul %749, %12, %cst_144 {dimension_numbers = #tpu.dot_dimension_numbers<[1], [0], [0], [1], [0, 0, 1, 1], [], []>} : vector<2x32xf32>, vector<32x128xf32>, vector<2x128xf32> -> vector<2x128xf32>
    %840 = arith.addf %838, %839 : vector<2x128xf32>
    %841 = vector.extract_strided_slice %840 {offsets = [0, 0], sizes = [2, 32], strides = [1, 1]} : vector<2x128xf32> to vector<2x32xf32>
    %842 = arith.negf %841 : vector<2x32xf32>
    %843 = math.exp %842 : vector<2x32xf32>
    %cst_145 = arith.constant 1.000000e+00 : f32
    %844 = vector.broadcast %cst_145 : f32 to vector<2x32xf32>
    %845 = arith.addf %844, %843 : vector<2x32xf32>
    %846 = arith.divf %844, %845 : vector<2x32xf32>
    %847 = vector.extract_strided_slice %840 {offsets = [0, 32], sizes = [2, 32], strides = [1, 1]} : vector<2x128xf32> to vector<2x32xf32>
    %848 = arith.negf %847 : vector<2x32xf32>
    %849 = math.exp %848 : vector<2x32xf32>
    %cst_146 = arith.constant 1.000000e+00 : f32
    %850 = vector.broadcast %cst_146 : f32 to vector<2x32xf32>
    %851 = arith.addf %850, %849 : vector<2x32xf32>
    %852 = arith.divf %850, %851 : vector<2x32xf32>
    %853 = vector.extract_strided_slice %840 {offsets = [0, 64], sizes = [2, 32], strides = [1, 1]} : vector<2x128xf32> to vector<2x32xf32>
    %854 = math.tanh %853 : vector<2x32xf32>
    %855 = vector.extract_strided_slice %840 {offsets = [0, 96], sizes = [2, 32], strides = [1, 1]} : vector<2x128xf32> to vector<2x32xf32>
    %856 = arith.negf %855 : vector<2x32xf32>
    %857 = math.exp %856 : vector<2x32xf32>
    %cst_147 = arith.constant 1.000000e+00 : f32
    %858 = vector.broadcast %cst_147 : f32 to vector<2x32xf32>
    %859 = arith.addf %858, %857 : vector<2x32xf32>
    %860 = arith.divf %858, %859 : vector<2x32xf32>
    %861 = arith.mulf %852, %747 : vector<2x32xf32>
    %862 = arith.mulf %846, %854 : vector<2x32xf32>
    %863 = arith.addf %861, %862 : vector<2x32xf32>
    %864 = math.tanh %863 : vector<2x32xf32>
    %865 = arith.mulf %860, %864 : vector<2x32xf32>
    %866 = tpu.concatenate %865, %778 in 1 : vector<2x32xf32>, vector<2x32xf32> -> vector<2x64xf32>
    %cst_148 = arith.constant dense<0.000000e+00> : vector<2x128xf32>
    %867 = tpu.matmul %866, %13, %cst_148 {dimension_numbers = #tpu.dot_dimension_numbers<[1], [0], [0], [1], [0, 0, 1, 1], [], []>} : vector<2x64xf32>, vector<64x128xf32>, vector<2x128xf32> -> vector<2x128xf32>
    %868 = vector.broadcast %14 : vector<1x128xf32> to vector<2x128xf32>
    %869 = arith.addf %867, %868 : vector<2x128xf32>
    %870 = vector.extract_strided_slice %869 {offsets = [0, 0], sizes = [2, 32], strides = [1, 1]} : vector<2x128xf32> to vector<2x32xf32>
    %871 = arith.negf %870 : vector<2x32xf32>
    %872 = math.exp %871 : vector<2x32xf32>
    %cst_149 = arith.constant 1.000000e+00 : f32
    %873 = vector.broadcast %cst_149 : f32 to vector<2x32xf32>
    %874 = arith.addf %873, %872 : vector<2x32xf32>
    %875 = arith.divf %873, %874 : vector<2x32xf32>
    %876 = vector.extract_strided_slice %869 {offsets = [0, 32], sizes = [2, 32], strides = [1, 1]} : vector<2x128xf32> to vector<2x32xf32>
    %877 = arith.negf %876 : vector<2x32xf32>
    %878 = math.exp %877 : vector<2x32xf32>
    %cst_150 = arith.constant 1.000000e+00 : f32
    %879 = vector.broadcast %cst_150 : f32 to vector<2x32xf32>
    %880 = arith.addf %879, %878 : vector<2x32xf32>
    %881 = arith.divf %879, %880 : vector<2x32xf32>
    %882 = vector.extract_strided_slice %869 {offsets = [0, 64], sizes = [2, 32], strides = [1, 1]} : vector<2x128xf32> to vector<2x32xf32>
    %883 = math.tanh %882 : vector<2x32xf32>
    %884 = vector.extract_strided_slice %869 {offsets = [0, 96], sizes = [2, 32], strides = [1, 1]} : vector<2x128xf32> to vector<2x32xf32>
    %885 = arith.negf %884 : vector<2x32xf32>
    %886 = math.exp %885 : vector<2x32xf32>
    %cst_151 = arith.constant 1.000000e+00 : f32
    %887 = vector.broadcast %cst_151 : f32 to vector<2x32xf32>
    %888 = arith.addf %887, %886 : vector<2x32xf32>
    %889 = arith.divf %887, %888 : vector<2x32xf32>
    %890 = arith.mulf %881, %776 : vector<2x32xf32>
    %891 = arith.mulf %875, %883 : vector<2x32xf32>
    %892 = arith.addf %890, %891 : vector<2x32xf32>
    %893 = math.tanh %892 : vector<2x32xf32>
    %894 = arith.mulf %889, %893 : vector<2x32xf32>
    %895 = vector.extract_strided_slice %11 {offsets = [14, 0], sizes = [2, 128], strides = [1, 1]} : vector<16x128xf32> to vector<2x128xf32>
    %cst_152 = arith.constant dense<0.000000e+00> : vector<2x128xf32>
    %896 = tpu.matmul %806, %15, %cst_152 {dimension_numbers = #tpu.dot_dimension_numbers<[1], [0], [0], [1], [0, 0, 1, 1], [], []>} : vector<2x32xf32>, vector<32x128xf32>, vector<2x128xf32> -> vector<2x128xf32>
    %897 = arith.addf %895, %896 : vector<2x128xf32>
    %898 = vector.extract_strided_slice %897 {offsets = [0, 0], sizes = [2, 32], strides = [1, 1]} : vector<2x128xf32> to vector<2x32xf32>
    %899 = arith.negf %898 : vector<2x32xf32>
    %900 = math.exp %899 : vector<2x32xf32>
    %cst_153 = arith.constant 1.000000e+00 : f32
    %901 = vector.broadcast %cst_153 : f32 to vector<2x32xf32>
    %902 = arith.addf %901, %900 : vector<2x32xf32>
    %903 = arith.divf %901, %902 : vector<2x32xf32>
    %904 = vector.extract_strided_slice %897 {offsets = [0, 32], sizes = [2, 32], strides = [1, 1]} : vector<2x128xf32> to vector<2x32xf32>
    %905 = arith.negf %904 : vector<2x32xf32>
    %906 = math.exp %905 : vector<2x32xf32>
    %cst_154 = arith.constant 1.000000e+00 : f32
    %907 = vector.broadcast %cst_154 : f32 to vector<2x32xf32>
    %908 = arith.addf %907, %906 : vector<2x32xf32>
    %909 = arith.divf %907, %908 : vector<2x32xf32>
    %910 = vector.extract_strided_slice %897 {offsets = [0, 64], sizes = [2, 32], strides = [1, 1]} : vector<2x128xf32> to vector<2x32xf32>
    %911 = math.tanh %910 : vector<2x32xf32>
    %912 = vector.extract_strided_slice %897 {offsets = [0, 96], sizes = [2, 32], strides = [1, 1]} : vector<2x128xf32> to vector<2x32xf32>
    %913 = arith.negf %912 : vector<2x32xf32>
    %914 = math.exp %913 : vector<2x32xf32>
    %cst_155 = arith.constant 1.000000e+00 : f32
    %915 = vector.broadcast %cst_155 : f32 to vector<2x32xf32>
    %916 = arith.addf %915, %914 : vector<2x32xf32>
    %917 = arith.divf %915, %916 : vector<2x32xf32>
    %918 = arith.mulf %909, %804 : vector<2x32xf32>
    %919 = arith.mulf %903, %911 : vector<2x32xf32>
    %920 = arith.addf %918, %919 : vector<2x32xf32>
    %921 = math.tanh %920 : vector<2x32xf32>
    %922 = arith.mulf %917, %921 : vector<2x32xf32>
    %923 = tpu.concatenate %922, %835 in 1 : vector<2x32xf32>, vector<2x32xf32> -> vector<2x64xf32>
    %cst_156 = arith.constant dense<0.000000e+00> : vector<2x128xf32>
    %924 = tpu.matmul %923, %16, %cst_156 {dimension_numbers = #tpu.dot_dimension_numbers<[1], [0], [0], [1], [0, 0, 1, 1], [], []>} : vector<2x64xf32>, vector<64x128xf32>, vector<2x128xf32> -> vector<2x128xf32>
    %925 = vector.broadcast %17 : vector<1x128xf32> to vector<2x128xf32>
    %926 = arith.addf %924, %925 : vector<2x128xf32>
    %927 = vector.extract_strided_slice %926 {offsets = [0, 0], sizes = [2, 32], strides = [1, 1]} : vector<2x128xf32> to vector<2x32xf32>
    %928 = arith.negf %927 : vector<2x32xf32>
    %929 = math.exp %928 : vector<2x32xf32>
    %cst_157 = arith.constant 1.000000e+00 : f32
    %930 = vector.broadcast %cst_157 : f32 to vector<2x32xf32>
    %931 = arith.addf %930, %929 : vector<2x32xf32>
    %932 = arith.divf %930, %931 : vector<2x32xf32>
    %933 = vector.extract_strided_slice %926 {offsets = [0, 32], sizes = [2, 32], strides = [1, 1]} : vector<2x128xf32> to vector<2x32xf32>
    %934 = arith.negf %933 : vector<2x32xf32>
    %935 = math.exp %934 : vector<2x32xf32>
    %cst_158 = arith.constant 1.000000e+00 : f32
    %936 = vector.broadcast %cst_158 : f32 to vector<2x32xf32>
    %937 = arith.addf %936, %935 : vector<2x32xf32>
    %938 = arith.divf %936, %937 : vector<2x32xf32>
    %939 = vector.extract_strided_slice %926 {offsets = [0, 64], sizes = [2, 32], strides = [1, 1]} : vector<2x128xf32> to vector<2x32xf32>
    %940 = math.tanh %939 : vector<2x32xf32>
    %941 = vector.extract_strided_slice %926 {offsets = [0, 96], sizes = [2, 32], strides = [1, 1]} : vector<2x128xf32> to vector<2x32xf32>
    %942 = arith.negf %941 : vector<2x32xf32>
    %943 = math.exp %942 : vector<2x32xf32>
    %cst_159 = arith.constant 1.000000e+00 : f32
    %944 = vector.broadcast %cst_159 : f32 to vector<2x32xf32>
    %945 = arith.addf %944, %943 : vector<2x32xf32>
    %946 = arith.divf %944, %945 : vector<2x32xf32>
    %947 = arith.mulf %938, %833 : vector<2x32xf32>
    %948 = arith.mulf %932, %940 : vector<2x32xf32>
    %949 = arith.addf %947, %948 : vector<2x32xf32>
    %950 = math.tanh %949 : vector<2x32xf32>
    %951 = arith.mulf %946, %950 : vector<2x32xf32>
    %952 = vector.extract_strided_slice %894 {offsets = [1, 0], sizes = [1, 32], strides = [1, 1]} : vector<2x32xf32> to vector<1x32xf32>
    %953 = vector.extract_strided_slice %951 {offsets = [1, 0], sizes = [1, 32], strides = [1, 1]} : vector<2x32xf32> to vector<1x32xf32>
    %954 = tpu.concatenate %140, %256, %372, %488, %604, %720, %836, %952 in 0 : vector<1x32xf32>, vector<1x32xf32>, vector<1x32xf32>, vector<1x32xf32>, vector<1x32xf32>, vector<1x32xf32>, vector<1x32xf32>, vector<1x32xf32> -> vector<8x32xf32>
    %955 = tpu.concatenate %141, %257, %373, %489, %605, %721, %837, %953 in 0 : vector<1x32xf32>, vector<1x32xf32>, vector<1x32xf32>, vector<1x32xf32>, vector<1x32xf32>, vector<1x32xf32>, vector<1x32xf32>, vector<1x32xf32> -> vector<8x32xf32>
    %c0_160 = arith.constant 0 : index
    %c0_161 = arith.constant 0 : index
    %956 = vector.load %arg8[%c0_160, %c0_161] : memref<32x8xf32, #tpu.memory_space<vmem>>, vector<32x8xf32>
    %cst_162 = arith.constant dense<0.000000e+00> : vector<8x8xf32>
    %957 = tpu.matmul %954, %956, %cst_162 {dimension_numbers = #tpu.dot_dimension_numbers<[1], [0], [0], [1], [0, 0, 1, 1], [], []>} : vector<8x32xf32>, vector<32x8xf32>, vector<8x8xf32> -> vector<8x8xf32>
    %c0_163 = arith.constant 0 : index
    %c0_164 = arith.constant 0 : index
    %958 = vector.load %arg9[%c0_163, %c0_164] : memref<1x8xf32, #tpu.memory_space<vmem>>, vector<1x8xf32>
    %959 = vector.broadcast %958 : vector<1x8xf32> to vector<8x8xf32>
    %960 = arith.addf %957, %959 : vector<8x8xf32>
    %c0_165 = arith.constant 0 : index
    %c0_166 = arith.constant 0 : index
    %961 = vector.load %arg15[%c0_165, %c0_166] : memref<32x8xf32, #tpu.memory_space<vmem>>, vector<32x8xf32>
    %cst_167 = arith.constant dense<0.000000e+00> : vector<8x8xf32>
    %962 = tpu.matmul %955, %961, %cst_167 {dimension_numbers = #tpu.dot_dimension_numbers<[1], [0], [0], [1], [0, 0, 1, 1], [], []>} : vector<8x32xf32>, vector<32x8xf32>, vector<8x8xf32> -> vector<8x8xf32>
    %c0_168 = arith.constant 0 : index
    %c0_169 = arith.constant 0 : index
    %963 = vector.load %arg16[%c0_168, %c0_169] : memref<1x8xf32, #tpu.memory_space<vmem>>, vector<1x8xf32>
    %964 = vector.broadcast %963 : vector<1x8xf32> to vector<8x8xf32>
    %965 = arith.addf %962, %964 : vector<8x8xf32>
    %c0_170 = arith.constant 0 : index
    %c0_171 = arith.constant 0 : index
    %966 = vector.load %arg17[%c0_170, %c0_171] : memref<8x12xf32, #tpu.memory_space<vmem>>, vector<8x12xf32>
    %cst_172 = arith.constant dense<0.000000e+00> : vector<8x12xf32>
    %967 = tpu.matmul %960, %966, %cst_172 {dimension_numbers = #tpu.dot_dimension_numbers<[1], [0], [0], [1], [0, 0, 1, 1], [], []>} : vector<8x8xf32>, vector<8x12xf32>, vector<8x12xf32> -> vector<8x12xf32>
    %c0_173 = arith.constant 0 : index
    %c0_174 = arith.constant 0 : index
    %968 = vector.load %arg18[%c0_173, %c0_174] : memref<8x12xf32, #tpu.memory_space<vmem>>, vector<8x12xf32>
    %cst_175 = arith.constant dense<0.000000e+00> : vector<8x12xf32>
    %969 = tpu.matmul %965, %968, %cst_175 {dimension_numbers = #tpu.dot_dimension_numbers<[1], [0], [0], [1], [0, 0, 1, 1], [], []>} : vector<8x8xf32>, vector<8x12xf32>, vector<8x12xf32> -> vector<8x12xf32>
    %970 = arith.addf %967, %969 : vector<8x12xf32>
    %c0_176 = arith.constant 0 : index
    %c0_177 = arith.constant 0 : index
    %971 = vector.load %arg2[%c0_176, %c0_177] : memref<8x8xf32, #tpu.memory_space<vmem>>, vector<8x8xf32>
    %c0_178 = arith.constant 0 : index
    %c0_179 = arith.constant 0 : index
    %972 = vector.load %arg19[%c0_178, %c0_179] : memref<8x12xf32, #tpu.memory_space<vmem>>, vector<8x12xf32>
    %cst_180 = arith.constant dense<0.000000e+00> : vector<8x12xf32>
    %973 = tpu.matmul %971, %972, %cst_180 {dimension_numbers = #tpu.dot_dimension_numbers<[1], [0], [0], [1], [0, 0, 1, 1], [], []>} : vector<8x8xf32>, vector<8x12xf32>, vector<8x12xf32> -> vector<8x12xf32>
    %974 = arith.addf %970, %973 : vector<8x12xf32>
    %c0_181 = arith.constant 0 : index
    %c0_182 = arith.constant 0 : index
    %975 = vector.load %arg20[%c0_181, %c0_182] : memref<1x12xf32, #tpu.memory_space<vmem>>, vector<1x12xf32>
    %976 = vector.broadcast %975 : vector<1x12xf32> to vector<8x12xf32>
    %977 = arith.addf %974, %976 : vector<8x12xf32>
    %cst_183 = arith.constant 0.000000e+00 : f32
    %978 = vector.broadcast %cst_183 : f32 to vector<8x12xf32>
    %979 = arith.maximumf %977, %978 : vector<8x12xf32>
    %c0_184 = arith.constant 0 : index
    %c0_185 = arith.constant 0 : index
    %980 = vector.load %arg21[%c0_184, %c0_185] : memref<12x1xf32, #tpu.memory_space<vmem>>, vector<12x1xf32>
    %cst_186 = arith.constant dense<0.000000e+00> : vector<8x1xf32>
    %981 = tpu.matmul %979, %980, %cst_186 {dimension_numbers = #tpu.dot_dimension_numbers<[1], [0], [0], [1], [0, 0, 1, 1], [], []>} : vector<8x12xf32>, vector<12x1xf32>, vector<8x1xf32> -> vector<8x1xf32>
    %c0_187 = arith.constant 0 : index
    %c0_188 = arith.constant 0 : index
    %982 = vector.load %arg22[%c0_187, %c0_188] : memref<1x1xf32, #tpu.memory_space<vmem>>, vector<1x1xf32>
    %983 = vector.broadcast %982 : vector<1x1xf32> to vector<8x1xf32>
    %984 = arith.addf %981, %983 : vector<8x1xf32>
    %985 = arith.negf %984 : vector<8x1xf32>
    %986 = math.exp %985 : vector<8x1xf32>
    %cst_189 = arith.constant 1.000000e+00 : f32
    %987 = vector.broadcast %cst_189 : f32 to vector<8x1xf32>
    %988 = arith.addf %987, %986 : vector<8x1xf32>
    %989 = arith.divf %987, %988 : vector<8x1xf32>
    %c0_190 = arith.constant 0 : index
    %c0_191 = arith.constant 0 : index
    %990 = vector.load %arg23[%c0_190, %c0_191] : memref<8x1xf32, #tpu.memory_space<vmem>>, vector<8x1xf32>
    tpu.vector_store %arg23[%c0_190, %c0_191], %989 {strides = array<i32>} : memref<8x1xf32, #tpu.memory_space<vmem>>, vector<8x1xf32>,
    return
  }
}

</mosaic_0001>

<llo_original>
// kernel: lstm_model_forward.1
$region0: #{lstm_model_forward.1}
  #allocation0 [shape = 'u32[]', space=smem, size = 0x4, offset = 0x4, fixed_abs, tag = 'smem constant byte address 0x4 - core index']
  #allocation1 [shape = 'u32[144,128]{1,0:T(1,128)}', space=vmem, size = 0x12000, scoped, tag = 'internal scratch']
  #allocation2 [shape = 'f32[1,1]{1,0:T(1,128)S(1)}', space=vmem, size = 0x200, scoped, tag = 'scoped memory for lstm_model_forward.1']
  %s0 = inlined_call_operand.vmem [shape: f32[16,8], index: 0, kind: input, shape index: {}]
  %s1 = inlined_call_operand.vmem [shape: f32[16,8], index: 1, kind: input, shape index: {}]
  %s2 = inlined_call_operand.vmem [shape: f32[8,8], index: 2, kind: input, shape index: {}]
  %s3 = inlined_call_operand.hbm [shape: f32[8,128], index: 3, kind: input, shape index: {}]
  %s4 = inlined_call_operand.vmem [shape: f32[32,128], index: 4, kind: input, shape index: {}]
  %s5 = inlined_call_operand.hbm [shape: f32[1,128], index: 5, kind: input, shape index: {}]
  %s6 = inlined_call_operand.vmem [shape: f32[64,128], index: 6, kind: input, shape index: {}]
  %s7 = inlined_call_operand.hbm [shape: f32[1,128], index: 7, kind: input, shape index: {}]
  %s8 = inlined_call_operand.vmem [shape: f32[32,8], index: 8, kind: input, shape index: {}]
  %s9 = inlined_call_operand.hbm [shape: f32[1,8], index: 9, kind: input, shape index: {}]
  %s10 = inlined_call_operand.hbm [shape: f32[8,128], index: 10, kind: input, shape index: {}]
  %s11 = inlined_call_operand.vmem [shape: f32[32,128], index: 11, kind: input, shape index: {}]
  %s12 = inlined_call_operand.hbm [shape: f32[1,128], index: 12, kind: input, shape index: {}]
  %s13 = inlined_call_operand.vmem [shape: f32[64,128], index: 13, kind: input, shape index: {}]
  %s14 = inlined_call_operand.hbm [shape: f32[1,128], index: 14, kind: input, shape index: {}]
  %s15 = inlined_call_operand.vmem [shape: f32[32,8], index: 15, kind: input, shape index: {}]
  %s16 = inlined_call_operand.vmem [shape: f32[1,8], index: 16, kind: input, shape index: {}]
  %s17 = inlined_call_operand.hbm [shape: f32[8,12], index: 17, kind: input, shape index: {}]
  %s18 = inlined_call_operand.hbm [shape: f32[8,12], index: 18, kind: input, shape index: {}]
  %s19 = inlined_call_operand.hbm [shape: f32[8,12], index: 19, kind: input, shape index: {}]
  %s20 = inlined_call_operand.hbm [shape: f32[1,12], index: 20, kind: input, shape index: {}]
  %s21 = inlined_call_operand.vmem [shape: f32[12,1], index: 21, kind: input, shape index: {}]
  %s22 = inlined_call_operand.<no memory space> [shape: f32[1,1], index: 22, kind: input, shape index: {}]
  %s23 = inlined_call_operand.vmem [shape: f32[8,1], index: 23, kind: output, shape index: {}]
  %s24 = sld [smem:[#allocation0]]
  $region146: #{lstm_model_forward.1} parent=0
    _
  %s26 = ssub.s32 1, %s24
  %s27 = scalar_select 0, %s26, %s24
  %v28 = vstv %s22
  %29 = vst [vmem:[#allocation2] sm:$0x1] %v28
  $region1: #{lstm_model_forward.1} parent=0
    #allocation3 [shape = 'u8[4096]{0}', space=vmem, size = 0x1000, scoped, tag = 'input window, operand 3, single buffered']
    #allocation4 [shape = 's32[1]{0}', space=sflag, size = 0x4, scoped, tag = 'scoped memory for lstm_model_forward.1']
    #allocation5 [shape = 'u8[512]{0}', space=vmem, size = 0x400, scoped, tag = 'input window, operand 5, single buffered']
    #allocation6 [shape = 's32[1]{0}', space=sflag, size = 0x4, scoped, tag = 'scoped memory for lstm_model_forward.1']
    #allocation7 [shape = 'u8[512]{0}', space=vmem, size = 0x400, scoped, tag = 'input window, operand 7, single buffered']
    #allocation8 [shape = 'u8[512]{0}', space=vmem, size = 0x400, scoped, tag = 'input window, operand 9, single buffered']
    #allocation9 [shape = 's32[1]{0}', space=sflag, size = 0x4, scoped, tag = 'scoped memory for lstm_model_forward.1']
    #allocation10 [shape = 'u8[4096]{0}', space=vmem, size = 0x1000, scoped, tag = 'input window, operand 10, single buffered']
    #allocation11 [shape = 'u8[512]{0}', space=vmem, size = 0x400, scoped, tag = 'input window, operand 12, single buffered']
    #allocation12 [shape = 's32[1]{0}', space=sflag, size = 0x4, scoped, tag = 'scoped memory for lstm_model_forward.1']
    #allocation13 [shape = 'u8[512]{0}', space=vmem, size = 0x400, scoped, tag = 'input window, operand 14, single buffered']
    #allocation14 [shape = 'u8[4096]{0}', space=vmem, size = 0x1000, scoped, tag = 'input window, operand 17, single buffered']
    #allocation15 [shape = 's32[1]{0}', space=sflag, size = 0x4, scoped, tag = 'scoped memory for lstm_model_forward.1']
    #allocation16 [shape = 'u8[4096]{0}', space=vmem, size = 0x1000, scoped, tag = 'input window, operand 18, single buffered']
    #allocation17 [shape = 'u8[4096]{0}', space=vmem, size = 0x1000, scoped, tag = 'input window, operand 19, single buffered']
    #allocation18 [shape = 's32[1]{0}', space=sflag, size = 0x4, scoped, tag = 'scoped memory for lstm_model_forward.1']
    #allocation19 [shape = 'u8[512]{0}', space=vmem, size = 0x400, scoped, tag = 'input window, operand 20, single buffered']
    %30 = vsyncpa [#allocation4], 0
    %31 = vsyncpa [#allocation6], 0
    %32 = vsyncpa [#allocation9], 0
    %33 = vsyncpa [#allocation12], 0
    %34 = vsyncpa [#allocation15], 0
    %35 = vsyncpa [#allocation18], 0
    // Predicated region
    $region2: #{lstm_model_forward.1} parent=1 // pred_check
      _
    $region3: #{lstm_model_forward.1} parent=1 // pred_check_branch
      %37 = sbr.rel (0) target = $region5
    $region4: #{lstm_model_forward.1} parent=1 // pred_region
      _
    $region5: #{lstm_model_forward.1} parent=1 // pred_fallthru
      _
    // Predicated region
    $region6: #{lstm_model_forward.1} parent=1 // pred_check
      _
    $region7: #{lstm_model_forward.1} parent=1 // pred_check_branch
      %39 = sbr.rel (0) target = $region9
    $region8: #{lstm_model_forward.1} parent=1 // pred_region
      _
    $region9: #{lstm_model_forward.1} parent=1 // pred_fallthru
      _
    // Predicated region
    $region10: #{lstm_model_forward.1} parent=1 // pred_check
      _
    $region11: #{lstm_model_forward.1} parent=1 // pred_check_branch
      %41 = sbr.rel (0) target = $region13
    $region12: #{lstm_model_forward.1} parent=1 // pred_region
      _
    $region13: #{lstm_model_forward.1} parent=1 // pred_fallthru
      _
    // Predicated region
    $region14: #{lstm_model_forward.1} parent=1 // pred_check
      _
    $region15: #{lstm_model_forward.1} parent=1 // pred_check_branch
      %43 = sbr.rel (0) target = $region17
    $region16: #{lstm_model_forward.1} parent=1 // pred_region
      %s45 = ssub.s32 128, 128
      %46 = vsyncadd [#allocation4], %s45
      %s48 = sshll.u32 [#allocation3], 4
      %s49 = int_to_ptr.vmem [resolvable:$true] %s48
      %51 = dma.hbm_to_vmem [thread:$0]  %s3, 128, %s49, [#allocation4]
    $region17: #{lstm_model_forward.1} parent=1 // pred_fallthru
      _
    // Predicated region
    $region18: #{lstm_model_forward.1} parent=1 // pred_check
      _
    $region19: #{lstm_model_forward.1} parent=1 // pred_check_branch
      %53 = sbr.rel (0) target = $region21
    $region20: #{lstm_model_forward.1} parent=1 // pred_region
      _
    $region21: #{lstm_model_forward.1} parent=1 // pred_fallthru
      _
    // Predicated region
    $region22: #{lstm_model_forward.1} parent=1 // pred_check
      _
    $region23: #{lstm_model_forward.1} parent=1 // pred_check_branch
      %55 = sbr.rel (0) target = $region25
    $region24: #{lstm_model_forward.1} parent=1 // pred_region
      %s57 = ssub.s32 16, 16
      %58 = vsyncadd [#allocation6], %s57
      %s60 = sshll.u32 [#allocation5], 4
      %s61 = int_to_ptr.vmem [resolvable:$true] %s60
      %63 = dma.hbm_to_vmem [thread:$0]  %s5, 16, %s61, [#allocation6]
    $region25: #{lstm_model_forward.1} parent=1 // pred_fallthru
      _
    // Predicated region
    $region26: #{lstm_model_forward.1} parent=1 // pred_check
      _
    $region27: #{lstm_model_forward.1} parent=1 // pred_check_branch
      %65 = sbr.rel (0) target = $region29
    $region28: #{lstm_model_forward.1} parent=1 // pred_region
      _
    $region29: #{lstm_model_forward.1} parent=1 // pred_fallthru
      _
    // Predicated region
    $region30: #{lstm_model_forward.1} parent=1 // pred_check
      _
    $region31: #{lstm_model_forward.1} parent=1 // pred_check_branch
      %67 = sbr.rel (0) target = $region33
    $region32: #{lstm_model_forward.1} parent=1 // pred_region
      %s69 = ssub.s32 16, 16
      %70 = vsyncadd [#allocation6], %s69
      %s72 = sshll.u32 [#allocation7], 4
      %s73 = int_to_ptr.vmem [resolvable:$true] %s72
      %75 = dma.hbm_to_vmem [thread:$0]  %s7, 16, %s73, [#allocation6]
    $region33: #{lstm_model_forward.1} parent=1 // pred_fallthru
      _
    // Predicated region
    $region34: #{lstm_model_forward.1} parent=1 // pred_check
      _
    $region35: #{lstm_model_forward.1} parent=1 // pred_check_branch
      %77 = sbr.rel (0) target = $region37
    $region36: #{lstm_model_forward.1} parent=1 // pred_region
      _
    $region37: #{lstm_model_forward.1} parent=1 // pred_fallthru
      _
    // Predicated region
    $region38: #{lstm_model_forward.1} parent=1 // pred_check
      _
    $region39: #{lstm_model_forward.1} parent=1 // pred_check_branch
      %79 = sbr.rel (0) target = $region41
    $region40: #{lstm_model_forward.1} parent=1 // pred_region
      %s81 = ssub.s32 16, 16
      %82 = vsyncadd [#allocation9], %s81
      %s84 = sshll.u32 [#allocation8], 4
      %s85 = int_to_ptr.vmem [resolvable:$true] %s84
      %87 = dma.hbm_to_vmem [thread:$0]  %s9, 16, %s85, [#allocation9]
    $region41: #{lstm_model_forward.1} parent=1 // pred_fallthru
      _
    // Predicated region
    $region42: #{lstm_model_forward.1} parent=1 // pred_check
      _
    $region43: #{lstm_model_forward.1} parent=1 // pred_check_branch
      %89 = sbr.rel (0) target = $region45
    $region44: #{lstm_model_forward.1} parent=1 // pred_region
      %s91 = ssub.s32 128, 128
      %92 = vsyncadd [#allocation9], %s91
      %s94 = sshll.u32 [#allocation10], 4
      %s95 = int_to_ptr.vmem [resolvable:$true] %s94
      %97 = dma.hbm_to_vmem [thread:$0]  %s10, 128, %s95, [#allocation9]
    $region45: #{lstm_model_forward.1} parent=1 // pred_fallthru
      _
    // Predicated region
    $region46: #{lstm_model_forward.1} parent=1 // pred_check
      _
    $region47: #{lstm_model_forward.1} parent=1 // pred_check_branch
      %99 = sbr.rel (0) target = $region49
    $region48: #{lstm_model_forward.1} parent=1 // pred_region
      _
    $region49: #{lstm_model_forward.1} parent=1 // pred_fallthru
      _
    // Predicated region
    $region50: #{lstm_model_forward.1} parent=1 // pred_check
      _
    $region51: #{lstm_model_forward.1} parent=1 // pred_check_branch
      %101 = sbr.rel (0) target = $region53
    $region52: #{lstm_model_forward.1} parent=1 // pred_region
      %s103 = ssub.s32 16, 16
      %104 = vsyncadd [#allocation12], %s103
      %s106 = sshll.u32 [#allocation11], 4
      %s107 = int_to_ptr.vmem [resolvable:$true] %s106
      %109 = dma.hbm_to_vmem [thread:$0]  %s12, 16, %s107, [#allocation12]
    $region53: #{lstm_model_forward.1} parent=1 // pred_fallthru
      _
    // Predicated region
    $region54: #{lstm_model_forward.1} parent=1 // pred_check
      _
    $region55: #{lstm_model_forward.1} parent=1 // pred_check_branch
      %111 = sbr.rel (0) target = $region57
    $region56: #{lstm_model_forward.1} parent=1 // pred_region
      _
    $region57: #{lstm_model_forward.1} parent=1 // pred_fallthru
      _
    // Predicated region
    $region58: #{lstm_model_forward.1} parent=1 // pred_check
      _
    $region59: #{lstm_model_forward.1} parent=1 // pred_check_branch
      %113 = sbr.rel (0) target = $region61
    $region60: #{lstm_model_forward.1} parent=1 // pred_region
      %s115 = ssub.s32 16, 16
      %116 = vsyncadd [#allocation12], %s115
      %s118 = sshll.u32 [#allocation13], 4
      %s119 = int_to_ptr.vmem [resolvable:$true] %s118
      %121 = dma.hbm_to_vmem [thread:$0]  %s14, 16, %s119, [#allocation12]
    $region61: #{lstm_model_forward.1} parent=1 // pred_fallthru
      _
    // Predicated region
    $region62: #{lstm_model_forward.1} parent=1 // pred_check
      _
    $region63: #{lstm_model_forward.1} parent=1 // pred_check_branch
      %123 = sbr.rel (0) target = $region65
    $region64: #{lstm_model_forward.1} parent=1 // pred_region
      _
    $region65: #{lstm_model_forward.1} parent=1 // pred_fallthru
      _
    // Predicated region
    $region66: #{lstm_model_forward.1} parent=1 // pred_check
      _
    $region67: #{lstm_model_forward.1} parent=1 // pred_check_branch
      %125 = sbr.rel (0) target = $region69
    $region68: #{lstm_model_forward.1} parent=1 // pred_region
      _
    $region69: #{lstm_model_forward.1} parent=1 // pred_fallthru
      _
    // Predicated region
    $region70: #{lstm_model_forward.1} parent=1 // pred_check
      _
    $region71: #{lstm_model_forward.1} parent=1 // pred_check_branch
      %127 = sbr.rel (0) target = $region73
    $region72: #{lstm_model_forward.1} parent=1 // pred_region
      %s129 = ssub.s32 128, 128
      %130 = vsyncadd [#allocation15], %s129
      %s132 = sshll.u32 [#allocation14], 4
      %s133 = int_to_ptr.vmem [resolvable:$true] %s132
      %135 = dma.hbm_to_vmem [thread:$0]  %s17, 128, %s133, [#allocation15]
    $region73: #{lstm_model_forward.1} parent=1 // pred_fallthru
      _
    // Predicated region
    $region74: #{lstm_model_forward.1} parent=1 // pred_check
      _
    $region75: #{lstm_model_forward.1} parent=1 // pred_check_branch
      %137 = sbr.rel (0) target = $region77
    $region76: #{lstm_model_forward.1} parent=1 // pred_region
      %s139 = ssub.s32 128, 128
      %140 = vsyncadd [#allocation15], %s139
      %s142 = sshll.u32 [#allocation16], 4
      %s143 = int_to_ptr.vmem [resolvable:$true] %s142
      %145 = dma.hbm_to_vmem [thread:$0]  %s18, 128, %s143, [#allocation15]
    $region77: #{lstm_model_forward.1} parent=1 // pred_fallthru
      _
    // Predicated region
    $region78: #{lstm_model_forward.1} parent=1 // pred_check
      _
    $region79: #{lstm_model_forward.1} parent=1 // pred_check_branch
      %147 = sbr.rel (0) target = $region81
    $region80: #{lstm_model_forward.1} parent=1 // pred_region
      %s149 = ssub.s32 128, 128
      %150 = vsyncadd [#allocation18], %s149
      %s152 = sshll.u32 [#allocation17], 4
      %s153 = int_to_ptr.vmem [resolvable:$true] %s152
      %155 = dma.hbm_to_vmem [thread:$0]  %s19, 128, %s153, [#allocation18]
    $region81: #{lstm_model_forward.1} parent=1 // pred_fallthru
      _
    // Predicated region
    $region82: #{lstm_model_forward.1} parent=1 // pred_check
      _
    $region83: #{lstm_model_forward.1} parent=1 // pred_check_branch
      %157 = sbr.rel (0) target = $region85
    $region84: #{lstm_model_forward.1} parent=1 // pred_region
      %s159 = ssub.s32 16, 16
      %160 = vsyncadd [#allocation18], %s159
      %s162 = sshll.u32 [#allocation19], 4
      %s163 = int_to_ptr.vmem [resolvable:$true] %s162
      %165 = dma.hbm_to_vmem [thread:$0]  %s20, 16, %s163, [#allocation18]
    $region85: #{lstm_model_forward.1} parent=1 // pred_fallthru
      _
    // Predicated region
    $region86: #{lstm_model_forward.1} parent=1 // pred_check
      _
    $region87: #{lstm_model_forward.1} parent=1 // pred_check_branch
      %167 = sbr.rel (0) target = $region89
    $region88: #{lstm_model_forward.1} parent=1 // pred_region
      _
    $region89: #{lstm_model_forward.1} parent=1 // pred_fallthru
      _
    // Predicated region
    $region90: #{lstm_model_forward.1} parent=1 // pred_check
      _
    $region91: #{lstm_model_forward.1} parent=1 // pred_check_branch
      %169 = sbr.rel (0) target = $region93
    $region92: #{lstm_model_forward.1} parent=1 // pred_region
      _
    $region93: #{lstm_model_forward.1} parent=1 // pred_fallthru
      _
    // Predicated region
    $region94: #{lstm_model_forward.1} parent=1 // pred_check
      _
    $region95: #{lstm_model_forward.1} parent=1 // pred_check_branch
      %171 = sbr.rel (0) target = $region97
    $region96: #{lstm_model_forward.1} parent=1 // pred_region
      %172 = dma.done [#allocation4], 128
    $region97: #{lstm_model_forward.1} parent=1 // pred_fallthru
      _
    // Predicated region
    $region98: #{lstm_model_forward.1} parent=1 // pred_check
      _
    $region99: #{lstm_model_forward.1} parent=1 // pred_check_branch
      %174 = sbr.rel (0) target = $region101
    $region100: #{lstm_model_forward.1} parent=1 // pred_region
      %175 = dma.done [#allocation6], 16
    $region101: #{lstm_model_forward.1} parent=1 // pred_fallthru
      _
    // Predicated region
    $region102: #{lstm_model_forward.1} parent=1 // pred_check
      _
    $region103: #{lstm_model_forward.1} parent=1 // pred_check_branch
      %177 = sbr.rel (0) target = $region105
    $region104: #{lstm_model_forward.1} parent=1 // pred_region
      %178 = dma.done [#allocation6], 16
    $region105: #{lstm_model_forward.1} parent=1 // pred_fallthru
      _
    // Predicated region
    $region106: #{lstm_model_forward.1} parent=1 // pred_check
      _
    $region107: #{lstm_model_forward.1} parent=1 // pred_check_branch
      %180 = sbr.rel (0) target = $region109
    $region108: #{lstm_model_forward.1} parent=1 // pred_region
      %181 = dma.done [#allocation9], 16
    $region109: #{lstm_model_forward.1} parent=1 // pred_fallthru
      _
    // Predicated region
    $region110: #{lstm_model_forward.1} parent=1 // pred_check
      _
    $region111: #{lstm_model_forward.1} parent=1 // pred_check_branch
      %183 = sbr.rel (0) target = $region113
    $region112: #{lstm_model_forward.1} parent=1 // pred_region
      %184 = dma.done [#allocation9], 128
    $region113: #{lstm_model_forward.1} parent=1 // pred_fallthru
      _
    // Predicated region
    $region114: #{lstm_model_forward.1} parent=1 // pred_check
      _
    $region115: #{lstm_model_forward.1} parent=1 // pred_check_branch
      %186 = sbr.rel (0) target = $region117
    $region116: #{lstm_model_forward.1} parent=1 // pred_region
      %187 = dma.done [#allocation12], 16
    $region117: #{lstm_model_forward.1} parent=1 // pred_fallthru
      _
    // Predicated region
    $region118: #{lstm_model_forward.1} parent=1 // pred_check
      _
    $region119: #{lstm_model_forward.1} parent=1 // pred_check_branch
      %189 = sbr.rel (0) target = $region121
    $region120: #{lstm_model_forward.1} parent=1 // pred_region
      %190 = dma.done [#allocation12], 16
    $region121: #{lstm_model_forward.1} parent=1 // pred_fallthru
      _
    // Predicated region
    $region122: #{lstm_model_forward.1} parent=1 // pred_check
      _
    $region123: #{lstm_model_forward.1} parent=1 // pred_check_branch
      %192 = sbr.rel (0) target = $region125
    $region124: #{lstm_model_forward.1} parent=1 // pred_region
      %193 = dma.done [#allocation15], 128
    $region125: #{lstm_model_forward.1} parent=1 // pred_fallthru
      _
    // Predicated region
    $region126: #{lstm_model_forward.1} parent=1 // pred_check
      _
    $region127: #{lstm_model_forward.1} parent=1 // pred_check_branch
      %195 = sbr.rel (0) target = $region129
    $region128: #{lstm_model_forward.1} parent=1 // pred_region
      %196 = dma.done [#allocation15], 128
    $region129: #{lstm_model_forward.1} parent=1 // pred_fallthru
      _
    // Predicated region
    $region130: #{lstm_model_forward.1} parent=1 // pred_check
      _
    $region131: #{lstm_model_forward.1} parent=1 // pred_check_branch
      %198 = sbr.rel (0) target = $region133
    $region132: #{lstm_model_forward.1} parent=1 // pred_region
      %199 = dma.done [#allocation18], 128
    $region133: #{lstm_model_forward.1} parent=1 // pred_fallthru
      _
    // Predicated region
    $region134: #{lstm_model_forward.1} parent=1 // pred_check
      _
    $region135: #{lstm_model_forward.1} parent=1 // pred_check_branch
      %201 = sbr.rel (0) target = $region137
    $region136: #{lstm_model_forward.1} parent=1 // pred_region
      %202 = dma.done [#allocation18], 16
    $region137: #{lstm_model_forward.1} parent=1 // pred_fallthru
      _
    %v203 = vld [vmem:[%s0] sm:$0xff]
    %v204 = vld [vmem:[%s0 + $0x8] sm:$0xff]
    %v205 = vld [vmem:[#allocation3] sm:$0xff]
    %v206 = vld [vmem:[#allocation5] sm:$0x1]
    %v208 = vlaneseq
    %v209 = vshrl.u32 %v208, 7
    %v210 = vsub.s32 0, %v209
    %v211 = vrot.slane %v206, %v210
    %vm213 = vcmask 64512
    %v215 = vsel %vm213, %v203, 0
    %v218 = vsel %vm213, %v204, 0
    %220 = vmatprep.subr.mxu0 0.0
    %221 = vmatpush1.msra.mxu0 %v205
    %222 = vmatprep.subr.mxu0 0.0
    %223 = vmatpush1.msra.mxu0 0.0
    %224 = vmatprep.subr.mxu0 0.0
    %225 = vmatpush1.msra.mxu0 0.0
    %226 = vmatprep.subr.mxu0 0.0
    %227 = vmatpush1.msra.mxu0 0.0
    %228 = vmatprep.subr.mxu0 0.0
    %229 = vmatpush1.msra.mxu0 0.0
    %230 = vmatprep.subr.mxu0 0.0
    %231 = vmatpush1.msra.mxu0 0.0
    %232 = vmatprep.subr.mxu0 0.0
    %233 = vmatpush1.msra.mxu0 0.0
    %234 = vmatprep.subr.mxu0 0.0
    %235 = vmatpush1.msra.mxu0 0.0
    %236 = vmatprep.subr.mxu0 0.0
    %237 = vmatpush1.msra.mxu0 0.0
    %238 = vmatprep.subr.mxu0 0.0
    %239 = vmatpush1.msra.mxu0 0.0
    %240 = vmatprep.subr.mxu0 0.0
    %241 = vmatpush1.msra.mxu0 0.0
    %242 = vmatprep.subr.mxu0 0.0
    %243 = vmatpush1.msra.mxu0 0.0
    %244 = vmatprep.subr.mxu0 0.0
    %245 = vmatpush1.msra.mxu0 0.0
    %246 = vmatprep.subr.mxu0 0.0
    %247 = vmatpush1.msra.mxu0 0.0
    %248 = vmatprep.subr.mxu0 0.0
    %249 = vmatpush1.msra.mxu0 0.0
    %250 = vmatprep.subr.mxu0 0.0
    %251 = vmatpush1.msra.mxu0 0.0
    %252 = vmatprep.subr.mxu0 0.0
    %253 = vmatpush1.msra.mxu0 0.0
    %254 = vmatprep.subr.mxu0 0.0
    %255 = vmatpush1.msra.mxu0 0.0
    %256 = vmatprep.subr.mxu0 0.0
    %257 = vmatpush1.msra.mxu0 0.0
    %258 = vmatprep.subr.mxu0 0.0
    %259 = vmatpush1.msra.mxu0 0.0
    %260 = vmatprep.subr.mxu0 0.0
    %261 = vmatpush1.msra.mxu0 0.0
    %262 = vmatprep.subr.mxu0 0.0
    %263 = vmatpush1.msra.mxu0 0.0
    %264 = vmatprep.subr.mxu0 0.0
    %265 = vmatpush1.msra.mxu0 0.0
    %266 = vmatprep.subr.mxu0 0.0
    %267 = vmatpush1.msra.mxu0 0.0
    %268 = vmatprep.subr.mxu0 0.0
    %269 = vmatpush1.msra.mxu0 0.0
    %270 = vmatprep.subr.mxu0 0.0
    %271 = vmatpush1.msra.mxu0 0.0
    %272 = vmatprep.subr.mxu0 0.0
    %273 = vmatpush1.msra.mxu0 0.0
    %274 = vmatprep.subr.mxu0 0.0
    %275 = vmatpush1.msra.mxu0 0.0
    %276 = vmatprep.subr.mxu0 0.0
    %277 = vmatpush1.msra.mxu0 0.0
    %278 = vmatprep.subr.mxu0 0.0
    %279 = vmatpush1.msra.mxu0 0.0
    %280 = vmatprep.subr.mxu0 0.0
    %281 = vmatpush1.msra.mxu0 0.0
    %282 = vmatprep.subr.mxu0 0.0
    %283 = vmatpush1.msra.mxu0 0.0
    %284 = vmatprep.mubr.f32.mxu0 0.0
    %285 = vmatmul.mubr.f32.gmra.mrb[0].mxu0 %v215
    %v286 = vpop.f32.mrb[0].mxu0
    %v287 = vadd.f32 %v211, %v286
    %v288 = vpop.f32.mrb[0].mxu0
    %289 = vmatprep.mubr.f32.mxu0 0.0
    %290 = vmatmul.mubr.f32.gmra.mrb[0].mxu0 %v218
    %v291 = vpop.f32.mrb[0].mxu0
    %v292 = vadd.f32 %v211, %v291
    %v293 = vpop.f32.mrb[0].mxu0
    %294 = vdwg.mxu0
    %v295 = vld [vmem:[%s1] sm:$0xff]
    %v296 = vld [vmem:[%s1 + $0x8] sm:$0xff]
    %v297 = vld [vmem:[#allocation10] sm:$0xff]
    %v298 = vld [vmem:[#allocation11] sm:$0x1]
    %v300 = vlaneseq
    %v301 = vshrl.u32 %v300, 7
    %v302 = vsub.s32 0, %v301
    %v303 = vrot.slane %v298, %v302
    %v306 = vsel %vm213, %v295, 0
    %v309 = vsel %vm213, %v296, 0
    %311 = vmatprep.subr.mxu0 0.0
    %312 = vmatpush1.msra.mxu0 %v297
    %313 = vmatprep.subr.mxu0 0.0
    %314 = vmatpush1.msra.mxu0 0.0
    %315 = vmatprep.subr.mxu0 0.0
    %316 = vmatpush1.msra.mxu0 0.0
    %317 = vmatprep.subr.mxu0 0.0
    %318 = vmatpush1.msra.mxu0 0.0
    %319 = vmatprep.subr.mxu0 0.0
    %320 = vmatpush1.msra.mxu0 0.0
    %321 = vmatprep.subr.mxu0 0.0
    %322 = vmatpush1.msra.mxu0 0.0
    %323 = vmatprep.subr.mxu0 0.0
    %324 = vmatpush1.msra.mxu0 0.0
    %325 = vmatprep.subr.mxu0 0.0
    %326 = vmatpush1.msra.mxu0 0.0
    %327 = vmatprep.subr.mxu0 0.0
    %328 = vmatpush1.msra.mxu0 0.0
    %329 = vmatprep.subr.mxu0 0.0
    %330 = vmatpush1.msra.mxu0 0.0
    %331 = vmatprep.subr.mxu0 0.0
    %332 = vmatpush1.msra.mxu0 0.0
    %333 = vmatprep.subr.mxu0 0.0
    %334 = vmatpush1.msra.mxu0 0.0
    %335 = vmatprep.subr.mxu0 0.0
    %336 = vmatpush1.msra.mxu0 0.0
    %337 = vmatprep.subr.mxu0 0.0
    %338 = vmatpush1.msra.mxu0 0.0
    %339 = vmatprep.subr.mxu0 0.0
    %340 = vmatpush1.msra.mxu0 0.0
    %341 = vmatprep.subr.mxu0 0.0
    %342 = vmatpush1.msra.mxu0 0.0
    %343 = vmatprep.subr.mxu0 0.0
    %344 = vmatpush1.msra.mxu0 0.0
    %345 = vmatprep.subr.mxu0 0.0
    %346 = vmatpush1.msra.mxu0 0.0
    %347 = vmatprep.subr.mxu0 0.0
    %348 = vmatpush1.msra.mxu0 0.0
    %349 = vmatprep.subr.mxu0 0.0
    %350 = vmatpush1.msra.mxu0 0.0
    %351 = vmatprep.subr.mxu0 0.0
    %352 = vmatpush1.msra.mxu0 0.0
    %353 = vmatprep.subr.mxu0 0.0
    %354 = vmatpush1.msra.mxu0 0.0
    %355 = vmatprep.subr.mxu0 0.0
    %356 = vmatpush1.msra.mxu0 0.0
    %357 = vmatprep.subr.mxu0 0.0
    %358 = vmatpush1.msra.mxu0 0.0
    %359 = vmatprep.subr.mxu0 0.0
    %360 = vmatpush1.msra.mxu0 0.0
    %361 = vmatprep.subr.mxu0 0.0
    %362 = vmatpush1.msra.mxu0 0.0
    %363 = vmatprep.subr.mxu0 0.0
    %364 = vmatpush1.msra.mxu0 0.0
    %365 = vmatprep.subr.mxu0 0.0
    %366 = vmatpush1.msra.mxu0 0.0
    %367 = vmatprep.subr.mxu0 0.0
    %368 = vmatpush1.msra.mxu0 0.0
    %369 = vmatprep.subr.mxu0 0.0
    %370 = vmatpush1.msra.mxu0 0.0
    %371 = vmatprep.subr.mxu0 0.0
    %372 = vmatpush1.msra.mxu0 0.0
    %373 = vmatprep.subr.mxu0 0.0
    %374 = vmatpush1.msra.mxu0 0.0
    %375 = vmatprep.mubr.f32.mxu0 0.0
    %376 = vmatmul.mubr.f32.gmra.mrb[0].mxu0 %v306
    %v377 = vpop.f32.mrb[0].mxu0
    %v378 = vadd.f32 %v303, %v377
    %v379 = vpop.f32.mrb[0].mxu0
    %380 = vmatprep.mubr.f32.mxu0 0.0
    %381 = vmatmul.mubr.f32.gmra.mrb[0].mxu0 %v309
    %v382 = vpop.f32.mrb[0].mxu0
    %v383 = vadd.f32 %v303, %v382
    %v384 = vpop.f32.mrb[0].mxu0
    %385 = vdwg.mxu0
    %v386 = vld [vmem:[%s4] sm:$0xff]
    %v387 = vld [vmem:[%s4 + $0x8] sm:$0xff]
    %v388 = vld [vmem:[%s4 + $0x10] sm:$0xff]
    %v389 = vld [vmem:[%s4 + $0x18] sm:$0xff]
    %v390 = vld [vmem:[%s6] sm:$0xff]
    %v391 = vld [vmem:[%s6 + $0x8] sm:$0xff]
    %v392 = vld [vmem:[%s6 + $0x10] sm:$0xff]
    %v393 = vld [vmem:[%s6 + $0x18] sm:$0xff]
    %v394 = vld [vmem:[%s6 + $0x20] sm:$0xff]
    %v395 = vld [vmem:[%s6 + $0x28] sm:$0xff]
    %v396 = vld [vmem:[%s6 + $0x30] sm:$0xff]
    %v397 = vld [vmem:[%s6 + $0x38] sm:$0xff]
    %v398 = vld [vmem:[#allocation7] sm:$0x1]
    %v399 = vld [vmem:[%s11] sm:$0xff]
    %v400 = vld [vmem:[%s11 + $0x8] sm:$0xff]
    %v401 = vld [vmem:[%s11 + $0x10] sm:$0xff]
    %v402 = vld [vmem:[%s11 + $0x18] sm:$0xff]
    %v403 = vld [vmem:[%s13] sm:$0xff]
    %v404 = vld [vmem:[%s13 + $0x8] sm:$0xff]
    %v405 = vld [vmem:[%s13 + $0x10] sm:$0xff]
    %v406 = vld [vmem:[%s13 + $0x18] sm:$0xff]
    %v407 = vld [vmem:[%s13 + $0x20] sm:$0xff]
    %v408 = vld [vmem:[%s13 + $0x28] sm:$0xff]
    %v409 = vld [vmem:[%s13 + $0x30] sm:$0xff]
    %v410 = vld [vmem:[%s13 + $0x38] sm:$0xff]
    %v411 = vld [vmem:[#allocation13] sm:$0x1]
    %vm412 = vcmask 261120
    %v414 = vsel %vm412, 0.0, 0
    %416 = vmatprep.subr.mxu0 0.0
    %417 = vmatpush1.msra.mxu0 %v386
    %418 = vmatprep.subr.mxu0 0.0
    %419 = vmatpush1.msra.mxu0 %v387
    %420 = vmatprep.subr.mxu0 0.0
    %421 = vmatpush1.msra.mxu0 %v388
    %422 = vmatprep.subr.mxu0 0.0
    %423 = vmatpush1.msra.mxu0 %v389
    %424 = vmatprep.subr.mxu0 0.0
    %425 = vmatpush1.msra.mxu0 0.0
    %426 = vmatprep.subr.mxu0 0.0
    %427 = vmatpush1.msra.mxu0 0.0
    %428 = vmatprep.subr.mxu0 0.0
    %429 = vmatpush1.msra.mxu0 0.0
    %430 = vmatprep.subr.mxu0 0.0
    %431 = vmatpush1.msra.mxu0 0.0
    %432 = vmatprep.subr.mxu0 0.0
    %433 = vmatpush1.msra.mxu0 0.0
    %434 = vmatprep.subr.mxu0 0.0
    %435 = vmatpush1.msra.mxu0 0.0
    %436 = vmatprep.subr.mxu0 0.0
    %437 = vmatpush1.msra.mxu0 0.0
    %438 = vmatprep.subr.mxu0 0.0
    %439 = vmatpush1.msra.mxu0 0.0
    %440 = vmatprep.subr.mxu0 0.0
    %441 = vmatpush1.msra.mxu0 0.0
    %442 = vmatprep.subr.mxu0 0.0
    %443 = vmatpush1.msra.mxu0 0.0
    %444 = vmatprep.subr.mxu0 0.0
    %445 = vmatpush1.msra.mxu0 0.0
    %446 = vmatprep.subr.mxu0 0.0
    %447 = vmatpush1.msra.mxu0 0.0
    %448 = vmatprep.subr.mxu0 0.0
    %449 = vmatpush1.msra.mxu0 0.0
    %450 = vmatprep.subr.mxu0 0.0
    %451 = vmatpush1.msra.mxu0 0.0
    %452 = vmatprep.subr.mxu0 0.0
    %453 = vmatpush1.msra.mxu0 0.0
    %454 = vmatprep.subr.mxu0 0.0
    %455 = vmatpush1.msra.mxu0 0.0
    %456 = vmatprep.subr.mxu0 0.0
    %457 = vmatpush1.msra.mxu0 0.0
    %458 = vmatprep.subr.mxu0 0.0
    %459 = vmatpush1.msra.mxu0 0.0
    %460 = vmatprep.subr.mxu0 0.0
    %461 = vmatpush1.msra.mxu0 0.0
    %462 = vmatprep.subr.mxu0 0.0
    %463 = vmatpush1.msra.mxu0 0.0
    %464 = vmatprep.subr.mxu0 0.0
    %465 = vmatpush1.msra.mxu0 0.0
    %466 = vmatprep.subr.mxu0 0.0
    %467 = vmatpush1.msra.mxu0 0.0
    %468 = vmatprep.subr.mxu0 0.0
    %469 = vmatpush1.msra.mxu0 0.0
    %470 = vmatprep.subr.mxu0 0.0
    %471 = vmatpush1.msra.mxu0 0.0
    %472 = vmatprep.subr.mxu0 0.0
    %473 = vmatpush1.msra.mxu0 0.0
    %474 = vmatprep.subr.mxu0 0.0
    %475 = vmatpush1.msra.mxu0 0.0
    %476 = vmatprep.subr.mxu0 0.0
    %477 = vmatpush1.msra.mxu0 0.0
    %478 = vmatprep.subr.mxu0 0.0
    %479 = vmatpush1.msra.mxu0 0.0
    %480 = vmatprep.mubr.f32.mxu0 0.0
    %481 = vmatmul.mubr.f32.gmra.mrb[0].mxu0 %v414
    %v482 = vpop.f32.mrb[0].mxu0
    %v483 = vadd.f32 0.0, %v482
    %v484 = vpop.f32.mrb[0].mxu0
    %485 = vdwg.mxu0
    %v486 = vadd.f32 %v287, %v483
    %v487 = vxor.u32 %v486, 2147483648
    %v488 = vmul.f32 %v487, 1.442695
    %v489 = vpow.pop %v488
    %v490 = vadd.f32 %v489, 1.0
    %v491 = vrcp.pop %v490
    %v492 = vmul.f32 1.0, %v491
    %v493 = vtanh.pop %v486
    %v494 = vmul.f32 %v492, 0.0
    %496 = vrot.lane.b32.xlu0 %v493, 64
    %v497 = vpop.permute.xlu0 %496
    %v499 = vmul.f32 %v492, %v497
    %501 = vrot.lane.b32.xlu0 %v499, 32
    %v502 = vpop.permute.xlu0 %501
    %v504 = vadd.f32 %v494, %v502
    %v505 = vtanh.pop %v504
    %507 = vrot.lane.b32.xlu0 %v505, 64
    %v508 = vpop.permute.xlu0 %507
    %v510 = vmul.f32 %v492, %v508
    %512 = vrot.lane.b32.xlu0 %v510, 32
    %v513 = vpop.permute.xlu0 %512
    %v515 = vsel %vm412, %v513, 0.0
    %v517 = vlaneseq
    %v518 = vshrl.u32 %v517, 7
    %v519 = vsub.s32 0, %v518
    %v520 = vrot.slane %v398, %v519
    %vm522 = vcmask 523264
    %v524 = vsel %vm522, %v515, 0
    %526 = vmatprep.subr.mxu0 0.0
    %527 = vmatpush1.msra.mxu0 %v390
    %528 = vmatprep.subr.mxu0 0.0
    %529 = vmatpush1.msra.mxu0 %v391
    %530 = vmatprep.subr.mxu0 0.0
    %531 = vmatpush1.msra.mxu0 %v392
    %532 = vmatprep.subr.mxu0 0.0
    %533 = vmatpush1.msra.mxu0 %v393
    %534 = vmatprep.subr.mxu0 0.0
    %535 = vmatpush1.msra.mxu0 %v394
    %536 = vmatprep.subr.mxu0 0.0
    %537 = vmatpush1.msra.mxu0 %v395
    %538 = vmatprep.subr.mxu0 0.0
    %539 = vmatpush1.msra.mxu0 %v396
    %540 = vmatprep.subr.mxu0 0.0
    %541 = vmatpush1.msra.mxu0 %v397
    %542 = vmatprep.subr.mxu0 0.0
    %543 = vmatpush1.msra.mxu0 0.0
    %544 = vmatprep.subr.mxu0 0.0
    %545 = vmatpush1.msra.mxu0 0.0
    %546 = vmatprep.subr.mxu0 0.0
    %547 = vmatpush1.msra.mxu0 0.0
    %548 = vmatprep.subr.mxu0 0.0
    %549 = vmatpush1.msra.mxu0 0.0
    %550 = vmatprep.subr.mxu0 0.0
    %551 = vmatpush1.msra.mxu0 0.0
    %552 = vmatprep.subr.mxu0 0.0
    %553 = vmatpush1.msra.mxu0 0.0
    %554 = vmatprep.subr.mxu0 0.0
    %555 = vmatpush1.msra.mxu0 0.0
    %556 = vmatprep.subr.mxu0 0.0
    %557 = vmatpush1.msra.mxu0 0.0
    %558 = vmatprep.subr.mxu0 0.0
    %559 = vmatpush1.msra.mxu0 0.0
    %560 = vmatprep.subr.mxu0 0.0
    %561 = vmatpush1.msra.mxu0 0.0
    %562 = vmatprep.subr.mxu0 0.0
    %563 = vmatpush1.msra.mxu0 0.0
    %564 = vmatprep.subr.mxu0 0.0
    %565 = vmatpush1.msra.mxu0 0.0
    %566 = vmatprep.subr.mxu0 0.0
    %567 = vmatpush1.msra.mxu0 0.0
    %568 = vmatprep.subr.mxu0 0.0
    %569 = vmatpush1.msra.mxu0 0.0
    %570 = vmatprep.subr.mxu0 0.0
    %571 = vmatpush1.msra.mxu0 0.0
    %572 = vmatprep.subr.mxu0 0.0
    %573 = vmatpush1.msra.mxu0 0.0
    %574 = vmatprep.subr.mxu0 0.0
    %575 = vmatpush1.msra.mxu0 0.0
    %576 = vmatprep.subr.mxu0 0.0
    %577 = vmatpush1.msra.mxu0 0.0
    %578 = vmatprep.subr.mxu0 0.0
    %579 = vmatpush1.msra.mxu0 0.0
    %580 = vmatprep.subr.mxu0 0.0
    %581 = vmatpush1.msra.mxu0 0.0
    %582 = vmatprep.subr.mxu0 0.0
    %583 = vmatpush1.msra.mxu0 0.0
    %584 = vmatprep.subr.mxu0 0.0
    %585 = vmatpush1.msra.mxu0 0.0
    %586 = vmatprep.subr.mxu0 0.0
    %587 = vmatpush1.msra.mxu0 0.0
    %588 = vmatprep.subr.mxu0 0.0
    %589 = vmatpush1.msra.mxu0 0.0
    %590 = vmatprep.mubr.f32.mxu0 0.0
    %591 = vmatmul.mubr.f32.gmra.mrb[0].mxu0 %v524
    %v592 = vpop.f32.mrb[0].mxu0
    %v593 = vadd.f32 %v520, %v592
    %v594 = vpop.f32.mrb[0].mxu0
    %595 = vdwg.mxu0
    %v596 = vxor.u32 %v593, 2147483648
    %v597 = vmul.f32 %v596, 1.442695
    %v598 = vpow.pop %v597
    %v599 = vadd.f32 %v598, 1.0
    %v600 = vrcp.pop %v599
    %v601 = vmul.f32 1.0, %v600
    %v602 = vtanh.pop %v593
    %v603 = vmul.f32 %v601, 0.0
    %605 = vrot.lane.b32.xlu0 %v602, 64
    %v606 = vpop.permute.xlu0 %605
    %v608 = vmul.f32 %v601, %v606
    %610 = vrot.lane.b32.xlu0 %v608, 32
    %v611 = vpop.permute.xlu0 %610
    %v613 = vadd.f32 %v603, %v611
    %v614 = vtanh.pop %v613
    %616 = vrot.lane.b32.xlu0 %v614, 64
    %v617 = vpop.permute.xlu0 %616
    %v619 = vmul.f32 %v601, %v617
    %620 = vmatprep.subr.mxu0 0.0
    %621 = vmatpush1.msra.mxu0 %v399
    %622 = vmatprep.subr.mxu0 0.0
    %623 = vmatpush1.msra.mxu0 %v400
    %624 = vmatprep.subr.mxu0 0.0
    %625 = vmatpush1.msra.mxu0 %v401
    %626 = vmatprep.subr.mxu0 0.0
    %627 = vmatpush1.msra.mxu0 %v402
    %628 = vmatprep.subr.mxu0 0.0
    %629 = vmatpush1.msra.mxu0 0.0
    %630 = vmatprep.subr.mxu0 0.0
    %631 = vmatpush1.msra.mxu0 0.0
    %632 = vmatprep.subr.mxu0 0.0
    %633 = vmatpush1.msra.mxu0 0.0
    %634 = vmatprep.subr.mxu0 0.0
    %635 = vmatpush1.msra.mxu0 0.0
    %636 = vmatprep.subr.mxu0 0.0
    %637 = vmatpush1.msra.mxu0 0.0
    %638 = vmatprep.subr.mxu0 0.0
    %639 = vmatpush1.msra.mxu0 0.0
    %640 = vmatprep.subr.mxu0 0.0
    %641 = vmatpush1.msra.mxu0 0.0
    %642 = vmatprep.subr.mxu0 0.0
    %643 = vmatpush1.msra.mxu0 0.0
    %644 = vmatprep.subr.mxu0 0.0
    %645 = vmatpush1.msra.mxu0 0.0
    %646 = vmatprep.subr.mxu0 0.0
    %647 = vmatpush1.msra.mxu0 0.0
    %648 = vmatprep.subr.mxu0 0.0
    %649 = vmatpush1.msra.mxu0 0.0
    %650 = vmatprep.subr.mxu0 0.0
    %651 = vmatpush1.msra.mxu0 0.0
    %652 = vmatprep.subr.mxu0 0.0
    %653 = vmatpush1.msra.mxu0 0.0
    %654 = vmatprep.subr.mxu0 0.0
    %655 = vmatpush1.msra.mxu0 0.0
    %656 = vmatprep.subr.mxu0 0.0
    %657 = vmatpush1.msra.mxu0 0.0
    %658 = vmatprep.subr.mxu0 0.0
    %659 = vmatpush1.msra.mxu0 0.0
    %660 = vmatprep.subr.mxu0 0.0
    %661 = vmatpush1.msra.mxu0 0.0
    %662 = vmatprep.subr.mxu0 0.0
    %663 = vmatpush1.msra.mxu0 0.0
    %664 = vmatprep.subr.mxu0 0.0
    %665 = vmatpush1.msra.mxu0 0.0
    %666 = vmatprep.subr.mxu0 0.0
    %667 = vmatpush1.msra.mxu0 0.0
    %668 = vmatprep.subr.mxu0 0.0
    %669 = vmatpush1.msra.mxu0 0.0
    %670 = vmatprep.subr.mxu0 0.0
    %671 = vmatpush1.msra.mxu0 0.0
    %672 = vmatprep.subr.mxu0 0.0
    %673 = vmatpush1.msra.mxu0 0.0
    %674 = vmatprep.subr.mxu0 0.0
    %675 = vmatpush1.msra.mxu0 0.0
    %676 = vmatprep.subr.mxu0 0.0
    %677 = vmatpush1.msra.mxu0 0.0
    %678 = vmatprep.subr.mxu0 0.0
    %679 = vmatpush1.msra.mxu0 0.0
    %680 = vmatprep.subr.mxu0 0.0
    %681 = vmatpush1.msra.mxu0 0.0
    %682 = vmatprep.subr.mxu0 0.0
    %683 = vmatpush1.msra.mxu0 0.0
    %684 = vmatprep.mubr.f32.mxu0 0.0
    %685 = vmatmul.mubr.f32.gmra.mrb[0].mxu0 %v414
    %v686 = vpop.f32.mrb[0].mxu0
    %v687 = vadd.f32 0.0, %v686
    %v688 = vpop.f32.mrb[0].mxu0
    %689 = vdwg.mxu0
    %v690 = vadd.f32 %v378, %v687
    %v691 = vxor.u32 %v690, 2147483648
    %v692 = vmul.f32 %v691, 1.442695
    %v693 = vpow.pop %v692
    %v694 = vadd.f32 %v693, 1.0
    %v695 = vrcp.pop %v694
    %v696 = vmul.f32 1.0, %v695
    %v697 = vtanh.pop %v690
    %v698 = vmul.f32 %v696, 0.0
    %700 = vrot.lane.b32.xlu0 %v697, 64
    %v701 = vpop.permute.xlu0 %700
    %v703 = vmul.f32 %v696, %v701
    %705 = vrot.lane.b32.xlu0 %v703, 32
    %v706 = vpop.permute.xlu0 %705
    %v708 = vadd.f32 %v698, %v706
    %v709 = vtanh.pop %v708
    %711 = vrot.lane.b32.xlu0 %v709, 64
    %v712 = vpop.permute.xlu0 %711
    %v714 = vmul.f32 %v696, %v712
    %716 = vrot.lane.b32.xlu0 %v714, 32
    %v717 = vpop.permute.xlu0 %716
    %v719 = vsel %vm412, %v717, 0.0
    %v721 = vlaneseq
    %v722 = vshrl.u32 %v721, 7
    %v723 = vsub.s32 0, %v722
    %v724 = vrot.slane %v411, %v723
    %v727 = vsel %vm522, %v719, 0
    %729 = vmatprep.subr.mxu0 0.0
    %730 = vmatpush1.msra.mxu0 %v403
    %731 = vmatprep.subr.mxu0 0.0
    %732 = vmatpush1.msra.mxu0 %v404
    %733 = vmatprep.subr.mxu0 0.0
    %734 = vmatpush1.msra.mxu0 %v405
    %735 = vmatprep.subr.mxu0 0.0
    %736 = vmatpush1.msra.mxu0 %v406
    %737 = vmatprep.subr.mxu0 0.0
    %738 = vmatpush1.msra.mxu0 %v407
    %739 = vmatprep.subr.mxu0 0.0
    %740 = vmatpush1.msra.mxu0 %v408
    %741 = vmatprep.subr.mxu0 0.0
    %742 = vmatpush1.msra.mxu0 %v409
    %743 = vmatprep.subr.mxu0 0.0
    %744 = vmatpush1.msra.mxu0 %v410
    %745 = vmatprep.subr.mxu0 0.0
    %746 = vmatpush1.msra.mxu0 0.0
    %747 = vmatprep.subr.mxu0 0.0
    %748 = vmatpush1.msra.mxu0 0.0
    %749 = vmatprep.subr.mxu0 0.0
    %750 = vmatpush1.msra.mxu0 0.0
    %751 = vmatprep.subr.mxu0 0.0
    %752 = vmatpush1.msra.mxu0 0.0
    %753 = vmatprep.subr.mxu0 0.0
    %754 = vmatpush1.msra.mxu0 0.0
    %755 = vmatprep.subr.mxu0 0.0
    %756 = vmatpush1.msra.mxu0 0.0
    %757 = vmatprep.subr.mxu0 0.0
    %758 = vmatpush1.msra.mxu0 0.0
    %759 = vmatprep.subr.mxu0 0.0
    %760 = vmatpush1.msra.mxu0 0.0
    %761 = vmatprep.subr.mxu0 0.0
    %762 = vmatpush1.msra.mxu0 0.0
    %763 = vmatprep.subr.mxu0 0.0
    %764 = vmatpush1.msra.mxu0 0.0
    %765 = vmatprep.subr.mxu0 0.0
    %766 = vmatpush1.msra.mxu0 0.0
    %767 = vmatprep.subr.mxu0 0.0
    %768 = vmatpush1.msra.mxu0 0.0
    %769 = vmatprep.subr.mxu0 0.0
    %770 = vmatpush1.msra.mxu0 0.0
    %771 = vmatprep.subr.mxu0 0.0
    %772 = vmatpush1.msra.mxu0 0.0
    %773 = vmatprep.subr.mxu0 0.0
    %774 = vmatpush1.msra.mxu0 0.0
    %775 = vmatprep.subr.mxu0 0.0
    %776 = vmatpush1.msra.mxu0 0.0
    %777 = vmatprep.subr.mxu0 0.0
    %778 = vmatpush1.msra.mxu0 0.0
    %779 = vmatprep.subr.mxu0 0.0
    %780 = vmatpush1.msra.mxu0 0.0
    %781 = vmatprep.subr.mxu0 0.0
    %782 = vmatpush1.msra.mxu0 0.0
    %783 = vmatprep.subr.mxu0 0.0
    %784 = vmatpush1.msra.mxu0 0.0
    %785 = vmatprep.subr.mxu0 0.0
    %786 = vmatpush1.msra.mxu0 0.0
    %787 = vmatprep.subr.mxu0 0.0
    %788 = vmatpush1.msra.mxu0 0.0
    %789 = vmatprep.subr.mxu0 0.0
    %790 = vmatpush1.msra.mxu0 0.0
    %791 = vmatprep.subr.mxu0 0.0
    %792 = vmatpush1.msra.mxu0 0.0
    %793 = vmatprep.mubr.f32.mxu0 0.0
    %794 = vmatmul.mubr.f32.gmra.mrb[0].mxu0 %v727
    %v795 = vpop.f32.mrb[0].mxu0
    %v796 = vadd.f32 %v724, %v795
    %v797 = vpop.f32.mrb[0].mxu0
    %798 = vdwg.mxu0
    %v799 = vxor.u32 %v796, 2147483648
    %v800 = vmul.f32 %v799, 1.442695
    %v801 = vpow.pop %v800
    %v802 = vadd.f32 %v801, 1.0
    %v803 = vrcp.pop %v802
    %v804 = vmul.f32 1.0, %v803
    %v805 = vtanh.pop %v796
    %v806 = vmul.f32 %v804, 0.0
    %808 = vrot.lane.b32.xlu0 %v805, 64
    %v809 = vpop.permute.xlu0 %808
    %v811 = vmul.f32 %v804, %v809
    %813 = vrot.lane.b32.xlu0 %v811, 32
    %v814 = vpop.permute.xlu0 %813
    %v816 = vadd.f32 %v806, %v814
    %v817 = vtanh.pop %v816
    %819 = vrot.lane.b32.xlu0 %v817, 64
    %v820 = vpop.permute.xlu0 %819
    %v822 = vmul.f32 %v804, %v820
    %v823 = vsel %vm412, %v513, 0
    %825 = vmatprep.subr.mxu0 0.0
    %826 = vmatpush1.msra.mxu0 %v386
    %827 = vmatprep.subr.mxu0 0.0
    %828 = vmatpush1.msra.mxu0 %v387
    %829 = vmatprep.subr.mxu0 0.0
    %830 = vmatpush1.msra.mxu0 %v388
    %831 = vmatprep.subr.mxu0 0.0
    %832 = vmatpush1.msra.mxu0 %v389
    %833 = vmatprep.subr.mxu0 0.0
    %834 = vmatpush1.msra.mxu0 0.0
    %835 = vmatprep.subr.mxu0 0.0
    %836 = vmatpush1.msra.mxu0 0.0
    %837 = vmatprep.subr.mxu0 0.0
    %838 = vmatpush1.msra.mxu0 0.0
    %839 = vmatprep.subr.mxu0 0.0
    %840 = vmatpush1.msra.mxu0 0.0
    %841 = vmatprep.subr.mxu0 0.0
    %842 = vmatpush1.msra.mxu0 0.0
    %843 = vmatprep.subr.mxu0 0.0
    %844 = vmatpush1.msra.mxu0 0.0
    %845 = vmatprep.subr.mxu0 0.0
    %846 = vmatpush1.msra.mxu0 0.0
    %847 = vmatprep.subr.mxu0 0.0
    %848 = vmatpush1.msra.mxu0 0.0
    %849 = vmatprep.subr.mxu0 0.0
    %850 = vmatpush1.msra.mxu0 0.0
    %851 = vmatprep.subr.mxu0 0.0
    %852 = vmatpush1.msra.mxu0 0.0
    %853 = vmatprep.subr.mxu0 0.0
    %854 = vmatpush1.msra.mxu0 0.0
    %855 = vmatprep.subr.mxu0 0.0
    %856 = vmatpush1.msra.mxu0 0.0
    %857 = vmatprep.subr.mxu0 0.0
    %858 = vmatpush1.msra.mxu0 0.0
    %859 = vmatprep.subr.mxu0 0.0
    %860 = vmatpush1.msra.mxu0 0.0
    %861 = vmatprep.subr.mxu0 0.0
    %862 = vmatpush1.msra.mxu0 0.0
    %863 = vmatprep.subr.mxu0 0.0
    %864 = vmatpush1.msra.mxu0 0.0
    %865 = vmatprep.subr.mxu0 0.0
    %866 = vmatpush1.msra.mxu0 0.0
    %867 = vmatprep.subr.mxu0 0.0
    %868 = vmatpush1.msra.mxu0 0.0
    %869 = vmatprep.subr.mxu0 0.0
    %870 = vmatpush1.msra.mxu0 0.0
    %871 = vmatprep.subr.mxu0 0.0
    %872 = vmatpush1.msra.mxu0 0.0
    %873 = vmatprep.subr.mxu0 0.0
    %874 = vmatpush1.msra.mxu0 0.0
    %875 = vmatprep.subr.mxu0 0.0
    %876 = vmatpush1.msra.mxu0 0.0
    %877 = vmatprep.subr.mxu0 0.0
    %878 = vmatpush1.msra.mxu0 0.0
    %879 = vmatprep.subr.mxu0 0.0
    %880 = vmatpush1.msra.mxu0 0.0
    %881 = vmatprep.subr.mxu0 0.0
    %882 = vmatpush1.msra.mxu0 0.0
    %883 = vmatprep.subr.mxu0 0.0
    %884 = vmatpush1.msra.mxu0 0.0
    %885 = vmatprep.subr.mxu0 0.0
    %886 = vmatpush1.msra.mxu0 0.0
    %887 = vmatprep.subr.mxu0 0.0
    %888 = vmatpush1.msra.mxu0 0.0
    %889 = vmatprep.mubr.f32.mxu0 0.0
    %890 = vmatmul.mubr.f32.gmra.mrb[0].mxu0 %v823
    %v891 = vpop.f32.mrb[0].mxu0
    %v892 = vadd.f32 0.0, %v891
    %v893 = vpop.f32.mrb[0].mxu0
    %894 = vdwg.mxu0
    %v896 = vrot.slane %v892, 6
    %v898 = vadd.f32 %v287, %v896
    %v899 = vxor.u32 %v898, 2147483648
    %v900 = vmul.f32 %v899, 1.442695
    %v901 = vpow.pop %v900
    %v902 = vadd.f32 %v901, 1.0
    %v903 = vrcp.pop %v902
    %v904 = vmul.f32 1.0, %v903
    %v905 = vtanh.pop %v898
    %v907 = vrot.slane %v504, 6
    %v909 = vmul.f32 %v904, %v907
    %911 = vrot.lane.b32.xlu0 %v905, 64
    %v912 = vpop.permute.xlu0 %911
    %v914 = vmul.f32 %v904, %v912
    %916 = vrot.lane.b32.xlu0 %v914, 32
    %v917 = vpop.permute.xlu0 %916
    %v919 = vadd.f32 %v909, %v917
    %v920 = vtanh.pop %v919
    %922 = vrot.lane.b32.xlu0 %v920, 64
    %v923 = vpop.permute.xlu0 %922
    %v925 = vmul.f32 %v904, %v923
    %927 = vrot.lane.b32.xlu0 %v925, 32
    %v928 = vpop.permute.xlu0 %927
    %v931 = vrot.slane %v619, 6
    %932 = vrot.lane.b32.xlu0 %v931, 64
    %v933 = vpop.permute.xlu0 %932
    %v935 = vsel %vm412, %v928, %v933
    %v937 = vrot.slane %v935, 2
    %v938 = vsel %vm522, %v937, 0
    %940 = vmatprep.subr.mxu0 0.0
    %941 = vmatpush1.msra.mxu0 %v390
    %942 = vmatprep.subr.mxu0 0.0
    %943 = vmatpush1.msra.mxu0 %v391
    %944 = vmatprep.subr.mxu0 0.0
    %945 = vmatpush1.msra.mxu0 %v392
    %946 = vmatprep.subr.mxu0 0.0
    %947 = vmatpush1.msra.mxu0 %v393
    %948 = vmatprep.subr.mxu0 0.0
    %949 = vmatpush1.msra.mxu0 %v394
    %950 = vmatprep.subr.mxu0 0.0
    %951 = vmatpush1.msra.mxu0 %v395
    %952 = vmatprep.subr.mxu0 0.0
    %953 = vmatpush1.msra.mxu0 %v396
    %954 = vmatprep.subr.mxu0 0.0
    %955 = vmatpush1.msra.mxu0 %v397
    %956 = vmatprep.subr.mxu0 0.0
    %957 = vmatpush1.msra.mxu0 0.0
    %958 = vmatprep.subr.mxu0 0.0
    %959 = vmatpush1.msra.mxu0 0.0
    %960 = vmatprep.subr.mxu0 0.0
    %961 = vmatpush1.msra.mxu0 0.0
    %962 = vmatprep.subr.mxu0 0.0
    %963 = vmatpush1.msra.mxu0 0.0
    %964 = vmatprep.subr.mxu0 0.0
    %965 = vmatpush1.msra.mxu0 0.0
    %966 = vmatprep.subr.mxu0 0.0
    %967 = vmatpush1.msra.mxu0 0.0
    %968 = vmatprep.subr.mxu0 0.0
    %969 = vmatpush1.msra.mxu0 0.0
    %970 = vmatprep.subr.mxu0 0.0
    %971 = vmatpush1.msra.mxu0 0.0
    %972 = vmatprep.subr.mxu0 0.0
    %973 = vmatpush1.msra.mxu0 0.0
    %974 = vmatprep.subr.mxu0 0.0
    %975 = vmatpush1.msra.mxu0 0.0
    %976 = vmatprep.subr.mxu0 0.0
    %977 = vmatpush1.msra.mxu0 0.0
    %978 = vmatprep.subr.mxu0 0.0
    %979 = vmatpush1.msra.mxu0 0.0
    %980 = vmatprep.subr.mxu0 0.0
    %981 = vmatpush1.msra.mxu0 0.0
    %982 = vmatprep.subr.mxu0 0.0
    %983 = vmatpush1.msra.mxu0 0.0
    %984 = vmatprep.subr.mxu0 0.0
    %985 = vmatpush1.msra.mxu0 0.0
    %986 = vmatprep.subr.mxu0 0.0
    %987 = vmatpush1.msra.mxu0 0.0
    %988 = vmatprep.subr.mxu0 0.0
    %989 = vmatpush1.msra.mxu0 0.0
    %990 = vmatprep.subr.mxu0 0.0
    %991 = vmatpush1.msra.mxu0 0.0
    %992 = vmatprep.subr.mxu0 0.0
    %993 = vmatpush1.msra.mxu0 0.0
    %994 = vmatprep.subr.mxu0 0.0
    %995 = vmatpush1.msra.mxu0 0.0
    %996 = vmatprep.subr.mxu0 0.0
    %997 = vmatpush1.msra.mxu0 0.0
    %998 = vmatprep.subr.mxu0 0.0
    %999 = vmatpush1.msra.mxu0 0.0
    %1000 = vmatprep.subr.mxu0 0.0
    %1001 = vmatpush1.msra.mxu0 0.0
    %1002 = vmatprep.subr.mxu0 0.0
    %1003 = vmatpush1.msra.mxu0 0.0
    %1004 = vmatprep.mubr.f32.mxu0 0.0
    %1005 = vmatmul.mubr.f32.gmra.mrb[0].mxu0 %v938
    %v1006 = vpop.f32.mrb[0].mxu0
    %v1007 = vadd.f32 %v520, %v1006
    %v1008 = vpop.f32.mrb[0].mxu0
    %1009 = vdwg.mxu0
    %v1010 = vxor.u32 %v1007, 2147483648
    %v1011 = vmul.f32 %v1010, 1.442695
    %v1012 = vpow.pop %v1011
    %v1013 = vadd.f32 %v1012, 1.0
    %v1014 = vrcp.pop %v1013
    %v1015 = vmul.f32 1.0, %v1014
    %v1016 = vtanh.pop %v1007
    %v1017 = vmul.f32 %v1015, %v613
    %1019 = vrot.lane.b32.xlu0 %v1016, 64
    %v1020 = vpop.permute.xlu0 %1019
    %v1022 = vmul.f32 %v1015, %v1020
    %1024 = vrot.lane.b32.xlu0 %v1022, 32
    %v1025 = vpop.permute.xlu0 %1024
    %v1027 = vadd.f32 %v1017, %v1025
    %v1028 = vtanh.pop %v1027
    %1030 = vrot.lane.b32.xlu0 %v1028, 64
    %v1031 = vpop.permute.xlu0 %1030
    %v1033 = vmul.f32 %v1015, %v1031
    %v1034 = vsel %vm412, %v717, 0
    %1036 = vmatprep.subr.mxu0 0.0
    %1037 = vmatpush1.msra.mxu0 %v399
    %1038 = vmatprep.subr.mxu0 0.0
    %1039 = vmatpush1.msra.mxu0 %v400
    %1040 = vmatprep.subr.mxu0 0.0
    %1041 = vmatpush1.msra.mxu0 %v401
    %1042 = vmatprep.subr.mxu0 0.0
    %1043 = vmatpush1.msra.mxu0 %v402
    %1044 = vmatprep.subr.mxu0 0.0
    %1045 = vmatpush1.msra.mxu0 0.0
    %1046 = vmatprep.subr.mxu0 0.0
    %1047 = vmatpush1.msra.mxu0 0.0
    %1048 = vmatprep.subr.mxu0 0.0
    %1049 = vmatpush1.msra.mxu0 0.0
    %1050 = vmatprep.subr.mxu0 0.0
    %1051 = vmatpush1.msra.mxu0 0.0
    %1052 = vmatprep.subr.mxu0 0.0
    %1053 = vmatpush1.msra.mxu0 0.0
    %1054 = vmatprep.subr.mxu0 0.0
    %1055 = vmatpush1.msra.mxu0 0.0
    %1056 = vmatprep.subr.mxu0 0.0
    %1057 = vmatpush1.msra.mxu0 0.0
    %1058 = vmatprep.subr.mxu0 0.0
    %1059 = vmatpush1.msra.mxu0 0.0
    %1060 = vmatprep.subr.mxu0 0.0
    %1061 = vmatpush1.msra.mxu0 0.0
    %1062 = vmatprep.subr.mxu0 0.0
    %1063 = vmatpush1.msra.mxu0 0.0
    %1064 = vmatprep.subr.mxu0 0.0
    %1065 = vmatpush1.msra.mxu0 0.0
    %1066 = vmatprep.subr.mxu0 0.0
    %1067 = vmatpush1.msra.mxu0 0.0
    %1068 = vmatprep.subr.mxu0 0.0
    %1069 = vmatpush1.msra.mxu0 0.0
    %1070 = vmatprep.subr.mxu0 0.0
    %1071 = vmatpush1.msra.mxu0 0.0
    %1072 = vmatprep.subr.mxu0 0.0
    %1073 = vmatpush1.msra.mxu0 0.0
    %1074 = vmatprep.subr.mxu0 0.0
    %1075 = vmatpush1.msra.mxu0 0.0
    %1076 = vmatprep.subr.mxu0 0.0
    %1077 = vmatpush1.msra.mxu0 0.0
    %1078 = vmatprep.subr.mxu0 0.0
    %1079 = vmatpush1.msra.mxu0 0.0
    %1080 = vmatprep.subr.mxu0 0.0
    %1081 = vmatpush1.msra.mxu0 0.0
    %1082 = vmatprep.subr.mxu0 0.0
    %1083 = vmatpush1.msra.mxu0 0.0
    %1084 = vmatprep.subr.mxu0 0.0
    %1085 = vmatpush1.msra.mxu0 0.0
    %1086 = vmatprep.subr.mxu0 0.0
    %1087 = vmatpush1.msra.mxu0 0.0
    %1088 = vmatprep.subr.mxu0 0.0
    %1089 = vmatpush1.msra.mxu0 0.0
    %1090 = vmatprep.subr.mxu0 0.0
    %1091 = vmatpush1.msra.mxu0 0.0
    %1092 = vmatprep.subr.mxu0 0.0
    %1093 = vmatpush1.msra.mxu0 0.0
    %1094 = vmatprep.subr.mxu0 0.0
    %1095 = vmatpush1.msra.mxu0 0.0
    %1096 = vmatprep.subr.mxu0 0.0
    %1097 = vmatpush1.msra.mxu0 0.0
    %1098 = vmatprep.subr.mxu0 0.0
    %1099 = vmatpush1.msra.mxu0 0.0
    %1100 = vmatprep.mubr.f32.mxu0 0.0
    %1101 = vmatmul.mubr.f32.gmra.mrb[0].mxu0 %v1034
    %v1102 = vpop.f32.mrb[0].mxu0
    %v1103 = vadd.f32 0.0, %v1102
    %v1104 = vpop.f32.mrb[0].mxu0
    %1105 = vdwg.mxu0
    %v1107 = vrot.slane %v1103, 6
    %v1109 = vadd.f32 %v378, %v1107
    %v1110 = vxor.u32 %v1109, 2147483648
    %v1111 = vmul.f32 %v1110, 1.442695
    %v1112 = vpow.pop %v1111
    %v1113 = vadd.f32 %v1112, 1.0
    %v1114 = vrcp.pop %v1113
    %v1115 = vmul.f32 1.0, %v1114
    %v1116 = vtanh.pop %v1109
    %v1118 = vrot.slane %v708, 6
    %v1120 = vmul.f32 %v1115, %v1118
    %1122 = vrot.lane.b32.xlu0 %v1116, 64
    %v1123 = vpop.permute.xlu0 %1122
    %v1125 = vmul.f32 %v1115, %v1123
    %1127 = vrot.lane.b32.xlu0 %v1125, 32
    %v1128 = vpop.permute.xlu0 %1127
    %v1130 = vadd.f32 %v1120, %v1128
    %v1131 = vtanh.pop %v1130
    %1133 = vrot.lane.b32.xlu0 %v1131, 64
    %v1134 = vpop.permute.xlu0 %1133
    %v1136 = vmul.f32 %v1115, %v1134
    %1138 = vrot.lane.b32.xlu0 %v1136, 32
    %v1139 = vpop.permute.xlu0 %1138
    %v1142 = vrot.slane %v822, 6
    %1143 = vrot.lane.b32.xlu0 %v1142, 64
    %v1144 = vpop.permute.xlu0 %1143
    %v1146 = vsel %vm412, %v1139, %v1144
    %v1148 = vrot.slane %v1146, 2
    %v1149 = vsel %vm522, %v1148, 0
    %1151 = vmatprep.subr.mxu0 0.0
    %1152 = vmatpush1.msra.mxu0 %v403
    %1153 = vmatprep.subr.mxu0 0.0
    %1154 = vmatpush1.msra.mxu0 %v404
    %1155 = vmatprep.subr.mxu0 0.0
    %1156 = vmatpush1.msra.mxu0 %v405
    %1157 = vmatprep.subr.mxu0 0.0
    %1158 = vmatpush1.msra.mxu0 %v406
    %1159 = vmatprep.subr.mxu0 0.0
    %1160 = vmatpush1.msra.mxu0 %v407
    %1161 = vmatprep.subr.mxu0 0.0
    %1162 = vmatpush1.msra.mxu0 %v408
    %1163 = vmatprep.subr.mxu0 0.0
    %1164 = vmatpush1.msra.mxu0 %v409
    %1165 = vmatprep.subr.mxu0 0.0
    %1166 = vmatpush1.msra.mxu0 %v410
    %1167 = vmatprep.subr.mxu0 0.0
    %1168 = vmatpush1.msra.mxu0 0.0
    %1169 = vmatprep.subr.mxu0 0.0
    %1170 = vmatpush1.msra.mxu0 0.0
    %1171 = vmatprep.subr.mxu0 0.0
    %1172 = vmatpush1.msra.mxu0 0.0
    %1173 = vmatprep.subr.mxu0 0.0
    %1174 = vmatpush1.msra.mxu0 0.0
    %1175 = vmatprep.subr.mxu0 0.0
    %1176 = vmatpush1.msra.mxu0 0.0
    %1177 = vmatprep.subr.mxu0 0.0
    %1178 = vmatpush1.msra.mxu0 0.0
    %1179 = vmatprep.subr.mxu0 0.0
    %1180 = vmatpush1.msra.mxu0 0.0
    %1181 = vmatprep.subr.mxu0 0.0
    %1182 = vmatpush1.msra.mxu0 0.0
    %1183 = vmatprep.subr.mxu0 0.0
    %1184 = vmatpush1.msra.mxu0 0.0
    %1185 = vmatprep.subr.mxu0 0.0
    %1186 = vmatpush1.msra.mxu0 0.0
    %1187 = vmatprep.subr.mxu0 0.0
    %1188 = vmatpush1.msra.mxu0 0.0
    %1189 = vmatprep.subr.mxu0 0.0
    %1190 = vmatpush1.msra.mxu0 0.0
    %1191 = vmatprep.subr.mxu0 0.0
    %1192 = vmatpush1.msra.mxu0 0.0
    %1193 = vmatprep.subr.mxu0 0.0
    %1194 = vmatpush1.msra.mxu0 0.0
    %1195 = vmatprep.subr.mxu0 0.0
    %1196 = vmatpush1.msra.mxu0 0.0
    %1197 = vmatprep.subr.mxu0 0.0
    %1198 = vmatpush1.msra.mxu0 0.0
    %1199 = vmatprep.subr.mxu0 0.0
    %1200 = vmatpush1.msra.mxu0 0.0
    %1201 = vmatprep.subr.mxu0 0.0
    %1202 = vmatpush1.msra.mxu0 0.0
    %1203 = vmatprep.subr.mxu0 0.0
    %1204 = vmatpush1.msra.mxu0 0.0
    %1205 = vmatprep.subr.mxu0 0.0
    %1206 = vmatpush1.msra.mxu0 0.0
    %1207 = vmatprep.subr.mxu0 0.0
    %1208 = vmatpush1.msra.mxu0 0.0
    %1209 = vmatprep.subr.mxu0 0.0
    %1210 = vmatpush1.msra.mxu0 0.0
    %1211 = vmatprep.subr.mxu0 0.0
    %1212 = vmatpush1.msra.mxu0 0.0
    %1213 = vmatprep.subr.mxu0 0.0
    %1214 = vmatpush1.msra.mxu0 0.0
    %1215 = vmatprep.mubr.f32.mxu0 0.0
    %1216 = vmatmul.mubr.f32.gmra.mrb[0].mxu0 %v1149
    %v1217 = vpop.f32.mrb[0].mxu0
    %v1218 = vadd.f32 %v724, %v1217
    %v1219 = vpop.f32.mrb[0].mxu0
    %1220 = vdwg.mxu0
    %v1221 = vxor.u32 %v1218, 2147483648
    %v1222 = vmul.f32 %v1221, 1.442695
    %v1223 = vpow.pop %v1222
    %v1224 = vadd.f32 %v1223, 1.0
    %v1225 = vrcp.pop %v1224
    %v1226 = vmul.f32 1.0, %v1225
    %v1227 = vtanh.pop %v1218
    %v1228 = vmul.f32 %v1226, %v816
    %1230 = vrot.lane.b32.xlu0 %v1227, 64
    %v1231 = vpop.permute.xlu0 %1230
    %v1233 = vmul.f32 %v1226, %v1231
    %1235 = vrot.lane.b32.xlu0 %v1233, 32
    %v1236 = vpop.permute.xlu0 %1235
    %v1238 = vadd.f32 %v1228, %v1236
    %v1239 = vtanh.pop %v1238
    %1241 = vrot.lane.b32.xlu0 %v1239, 64
    %v1242 = vpop.permute.xlu0 %1241
    %v1244 = vmul.f32 %v1226, %v1242
    %v1245 = vrot.slane %v925, 2
    %1246 = vrot.lane.b32.xlu0 %v1245, 32
    %v1247 = vpop.permute.xlu0 %1246
    %v1248 = vsel %vm412, %v1247, 0
    %1250 = vmatprep.subr.mxu0 0.0
    %1251 = vmatpush1.msra.mxu0 %v386
    %1252 = vmatprep.subr.mxu0 0.0
    %1253 = vmatpush1.msra.mxu0 %v387
    %1254 = vmatprep.subr.mxu0 0.0
    %1255 = vmatpush1.msra.mxu0 %v388
    %1256 = vmatprep.subr.mxu0 0.0
    %1257 = vmatpush1.msra.mxu0 %v389
    %1258 = vmatprep.subr.mxu0 0.0
    %1259 = vmatpush1.msra.mxu0 0.0
    %1260 = vmatprep.subr.mxu0 0.0
    %1261 = vmatpush1.msra.mxu0 0.0
    %1262 = vmatprep.subr.mxu0 0.0
    %1263 = vmatpush1.msra.mxu0 0.0
    %1264 = vmatprep.subr.mxu0 0.0
    %1265 = vmatpush1.msra.mxu0 0.0
    %1266 = vmatprep.subr.mxu0 0.0
    %1267 = vmatpush1.msra.mxu0 0.0
    %1268 = vmatprep.subr.mxu0 0.0
    %1269 = vmatpush1.msra.mxu0 0.0
    %1270 = vmatprep.subr.mxu0 0.0
    %1271 = vmatpush1.msra.mxu0 0.0
    %1272 = vmatprep.subr.mxu0 0.0
    %1273 = vmatpush1.msra.mxu0 0.0
    %1274 = vmatprep.subr.mxu0 0.0
    %1275 = vmatpush1.msra.mxu0 0.0
    %1276 = vmatprep.subr.mxu0 0.0
    %1277 = vmatpush1.msra.mxu0 0.0
    %1278 = vmatprep.subr.mxu0 0.0
    %1279 = vmatpush1.msra.mxu0 0.0
    %1280 = vmatprep.subr.mxu0 0.0
    %1281 = vmatpush1.msra.mxu0 0.0
    %1282 = vmatprep.subr.mxu0 0.0
    %1283 = vmatpush1.msra.mxu0 0.0
    %1284 = vmatprep.subr.mxu0 0.0
    %1285 = vmatpush1.msra.mxu0 0.0
    %1286 = vmatprep.subr.mxu0 0.0
    %1287 = vmatpush1.msra.mxu0 0.0
    %1288 = vmatprep.subr.mxu0 0.0
    %1289 = vmatpush1.msra.mxu0 0.0
    %1290 = vmatprep.subr.mxu0 0.0
    %1291 = vmatpush1.msra.mxu0 0.0
    %1292 = vmatprep.subr.mxu0 0.0
    %1293 = vmatpush1.msra.mxu0 0.0
    %1294 = vmatprep.subr.mxu0 0.0
    %1295 = vmatpush1.msra.mxu0 0.0
    %1296 = vmatprep.subr.mxu0 0.0
    %1297 = vmatpush1.msra.mxu0 0.0
    %1298 = vmatprep.subr.mxu0 0.0
    %1299 = vmatpush1.msra.mxu0 0.0
    %1300 = vmatprep.subr.mxu0 0.0
    %1301 = vmatpush1.msra.mxu0 0.0
    %1302 = vmatprep.subr.mxu0 0.0
    %1303 = vmatpush1.msra.mxu0 0.0
    %1304 = vmatprep.subr.mxu0 0.0
    %1305 = vmatpush1.msra.mxu0 0.0
    %1306 = vmatprep.subr.mxu0 0.0
    %1307 = vmatpush1.msra.mxu0 0.0
    %1308 = vmatprep.subr.mxu0 0.0
    %1309 = vmatpush1.msra.mxu0 0.0
    %1310 = vmatprep.subr.mxu0 0.0
    %1311 = vmatpush1.msra.mxu0 0.0
    %1312 = vmatprep.subr.mxu0 0.0
    %1313 = vmatpush1.msra.mxu0 0.0
    %1314 = vmatprep.mubr.f32.mxu0 0.0
    %1315 = vmatmul.mubr.f32.gmra.mrb[0].mxu0 %v1248
    %v1316 = vpop.f32.mrb[0].mxu0
    %v1317 = vadd.f32 0.0, %v1316
    %v1318 = vpop.f32.mrb[0].mxu0
    %1319 = vdwg.mxu0
    %v1321 = vrot.slane %v1317, 4
    %v1323 = vadd.f32 %v287, %v1321
    %v1324 = vxor.u32 %v1323, 2147483648
    %v1325 = vmul.f32 %v1324, 1.442695
    %v1326 = vpow.pop %v1325
    %v1327 = vadd.f32 %v1326, 1.0
    %v1328 = vrcp.pop %v1327
    %v1329 = vmul.f32 1.0, %v1328
    %v1330 = vtanh.pop %v1323
    %v1332 = vrot.slane %v919, 6
    %v1334 = vmul.f32 %v1329, %v1332
    %1336 = vrot.lane.b32.xlu0 %v1330, 64
    %v1337 = vpop.permute.xlu0 %1336
    %v1339 = vmul.f32 %v1329, %v1337
    %1341 = vrot.lane.b32.xlu0 %v1339, 32
    %v1342 = vpop.permute.xlu0 %1341
    %v1344 = vadd.f32 %v1334, %v1342
    %v1345 = vtanh.pop %v1344
    %1347 = vrot.lane.b32.xlu0 %v1345, 64
    %v1348 = vpop.permute.xlu0 %1347
    %v1350 = vmul.f32 %v1329, %v1348
    %1352 = vrot.lane.b32.xlu0 %v1350, 32
    %v1353 = vpop.permute.xlu0 %1352
    %v1356 = vrot.slane %v1033, 4
    %1357 = vrot.lane.b32.xlu0 %v1356, 64
    %v1358 = vpop.permute.xlu0 %1357
    %v1360 = vsel %vm412, %v1353, %v1358
    %v1362 = vrot.slane %v1360, 4
    %v1363 = vsel %vm522, %v1362, 0
    %1365 = vmatprep.subr.mxu0 0.0
    %1366 = vmatpush1.msra.mxu0 %v390
    %1367 = vmatprep.subr.mxu0 0.0
    %1368 = vmatpush1.msra.mxu0 %v391
    %1369 = vmatprep.subr.mxu0 0.0
    %1370 = vmatpush1.msra.mxu0 %v392
    %1371 = vmatprep.subr.mxu0 0.0
    %1372 = vmatpush1.msra.mxu0 %v393
    %1373 = vmatprep.subr.mxu0 0.0
    %1374 = vmatpush1.msra.mxu0 %v394
    %1375 = vmatprep.subr.mxu0 0.0
    %1376 = vmatpush1.msra.mxu0 %v395
    %1377 = vmatprep.subr.mxu0 0.0
    %1378 = vmatpush1.msra.mxu0 %v396
    %1379 = vmatprep.subr.mxu0 0.0
    %1380 = vmatpush1.msra.mxu0 %v397
    %1381 = vmatprep.subr.mxu0 0.0
    %1382 = vmatpush1.msra.mxu0 0.0
    %1383 = vmatprep.subr.mxu0 0.0
    %1384 = vmatpush1.msra.mxu0 0.0
    %1385 = vmatprep.subr.mxu0 0.0
    %1386 = vmatpush1.msra.mxu0 0.0
    %1387 = vmatprep.subr.mxu0 0.0
    %1388 = vmatpush1.msra.mxu0 0.0
    %1389 = vmatprep.subr.mxu0 0.0
    %1390 = vmatpush1.msra.mxu0 0.0
    %1391 = vmatprep.subr.mxu0 0.0
    %1392 = vmatpush1.msra.mxu0 0.0
    %1393 = vmatprep.subr.mxu0 0.0
    %1394 = vmatpush1.msra.mxu0 0.0
    %1395 = vmatprep.subr.mxu0 0.0
    %1396 = vmatpush1.msra.mxu0 0.0
    %1397 = vmatprep.subr.mxu0 0.0
    %1398 = vmatpush1.msra.mxu0 0.0
    %1399 = vmatprep.subr.mxu0 0.0
    %1400 = vmatpush1.msra.mxu0 0.0
    %1401 = vmatprep.subr.mxu0 0.0
    %1402 = vmatpush1.msra.mxu0 0.0
    %1403 = vmatprep.subr.mxu0 0.0
    %1404 = vmatpush1.msra.mxu0 0.0
    %1405 = vmatprep.subr.mxu0 0.0
    %1406 = vmatpush1.msra.mxu0 0.0
    %1407 = vmatprep.subr.mxu0 0.0
    %1408 = vmatpush1.msra.mxu0 0.0
    %1409 = vmatprep.subr.mxu0 0.0
    %1410 = vmatpush1.msra.mxu0 0.0
    %1411 = vmatprep.subr.mxu0 0.0
    %1412 = vmatpush1.msra.mxu0 0.0
    %1413 = vmatprep.subr.mxu0 0.0
    %1414 = vmatpush1.msra.mxu0 0.0
    %1415 = vmatprep.subr.mxu0 0.0
    %1416 = vmatpush1.msra.mxu0 0.0
    %1417 = vmatprep.subr.mxu0 0.0
    %1418 = vmatpush1.msra.mxu0 0.0
    %1419 = vmatprep.subr.mxu0 0.0
    %1420 = vmatpush1.msra.mxu0 0.0
    %1421 = vmatprep.subr.mxu0 0.0
    %1422 = vmatpush1.msra.mxu0 0.0
    %1423 = vmatprep.subr.mxu0 0.0
    %1424 = vmatpush1.msra.mxu0 0.0
    %1425 = vmatprep.subr.mxu0 0.0
    %1426 = vmatpush1.msra.mxu0 0.0
    %1427 = vmatprep.subr.mxu0 0.0
    %1428 = vmatpush1.msra.mxu0 0.0
    %1429 = vmatprep.mubr.f32.mxu0 0.0
    %1430 = vmatmul.mubr.f32.gmra.mrb[0].mxu0 %v1363
    %v1431 = vpop.f32.mrb[0].mxu0
    %v1432 = vadd.f32 %v520, %v1431
    %v1433 = vpop.f32.mrb[0].mxu0
    %1434 = vdwg.mxu0
    %v1435 = vxor.u32 %v1432, 2147483648
    %v1436 = vmul.f32 %v1435, 1.442695
    %v1437 = vpow.pop %v1436
    %v1438 = vadd.f32 %v1437, 1.0
    %v1439 = vrcp.pop %v1438
    %v1440 = vmul.f32 1.0, %v1439
    %v1441 = vtanh.pop %v1432
    %v1442 = vmul.f32 %v1440, %v1027
    %1444 = vrot.lane.b32.xlu0 %v1441, 64
    %v1445 = vpop.permute.xlu0 %1444
    %v1447 = vmul.f32 %v1440, %v1445
    %1449 = vrot.lane.b32.xlu0 %v1447, 32
    %v1450 = vpop.permute.xlu0 %1449
    %v1452 = vadd.f32 %v1442, %v1450
    %v1453 = vtanh.pop %v1452
    %1455 = vrot.lane.b32.xlu0 %v1453, 64
    %v1456 = vpop.permute.xlu0 %1455
    %v1458 = vmul.f32 %v1440, %v1456
    %v1459 = vrot.slane %v1136, 2
    %1460 = vrot.lane.b32.xlu0 %v1459, 32
    %v1461 = vpop.permute.xlu0 %1460
    %v1462 = vsel %vm412, %v1461, 0
    %1464 = vmatprep.subr.mxu0 0.0
    %1465 = vmatpush1.msra.mxu0 %v399
    %1466 = vmatprep.subr.mxu0 0.0
    %1467 = vmatpush1.msra.mxu0 %v400
    %1468 = vmatprep.subr.mxu0 0.0
    %1469 = vmatpush1.msra.mxu0 %v401
    %1470 = vmatprep.subr.mxu0 0.0
    %1471 = vmatpush1.msra.mxu0 %v402
    %1472 = vmatprep.subr.mxu0 0.0
    %1473 = vmatpush1.msra.mxu0 0.0
    %1474 = vmatprep.subr.mxu0 0.0
    %1475 = vmatpush1.msra.mxu0 0.0
    %1476 = vmatprep.subr.mxu0 0.0
    %1477 = vmatpush1.msra.mxu0 0.0
    %1478 = vmatprep.subr.mxu0 0.0
    %1479 = vmatpush1.msra.mxu0 0.0
    %1480 = vmatprep.subr.mxu0 0.0
    %1481 = vmatpush1.msra.mxu0 0.0
    %1482 = vmatprep.subr.mxu0 0.0
    %1483 = vmatpush1.msra.mxu0 0.0
    %1484 = vmatprep.subr.mxu0 0.0
    %1485 = vmatpush1.msra.mxu0 0.0
    %1486 = vmatprep.subr.mxu0 0.0
    %1487 = vmatpush1.msra.mxu0 0.0
    %1488 = vmatprep.subr.mxu0 0.0
    %1489 = vmatpush1.msra.mxu0 0.0
    %1490 = vmatprep.subr.mxu0 0.0
    %1491 = vmatpush1.msra.mxu0 0.0
    %1492 = vmatprep.subr.mxu0 0.0
    %1493 = vmatpush1.msra.mxu0 0.0
    %1494 = vmatprep.subr.mxu0 0.0
    %1495 = vmatpush1.msra.mxu0 0.0
    %1496 = vmatprep.subr.mxu0 0.0
    %1497 = vmatpush1.msra.mxu0 0.0
    %1498 = vmatprep.subr.mxu0 0.0
    %1499 = vmatpush1.msra.mxu0 0.0
    %1500 = vmatprep.subr.mxu0 0.0
    %1501 = vmatpush1.msra.mxu0 0.0
    %1502 = vmatprep.subr.mxu0 0.0
    %1503 = vmatpush1.msra.mxu0 0.0
    %1504 = vmatprep.subr.mxu0 0.0
    %1505 = vmatpush1.msra.mxu0 0.0
    %1506 = vmatprep.subr.mxu0 0.0
    %1507 = vmatpush1.msra.mxu0 0.0
    %1508 = vmatprep.subr.mxu0 0.0
    %1509 = vmatpush1.msra.mxu0 0.0
    %1510 = vmatprep.subr.mxu0 0.0
    %1511 = vmatpush1.msra.mxu0 0.0
    %1512 = vmatprep.subr.mxu0 0.0
    %1513 = vmatpush1.msra.mxu0 0.0
    %1514 = vmatprep.subr.mxu0 0.0
    %1515 = vmatpush1.msra.mxu0 0.0
    %1516 = vmatprep.subr.mxu0 0.0
    %1517 = vmatpush1.msra.mxu0 0.0
    %1518 = vmatprep.subr.mxu0 0.0
    %1519 = vmatpush1.msra.mxu0 0.0
    %1520 = vmatprep.subr.mxu0 0.0
    %1521 = vmatpush1.msra.mxu0 0.0
    %1522 = vmatprep.subr.mxu0 0.0
    %1523 = vmatpush1.msra.mxu0 0.0
    %1524 = vmatprep.subr.mxu0 0.0
    %1525 = vmatpush1.msra.mxu0 0.0
    %1526 = vmatprep.subr.mxu0 0.0
    %1527 = vmatpush1.msra.mxu0 0.0
    %1528 = vmatprep.mubr.f32.mxu0 0.0
    %1529 = vmatmul.mubr.f32.gmra.mrb[0].mxu0 %v1462
    %v1530 = vpop.f32.mrb[0].mxu0
    %v1531 = vadd.f32 0.0, %v1530
    %v1532 = vpop.f32.mrb[0].mxu0
    %1533 = vdwg.mxu0
    %v1535 = vrot.slane %v1531, 4
    %v1537 = vadd.f32 %v378, %v1535
    %v1538 = vxor.u32 %v1537, 2147483648
    %v1539 = vmul.f32 %v1538, 1.442695
    %v1540 = vpow.pop %v1539
    %v1541 = vadd.f32 %v1540, 1.0
    %v1542 = vrcp.pop %v1541
    %v1543 = vmul.f32 1.0, %v1542
    %v1544 = vtanh.pop %v1537
    %v1546 = vrot.slane %v1130, 6
    %v1548 = vmul.f32 %v1543, %v1546
    %1550 = vrot.lane.b32.xlu0 %v1544, 64
    %v1551 = vpop.permute.xlu0 %1550
    %v1553 = vmul.f32 %v1543, %v1551
    %1555 = vrot.lane.b32.xlu0 %v1553, 32
    %v1556 = vpop.permute.xlu0 %1555
    %v1558 = vadd.f32 %v1548, %v1556
    %v1559 = vtanh.pop %v1558
    %1561 = vrot.lane.b32.xlu0 %v1559, 64
    %v1562 = vpop.permute.xlu0 %1561
    %v1564 = vmul.f32 %v1543, %v1562
    %1566 = vrot.lane.b32.xlu0 %v1564, 32
    %v1567 = vpop.permute.xlu0 %1566
    %v1570 = vrot.slane %v1244, 4
    %1571 = vrot.lane.b32.xlu0 %v1570, 64
    %v1572 = vpop.permute.xlu0 %1571
    %v1574 = vsel %vm412, %v1567, %v1572
    %v1576 = vrot.slane %v1574, 4
    %v1577 = vsel %vm522, %v1576, 0
    %1579 = vmatprep.subr.mxu0 0.0
    %1580 = vmatpush1.msra.mxu0 %v403
    %1581 = vmatprep.subr.mxu0 0.0
    %1582 = vmatpush1.msra.mxu0 %v404
    %1583 = vmatprep.subr.mxu0 0.0
    %1584 = vmatpush1.msra.mxu0 %v405
    %1585 = vmatprep.subr.mxu0 0.0
    %1586 = vmatpush1.msra.mxu0 %v406
    %1587 = vmatprep.subr.mxu0 0.0
    %1588 = vmatpush1.msra.mxu0 %v407
    %1589 = vmatprep.subr.mxu0 0.0
    %1590 = vmatpush1.msra.mxu0 %v408
    %1591 = vmatprep.subr.mxu0 0.0
    %1592 = vmatpush1.msra.mxu0 %v409
    %1593 = vmatprep.subr.mxu0 0.0
    %1594 = vmatpush1.msra.mxu0 %v410
    %1595 = vmatprep.subr.mxu0 0.0
    %1596 = vmatpush1.msra.mxu0 0.0
    %1597 = vmatprep.subr.mxu0 0.0
    %1598 = vmatpush1.msra.mxu0 0.0
    %1599 = vmatprep.subr.mxu0 0.0
    %1600 = vmatpush1.msra.mxu0 0.0
    %1601 = vmatprep.subr.mxu0 0.0
    %1602 = vmatpush1.msra.mxu0 0.0
    %1603 = vmatprep.subr.mxu0 0.0
    %1604 = vmatpush1.msra.mxu0 0.0
    %1605 = vmatprep.subr.mxu0 0.0
    %1606 = vmatpush1.msra.mxu0 0.0
    %1607 = vmatprep.subr.mxu0 0.0
    %1608 = vmatpush1.msra.mxu0 0.0
    %1609 = vmatprep.subr.mxu0 0.0
    %1610 = vmatpush1.msra.mxu0 0.0
    %1611 = vmatprep.subr.mxu0 0.0
    %1612 = vmatpush1.msra.mxu0 0.0
    %1613 = vmatprep.subr.mxu0 0.0
    %1614 = vmatpush1.msra.mxu0 0.0
    %1615 = vmatprep.subr.mxu0 0.0
    %1616 = vmatpush1.msra.mxu0 0.0
    %1617 = vmatprep.subr.mxu0 0.0
    %1618 = vmatpush1.msra.mxu0 0.0
    %1619 = vmatprep.subr.mxu0 0.0
    %1620 = vmatpush1.msra.mxu0 0.0
    %1621 = vmatprep.subr.mxu0 0.0
    %1622 = vmatpush1.msra.mxu0 0.0
    %1623 = vmatprep.subr.mxu0 0.0
    %1624 = vmatpush1.msra.mxu0 0.0
    %1625 = vmatprep.subr.mxu0 0.0
    %1626 = vmatpush1.msra.mxu0 0.0
    %1627 = vmatprep.subr.mxu0 0.0
    %1628 = vmatpush1.msra.mxu0 0.0
    %1629 = vmatprep.subr.mxu0 0.0
    %1630 = vmatpush1.msra.mxu0 0.0
    %1631 = vmatprep.subr.mxu0 0.0
    %1632 = vmatpush1.msra.mxu0 0.0
    %1633 = vmatprep.subr.mxu0 0.0
    %1634 = vmatpush1.msra.mxu0 0.0
    %1635 = vmatprep.subr.mxu0 0.0
    %1636 = vmatpush1.msra.mxu0 0.0
    %1637 = vmatprep.subr.mxu0 0.0
    %1638 = vmatpush1.msra.mxu0 0.0
    %1639 = vmatprep.subr.mxu0 0.0
    %1640 = vmatpush1.msra.mxu0 0.0
    %1641 = vmatprep.subr.mxu0 0.0
    %1642 = vmatpush1.msra.mxu0 0.0
    %1643 = vmatprep.mubr.f32.mxu0 0.0
    %1644 = vmatmul.mubr.f32.gmra.mrb[0].mxu0 %v1577
    %v1645 = vpop.f32.mrb[0].mxu0
    %v1646 = vadd.f32 %v724, %v1645
    %v1647 = vpop.f32.mrb[0].mxu0
    %1648 = vdwg.mxu0
    %v1649 = vxor.u32 %v1646, 2147483648
    %v1650 = vmul.f32 %v1649, 1.442695
    %v1651 = vpow.pop %v1650
    %v1652 = vadd.f32 %v1651, 1.0
    %v1653 = vrcp.pop %v1652
    %v1654 = vmul.f32 1.0, %v1653
    %v1655 = vtanh.pop %v1646
    %v1656 = vmul.f32 %v1654, %v1238
    %1658 = vrot.lane.b32.xlu0 %v1655, 64
    %v1659 = vpop.permute.xlu0 %1658
    %v1661 = vmul.f32 %v1654, %v1659
    %1663 = vrot.lane.b32.xlu0 %v1661, 32
    %v1664 = vpop.permute.xlu0 %1663
    %v1666 = vadd.f32 %v1656, %v1664
    %v1667 = vtanh.pop %v1666
    %1669 = vrot.lane.b32.xlu0 %v1667, 64
    %v1670 = vpop.permute.xlu0 %1669
    %v1672 = vmul.f32 %v1654, %v1670
    %v1673 = vrot.slane %v1350, 4
    %1674 = vrot.lane.b32.xlu0 %v1673, 32
    %v1675 = vpop.permute.xlu0 %1674
    %v1676 = vsel %vm412, %v1675, 0
    %1678 = vmatprep.subr.mxu0 0.0
    %1679 = vmatpush1.msra.mxu0 %v386
    %1680 = vmatprep.subr.mxu0 0.0
    %1681 = vmatpush1.msra.mxu0 %v387
    %1682 = vmatprep.subr.mxu0 0.0
    %1683 = vmatpush1.msra.mxu0 %v388
    %1684 = vmatprep.subr.mxu0 0.0
    %1685 = vmatpush1.msra.mxu0 %v389
    %1686 = vmatprep.subr.mxu0 0.0
    %1687 = vmatpush1.msra.mxu0 0.0
    %1688 = vmatprep.subr.mxu0 0.0
    %1689 = vmatpush1.msra.mxu0 0.0
    %1690 = vmatprep.subr.mxu0 0.0
    %1691 = vmatpush1.msra.mxu0 0.0
    %1692 = vmatprep.subr.mxu0 0.0
    %1693 = vmatpush1.msra.mxu0 0.0
    %1694 = vmatprep.subr.mxu0 0.0
    %1695 = vmatpush1.msra.mxu0 0.0
    %1696 = vmatprep.subr.mxu0 0.0
    %1697 = vmatpush1.msra.mxu0 0.0
    %1698 = vmatprep.subr.mxu0 0.0
    %1699 = vmatpush1.msra.mxu0 0.0
    %1700 = vmatprep.subr.mxu0 0.0
    %1701 = vmatpush1.msra.mxu0 0.0
    %1702 = vmatprep.subr.mxu0 0.0
    %1703 = vmatpush1.msra.mxu0 0.0
    %1704 = vmatprep.subr.mxu0 0.0
    %1705 = vmatpush1.msra.mxu0 0.0
    %1706 = vmatprep.subr.mxu0 0.0
    %1707 = vmatpush1.msra.mxu0 0.0
    %1708 = vmatprep.subr.mxu0 0.0
    %1709 = vmatpush1.msra.mxu0 0.0
    %1710 = vmatprep.subr.mxu0 0.0
    %1711 = vmatpush1.msra.mxu0 0.0
    %1712 = vmatprep.subr.mxu0 0.0
    %1713 = vmatpush1.msra.mxu0 0.0
    %1714 = vmatprep.subr.mxu0 0.0
    %1715 = vmatpush1.msra.mxu0 0.0
    %1716 = vmatprep.subr.mxu0 0.0
    %1717 = vmatpush1.msra.mxu0 0.0
    %1718 = vmatprep.subr.mxu0 0.0
    %1719 = vmatpush1.msra.mxu0 0.0
    %1720 = vmatprep.subr.mxu0 0.0
    %1721 = vmatpush1.msra.mxu0 0.0
    %1722 = vmatprep.subr.mxu0 0.0
    %1723 = vmatpush1.msra.mxu0 0.0
    %1724 = vmatprep.subr.mxu0 0.0
    %1725 = vmatpush1.msra.mxu0 0.0
    %1726 = vmatprep.subr.mxu0 0.0
    %1727 = vmatpush1.msra.mxu0 0.0
    %1728 = vmatprep.subr.mxu0 0.0
    %1729 = vmatpush1.msra.mxu0 0.0
    %1730 = vmatprep.subr.mxu0 0.0
    %1731 = vmatpush1.msra.mxu0 0.0
    %1732 = vmatprep.subr.mxu0 0.0
    %1733 = vmatpush1.msra.mxu0 0.0
    %1734 = vmatprep.subr.mxu0 0.0
    %1735 = vmatpush1.msra.mxu0 0.0
    %1736 = vmatprep.subr.mxu0 0.0
    %1737 = vmatpush1.msra.mxu0 0.0
    %1738 = vmatprep.subr.mxu0 0.0
    %1739 = vmatpush1.msra.mxu0 0.0
    %1740 = vmatprep.subr.mxu0 0.0
    %1741 = vmatpush1.msra.mxu0 0.0
    %1742 = vmatprep.mubr.f32.mxu0 0.0
    %1743 = vmatmul.mubr.f32.gmra.mrb[0].mxu0 %v1676
    %v1744 = vpop.f32.mrb[0].mxu0
    %v1745 = vadd.f32 0.0, %v1744
    %v1746 = vpop.f32.mrb[0].mxu0
    %1747 = vdwg.mxu0
    %v1749 = vrot.slane %v1745, 2
    %v1751 = vadd.f32 %v287, %v1749
    %v1752 = vxor.u32 %v1751, 2147483648
    %v1753 = vmul.f32 %v1752, 1.442695
    %v1754 = vpow.pop %v1753
    %v1755 = vadd.f32 %v1754, 1.0
    %v1756 = vrcp.pop %v1755
    %v1757 = vmul.f32 1.0, %v1756
    %v1758 = vtanh.pop %v1751
    %v1760 = vrot.slane %v1344, 6
    %v1762 = vmul.f32 %v1757, %v1760
    %1764 = vrot.lane.b32.xlu0 %v1758, 64
    %v1765 = vpop.permute.xlu0 %1764
    %v1767 = vmul.f32 %v1757, %v1765
    %1769 = vrot.lane.b32.xlu0 %v1767, 32
    %v1770 = vpop.permute.xlu0 %1769
    %v1772 = vadd.f32 %v1762, %v1770
    %v1773 = vtanh.pop %v1772
    %1775 = vrot.lane.b32.xlu0 %v1773, 64
    %v1776 = vpop.permute.xlu0 %1775
    %v1778 = vmul.f32 %v1757, %v1776
    %1780 = vrot.lane.b32.xlu0 %v1778, 32
    %v1781 = vpop.permute.xlu0 %1780
    %v1784 = vrot.slane %v1458, 2
    %1785 = vrot.lane.b32.xlu0 %v1784, 64
    %v1786 = vpop.permute.xlu0 %1785
    %v1788 = vsel %vm412, %v1781, %v1786
    %v1790 = vrot.slane %v1788, 6
    %v1791 = vsel %vm522, %v1790, 0
    %1793 = vmatprep.subr.mxu0 0.0
    %1794 = vmatpush1.msra.mxu0 %v390
    %1795 = vmatprep.subr.mxu0 0.0
    %1796 = vmatpush1.msra.mxu0 %v391
    %1797 = vmatprep.subr.mxu0 0.0
    %1798 = vmatpush1.msra.mxu0 %v392
    %1799 = vmatprep.subr.mxu0 0.0
    %1800 = vmatpush1.msra.mxu0 %v393
    %1801 = vmatprep.subr.mxu0 0.0
    %1802 = vmatpush1.msra.mxu0 %v394
    %1803 = vmatprep.subr.mxu0 0.0
    %1804 = vmatpush1.msra.mxu0 %v395
    %1805 = vmatprep.subr.mxu0 0.0
    %1806 = vmatpush1.msra.mxu0 %v396
    %1807 = vmatprep.subr.mxu0 0.0
    %1808 = vmatpush1.msra.mxu0 %v397
    %1809 = vmatprep.subr.mxu0 0.0
    %1810 = vmatpush1.msra.mxu0 0.0
    %1811 = vmatprep.subr.mxu0 0.0
    %1812 = vmatpush1.msra.mxu0 0.0
    %1813 = vmatprep.subr.mxu0 0.0
    %1814 = vmatpush1.msra.mxu0 0.0
    %1815 = vmatprep.subr.mxu0 0.0
    %1816 = vmatpush1.msra.mxu0 0.0
    %1817 = vmatprep.subr.mxu0 0.0
    %1818 = vmatpush1.msra.mxu0 0.0
    %1819 = vmatprep.subr.mxu0 0.0
    %1820 = vmatpush1.msra.mxu0 0.0
    %1821 = vmatprep.subr.mxu0 0.0
    %1822 = vmatpush1.msra.mxu0 0.0
    %1823 = vmatprep.subr.mxu0 0.0
    %1824 = vmatpush1.msra.mxu0 0.0
    %1825 = vmatprep.subr.mxu0 0.0
    %1826 = vmatpush1.msra.mxu0 0.0
    %1827 = vmatprep.subr.mxu0 0.0
    %1828 = vmatpush1.msra.mxu0 0.0
    %1829 = vmatprep.subr.mxu0 0.0
    %1830 = vmatpush1.msra.mxu0 0.0
    %1831 = vmatprep.subr.mxu0 0.0
    %1832 = vmatpush1.msra.mxu0 0.0
    %1833 = vmatprep.subr.mxu0 0.0
    %1834 = vmatpush1.msra.mxu0 0.0
    %1835 = vmatprep.subr.mxu0 0.0
    %1836 = vmatpush1.msra.mxu0 0.0
    %1837 = vmatprep.subr.mxu0 0.0
    %1838 = vmatpush1.msra.mxu0 0.0
    %1839 = vmatprep.subr.mxu0 0.0
    %1840 = vmatpush1.msra.mxu0 0.0
    %1841 = vmatprep.subr.mxu0 0.0
    %1842 = vmatpush1.msra.mxu0 0.0
    %1843 = vmatprep.subr.mxu0 0.0
    %1844 = vmatpush1.msra.mxu0 0.0
    %1845 = vmatprep.subr.mxu0 0.0
    %1846 = vmatpush1.msra.mxu0 0.0
    %1847 = vmatprep.subr.mxu0 0.0
    %1848 = vmatpush1.msra.mxu0 0.0
    %1849 = vmatprep.subr.mxu0 0.0
    %1850 = vmatpush1.msra.mxu0 0.0
    %1851 = vmatprep.subr.mxu0 0.0
    %1852 = vmatpush1.msra.mxu0 0.0
    %1853 = vmatprep.subr.mxu0 0.0
    %1854 = vmatpush1.msra.mxu0 0.0
    %1855 = vmatprep.subr.mxu0 0.0
    %1856 = vmatpush1.msra.mxu0 0.0
    %1857 = vmatprep.mubr.f32.mxu0 0.0
    %1858 = vmatmul.mubr.f32.gmra.mrb[0].mxu0 %v1791
    %v1859 = vpop.f32.mrb[0].mxu0
    %v1860 = vadd.f32 %v520, %v1859
    %v1861 = vpop.f32.mrb[0].mxu0
    %1862 = vdwg.mxu0
    %v1863 = vxor.u32 %v1860, 2147483648
    %v1864 = vmul.f32 %v1863, 1.442695
    %v1865 = vpow.pop %v1864
    %v1866 = vadd.f32 %v1865, 1.0
    %v1867 = vrcp.pop %v1866
    %v1868 = vmul.f32 1.0, %v1867
    %v1869 = vtanh.pop %v1860
    %v1870 = vmul.f32 %v1868, %v1452
    %1872 = vrot.lane.b32.xlu0 %v1869, 64
    %v1873 = vpop.permute.xlu0 %1872
    %v1875 = vmul.f32 %v1868, %v1873
    %1877 = vrot.lane.b32.xlu0 %v1875, 32
    %v1878 = vpop.permute.xlu0 %1877
    %v1880 = vadd.f32 %v1870, %v1878
    %v1881 = vtanh.pop %v1880
    %1883 = vrot.lane.b32.xlu0 %v1881, 64
    %v1884 = vpop.permute.xlu0 %1883
    %v1886 = vmul.f32 %v1868, %v1884
    %v1887 = vrot.slane %v1564, 4
    %1888 = vrot.lane.b32.xlu0 %v1887, 32
    %v1889 = vpop.permute.xlu0 %1888
    %v1890 = vsel %vm412, %v1889, 0
    %1892 = vmatprep.subr.mxu0 0.0
    %1893 = vmatpush1.msra.mxu0 %v399
    %1894 = vmatprep.subr.mxu0 0.0
    %1895 = vmatpush1.msra.mxu0 %v400
    %1896 = vmatprep.subr.mxu0 0.0
    %1897 = vmatpush1.msra.mxu0 %v401
    %1898 = vmatprep.subr.mxu0 0.0
    %1899 = vmatpush1.msra.mxu0 %v402
    %1900 = vmatprep.subr.mxu0 0.0
    %1901 = vmatpush1.msra.mxu0 0.0
    %1902 = vmatprep.subr.mxu0 0.0
    %1903 = vmatpush1.msra.mxu0 0.0
    %1904 = vmatprep.subr.mxu0 0.0
    %1905 = vmatpush1.msra.mxu0 0.0
    %1906 = vmatprep.subr.mxu0 0.0
    %1907 = vmatpush1.msra.mxu0 0.0
    %1908 = vmatprep.subr.mxu0 0.0
    %1909 = vmatpush1.msra.mxu0 0.0
    %1910 = vmatprep.subr.mxu0 0.0
    %1911 = vmatpush1.msra.mxu0 0.0
    %1912 = vmatprep.subr.mxu0 0.0
    %1913 = vmatpush1.msra.mxu0 0.0
    %1914 = vmatprep.subr.mxu0 0.0
    %1915 = vmatpush1.msra.mxu0 0.0
    %1916 = vmatprep.subr.mxu0 0.0
    %1917 = vmatpush1.msra.mxu0 0.0
    %1918 = vmatprep.subr.mxu0 0.0
    %1919 = vmatpush1.msra.mxu0 0.0
    %1920 = vmatprep.subr.mxu0 0.0
    %1921 = vmatpush1.msra.mxu0 0.0
    %1922 = vmatprep.subr.mxu0 0.0
    %1923 = vmatpush1.msra.mxu0 0.0
    %1924 = vmatprep.subr.mxu0 0.0
    %1925 = vmatpush1.msra.mxu0 0.0
    %1926 = vmatprep.subr.mxu0 0.0
    %1927 = vmatpush1.msra.mxu0 0.0
    %1928 = vmatprep.subr.mxu0 0.0
    %1929 = vmatpush1.msra.mxu0 0.0
    %1930 = vmatprep.subr.mxu0 0.0
    %1931 = vmatpush1.msra.mxu0 0.0
    %1932 = vmatprep.subr.mxu0 0.0
    %1933 = vmatpush1.msra.mxu0 0.0
    %1934 = vmatprep.subr.mxu0 0.0
    %1935 = vmatpush1.msra.mxu0 0.0
    %1936 = vmatprep.subr.mxu0 0.0
    %1937 = vmatpush1.msra.mxu0 0.0
    %1938 = vmatprep.subr.mxu0 0.0
    %1939 = vmatpush1.msra.mxu0 0.0
    %1940 = vmatprep.subr.mxu0 0.0
    %1941 = vmatpush1.msra.mxu0 0.0
    %1942 = vmatprep.subr.mxu0 0.0
    %1943 = vmatpush1.msra.mxu0 0.0
    %1944 = vmatprep.subr.mxu0 0.0
    %1945 = vmatpush1.msra.mxu0 0.0
    %1946 = vmatprep.subr.mxu0 0.0
    %1947 = vmatpush1.msra.mxu0 0.0
    %1948 = vmatprep.subr.mxu0 0.0
    %1949 = vmatpush1.msra.mxu0 0.0
    %1950 = vmatprep.subr.mxu0 0.0
    %1951 = vmatpush1.msra.mxu0 0.0
    %1952 = vmatprep.subr.mxu0 0.0
    %1953 = vmatpush1.msra.mxu0 0.0
    %1954 = vmatprep.subr.mxu0 0.0
    %1955 = vmatpush1.msra.mxu0 0.0
    %1956 = vmatprep.mubr.f32.mxu0 0.0
    %1957 = vmatmul.mubr.f32.gmra.mrb[0].mxu0 %v1890
    %v1958 = vpop.f32.mrb[0].mxu0
    %v1959 = vadd.f32 0.0, %v1958
    %v1960 = vpop.f32.mrb[0].mxu0
    %1961 = vdwg.mxu0
    %v1963 = vrot.slane %v1959, 2
    %v1965 = vadd.f32 %v378, %v1963
    %v1966 = vxor.u32 %v1965, 2147483648
    %v1967 = vmul.f32 %v1966, 1.442695
    %v1968 = vpow.pop %v1967
    %v1969 = vadd.f32 %v1968, 1.0
    %v1970 = vrcp.pop %v1969
    %v1971 = vmul.f32 1.0, %v1970
    %v1972 = vtanh.pop %v1965
    %v1974 = vrot.slane %v1558, 6
    %v1976 = vmul.f32 %v1971, %v1974
    %1978 = vrot.lane.b32.xlu0 %v1972, 64
    %v1979 = vpop.permute.xlu0 %1978
    %v1981 = vmul.f32 %v1971, %v1979
    %1983 = vrot.lane.b32.xlu0 %v1981, 32
    %v1984 = vpop.permute.xlu0 %1983
    %v1986 = vadd.f32 %v1976, %v1984
    %v1987 = vtanh.pop %v1986
    %1989 = vrot.lane.b32.xlu0 %v1987, 64
    %v1990 = vpop.permute.xlu0 %1989
    %v1992 = vmul.f32 %v1971, %v1990
    %1994 = vrot.lane.b32.xlu0 %v1992, 32
    %v1995 = vpop.permute.xlu0 %1994
    %v1998 = vrot.slane %v1672, 2
    %1999 = vrot.lane.b32.xlu0 %v1998, 64
    %v2000 = vpop.permute.xlu0 %1999
    %v2002 = vsel %vm412, %v1995, %v2000
    %v2004 = vrot.slane %v2002, 6
    %v2005 = vsel %vm522, %v2004, 0
    %2007 = vmatprep.subr.mxu0 0.0
    %2008 = vmatpush1.msra.mxu0 %v403
    %2009 = vmatprep.subr.mxu0 0.0
    %2010 = vmatpush1.msra.mxu0 %v404
    %2011 = vmatprep.subr.mxu0 0.0
    %2012 = vmatpush1.msra.mxu0 %v405
    %2013 = vmatprep.subr.mxu0 0.0
    %2014 = vmatpush1.msra.mxu0 %v406
    %2015 = vmatprep.subr.mxu0 0.0
    %2016 = vmatpush1.msra.mxu0 %v407
    %2017 = vmatprep.subr.mxu0 0.0
    %2018 = vmatpush1.msra.mxu0 %v408
    %2019 = vmatprep.subr.mxu0 0.0
    %2020 = vmatpush1.msra.mxu0 %v409
    %2021 = vmatprep.subr.mxu0 0.0
    %2022 = vmatpush1.msra.mxu0 %v410
    %2023 = vmatprep.subr.mxu0 0.0
    %2024 = vmatpush1.msra.mxu0 0.0
    %2025 = vmatprep.subr.mxu0 0.0
    %2026 = vmatpush1.msra.mxu0 0.0
    %2027 = vmatprep.subr.mxu0 0.0
    %2028 = vmatpush1.msra.mxu0 0.0
    %2029 = vmatprep.subr.mxu0 0.0
    %2030 = vmatpush1.msra.mxu0 0.0
    %2031 = vmatprep.subr.mxu0 0.0
    %2032 = vmatpush1.msra.mxu0 0.0
    %2033 = vmatprep.subr.mxu0 0.0
    %2034 = vmatpush1.msra.mxu0 0.0
    %2035 = vmatprep.subr.mxu0 0.0
    %2036 = vmatpush1.msra.mxu0 0.0
    %2037 = vmatprep.subr.mxu0 0.0
    %2038 = vmatpush1.msra.mxu0 0.0
    %2039 = vmatprep.subr.mxu0 0.0
    %2040 = vmatpush1.msra.mxu0 0.0
    %2041 = vmatprep.subr.mxu0 0.0
    %2042 = vmatpush1.msra.mxu0 0.0
    %2043 = vmatprep.subr.mxu0 0.0
    %2044 = vmatpush1.msra.mxu0 0.0
    %2045 = vmatprep.subr.mxu0 0.0
    %2046 = vmatpush1.msra.mxu0 0.0
    %2047 = vmatprep.subr.mxu0 0.0
    %2048 = vmatpush1.msra.mxu0 0.0
    %2049 = vmatprep.subr.mxu0 0.0
    %2050 = vmatpush1.msra.mxu0 0.0
    %2051 = vmatprep.subr.mxu0 0.0
    %2052 = vmatpush1.msra.mxu0 0.0
    %2053 = vmatprep.subr.mxu0 0.0
    %2054 = vmatpush1.msra.mxu0 0.0
    %2055 = vmatprep.subr.mxu0 0.0
    %2056 = vmatpush1.msra.mxu0 0.0
    %2057 = vmatprep.subr.mxu0 0.0
    %2058 = vmatpush1.msra.mxu0 0.0
    %2059 = vmatprep.subr.mxu0 0.0
    %2060 = vmatpush1.msra.mxu0 0.0
    %2061 = vmatprep.subr.mxu0 0.0
    %2062 = vmatpush1.msra.mxu0 0.0
    %2063 = vmatprep.subr.mxu0 0.0
    %2064 = vmatpush1.msra.mxu0 0.0
    %2065 = vmatprep.subr.mxu0 0.0
    %2066 = vmatpush1.msra.mxu0 0.0
    %2067 = vmatprep.subr.mxu0 0.0
    %2068 = vmatpush1.msra.mxu0 0.0
    %2069 = vmatprep.subr.mxu0 0.0
    %2070 = vmatpush1.msra.mxu0 0.0
    %2071 = vmatprep.mubr.f32.mxu0 0.0
    %2072 = vmatmul.mubr.f32.gmra.mrb[0].mxu0 %v2005
    %v2073 = vpop.f32.mrb[0].mxu0
    %v2074 = vadd.f32 %v724, %v2073
    %v2075 = vpop.f32.mrb[0].mxu0
    %2076 = vdwg.mxu0
    %v2077 = vxor.u32 %v2074, 2147483648
    %v2078 = vmul.f32 %v2077, 1.442695
    %v2079 = vpow.pop %v2078
    %v2080 = vadd.f32 %v2079, 1.0
    %v2081 = vrcp.pop %v2080
    %v2082 = vmul.f32 1.0, %v2081
    %v2083 = vtanh.pop %v2074
    %v2084 = vmul.f32 %v2082, %v1666
    %2086 = vrot.lane.b32.xlu0 %v2083, 64
    %v2087 = vpop.permute.xlu0 %2086
    %v2089 = vmul.f32 %v2082, %v2087
    %2091 = vrot.lane.b32.xlu0 %v2089, 32
    %v2092 = vpop.permute.xlu0 %2091
    %v2094 = vadd.f32 %v2084, %v2092
    %v2095 = vtanh.pop %v2094
    %2097 = vrot.lane.b32.xlu0 %v2095, 64
    %v2098 = vpop.permute.xlu0 %2097
    %v2100 = vmul.f32 %v2082, %v2098
    %v2101 = vrot.slane %v1778, 6
    %2102 = vrot.lane.b32.xlu0 %v2101, 32
    %v2103 = vpop.permute.xlu0 %2102
    %v2104 = vsel %vm412, %v2103, 0
    %2106 = vmatprep.subr.mxu0 0.0
    %2107 = vmatpush1.msra.mxu0 %v386
    %2108 = vmatprep.subr.mxu0 0.0
    %2109 = vmatpush1.msra.mxu0 %v387
    %2110 = vmatprep.subr.mxu0 0.0
    %2111 = vmatpush1.msra.mxu0 %v388
    %2112 = vmatprep.subr.mxu0 0.0
    %2113 = vmatpush1.msra.mxu0 %v389
    %2114 = vmatprep.subr.mxu0 0.0
    %2115 = vmatpush1.msra.mxu0 0.0
    %2116 = vmatprep.subr.mxu0 0.0
    %2117 = vmatpush1.msra.mxu0 0.0
    %2118 = vmatprep.subr.mxu0 0.0
    %2119 = vmatpush1.msra.mxu0 0.0
    %2120 = vmatprep.subr.mxu0 0.0
    %2121 = vmatpush1.msra.mxu0 0.0
    %2122 = vmatprep.subr.mxu0 0.0
    %2123 = vmatpush1.msra.mxu0 0.0
    %2124 = vmatprep.subr.mxu0 0.0
    %2125 = vmatpush1.msra.mxu0 0.0
    %2126 = vmatprep.subr.mxu0 0.0
    %2127 = vmatpush1.msra.mxu0 0.0
    %2128 = vmatprep.subr.mxu0 0.0
    %2129 = vmatpush1.msra.mxu0 0.0
    %2130 = vmatprep.subr.mxu0 0.0
    %2131 = vmatpush1.msra.mxu0 0.0
    %2132 = vmatprep.subr.mxu0 0.0
    %2133 = vmatpush1.msra.mxu0 0.0
    %2134 = vmatprep.subr.mxu0 0.0
    %2135 = vmatpush1.msra.mxu0 0.0
    %2136 = vmatprep.subr.mxu0 0.0
    %2137 = vmatpush1.msra.mxu0 0.0
    %2138 = vmatprep.subr.mxu0 0.0
    %2139 = vmatpush1.msra.mxu0 0.0
    %2140 = vmatprep.subr.mxu0 0.0
    %2141 = vmatpush1.msra.mxu0 0.0
    %2142 = vmatprep.subr.mxu0 0.0
    %2143 = vmatpush1.msra.mxu0 0.0
    %2144 = vmatprep.subr.mxu0 0.0
    %2145 = vmatpush1.msra.mxu0 0.0
    %2146 = vmatprep.subr.mxu0 0.0
    %2147 = vmatpush1.msra.mxu0 0.0
    %2148 = vmatprep.subr.mxu0 0.0
    %2149 = vmatpush1.msra.mxu0 0.0
    %2150 = vmatprep.subr.mxu0 0.0
    %2151 = vmatpush1.msra.mxu0 0.0
    %2152 = vmatprep.subr.mxu0 0.0
    %2153 = vmatpush1.msra.mxu0 0.0
    %2154 = vmatprep.subr.mxu0 0.0
    %2155 = vmatpush1.msra.mxu0 0.0
    %2156 = vmatprep.subr.mxu0 0.0
    %2157 = vmatpush1.msra.mxu0 0.0
    %2158 = vmatprep.subr.mxu0 0.0
    %2159 = vmatpush1.msra.mxu0 0.0
    %2160 = vmatprep.subr.mxu0 0.0
    %2161 = vmatpush1.msra.mxu0 0.0
    %2162 = vmatprep.subr.mxu0 0.0
    %2163 = vmatpush1.msra.mxu0 0.0
    %2164 = vmatprep.subr.mxu0 0.0
    %2165 = vmatpush1.msra.mxu0 0.0
    %2166 = vmatprep.subr.mxu0 0.0
    %2167 = vmatpush1.msra.mxu0 0.0
    %2168 = vmatprep.subr.mxu0 0.0
    %2169 = vmatpush1.msra.mxu0 0.0
    %2170 = vmatprep.mubr.f32.mxu0 0.0
    %2171 = vmatmul.mubr.f32.gmra.mrb[0].mxu0 %v2104
    %v2172 = vpop.f32.mrb[0].mxu0
    %v2173 = vadd.f32 0.0, %v2172
    %v2174 = vpop.f32.mrb[0].mxu0
    %2175 = vdwg.mxu0
    %v2176 = vadd.f32 %v292, %v2173
    %v2177 = vxor.u32 %v2176, 2147483648
    %v2178 = vmul.f32 %v2177, 1.442695
    %v2179 = vpow.pop %v2178
    %v2180 = vadd.f32 %v2179, 1.0
    %v2181 = vrcp.pop %v2180
    %v2182 = vmul.f32 1.0, %v2181
    %v2183 = vtanh.pop %v2176
    %v2185 = vrot.slane %v1772, 6
    %v2187 = vmul.f32 %v2182, %v2185
    %2189 = vrot.lane.b32.xlu0 %v2183, 64
    %v2190 = vpop.permute.xlu0 %2189
    %v2192 = vmul.f32 %v2182, %v2190
    %2194 = vrot.lane.b32.xlu0 %v2192, 32
    %v2195 = vpop.permute.xlu0 %2194
    %v2197 = vadd.f32 %v2187, %v2195
    %v2198 = vtanh.pop %v2197
    %2200 = vrot.lane.b32.xlu0 %v2198, 64
    %v2201 = vpop.permute.xlu0 %2200
    %v2203 = vmul.f32 %v2182, %v2201
    %2205 = vrot.lane.b32.xlu0 %v2203, 32
    %v2206 = vpop.permute.xlu0 %2205
    %2209 = vrot.lane.b32.xlu0 %v1886, 64
    %v2210 = vpop.permute.xlu0 %2209
    %v2212 = vsel %vm412, %v2206, %v2210
    %v2214 = vsel %vm522, %v2212, 0
    %2216 = vmatprep.subr.mxu0 0.0
    %2217 = vmatpush1.msra.mxu0 %v390
    %2218 = vmatprep.subr.mxu0 0.0
    %2219 = vmatpush1.msra.mxu0 %v391
    %2220 = vmatprep.subr.mxu0 0.0
    %2221 = vmatpush1.msra.mxu0 %v392
    %2222 = vmatprep.subr.mxu0 0.0
    %2223 = vmatpush1.msra.mxu0 %v393
    %2224 = vmatprep.subr.mxu0 0.0
    %2225 = vmatpush1.msra.mxu0 %v394
    %2226 = vmatprep.subr.mxu0 0.0
    %2227 = vmatpush1.msra.mxu0 %v395
    %2228 = vmatprep.subr.mxu0 0.0
    %2229 = vmatpush1.msra.mxu0 %v396
    %2230 = vmatprep.subr.mxu0 0.0
    %2231 = vmatpush1.msra.mxu0 %v397
    %2232 = vmatprep.subr.mxu0 0.0
    %2233 = vmatpush1.msra.mxu0 0.0
    %2234 = vmatprep.subr.mxu0 0.0
    %2235 = vmatpush1.msra.mxu0 0.0
    %2236 = vmatprep.subr.mxu0 0.0
    %2237 = vmatpush1.msra.mxu0 0.0
    %2238 = vmatprep.subr.mxu0 0.0
    %2239 = vmatpush1.msra.mxu0 0.0
    %2240 = vmatprep.subr.mxu0 0.0
    %2241 = vmatpush1.msra.mxu0 0.0
    %2242 = vmatprep.subr.mxu0 0.0
    %2243 = vmatpush1.msra.mxu0 0.0
    %2244 = vmatprep.subr.mxu0 0.0
    %2245 = vmatpush1.msra.mxu0 0.0
    %2246 = vmatprep.subr.mxu0 0.0
    %2247 = vmatpush1.msra.mxu0 0.0
    %2248 = vmatprep.subr.mxu0 0.0
    %2249 = vmatpush1.msra.mxu0 0.0
    %2250 = vmatprep.subr.mxu0 0.0
    %2251 = vmatpush1.msra.mxu0 0.0
    %2252 = vmatprep.subr.mxu0 0.0
    %2253 = vmatpush1.msra.mxu0 0.0
    %2254 = vmatprep.subr.mxu0 0.0
    %2255 = vmatpush1.msra.mxu0 0.0
    %2256 = vmatprep.subr.mxu0 0.0
    %2257 = vmatpush1.msra.mxu0 0.0
    %2258 = vmatprep.subr.mxu0 0.0
    %2259 = vmatpush1.msra.mxu0 0.0
    %2260 = vmatprep.subr.mxu0 0.0
    %2261 = vmatpush1.msra.mxu0 0.0
    %2262 = vmatprep.subr.mxu0 0.0
    %2263 = vmatpush1.msra.mxu0 0.0
    %2264 = vmatprep.subr.mxu0 0.0
    %2265 = vmatpush1.msra.mxu0 0.0
    %2266 = vmatprep.subr.mxu0 0.0
    %2267 = vmatpush1.msra.mxu0 0.0
    %2268 = vmatprep.subr.mxu0 0.0
    %2269 = vmatpush1.msra.mxu0 0.0
    %2270 = vmatprep.subr.mxu0 0.0
    %2271 = vmatpush1.msra.mxu0 0.0
    %2272 = vmatprep.subr.mxu0 0.0
    %2273 = vmatpush1.msra.mxu0 0.0
    %2274 = vmatprep.subr.mxu0 0.0
    %2275 = vmatpush1.msra.mxu0 0.0
    %2276 = vmatprep.subr.mxu0 0.0
    %2277 = vmatpush1.msra.mxu0 0.0
    %2278 = vmatprep.subr.mxu0 0.0
    %2279 = vmatpush1.msra.mxu0 0.0
    %2280 = vmatprep.mubr.f32.mxu0 0.0
    %2281 = vmatmul.mubr.f32.gmra.mrb[0].mxu0 %v2214
    %v2282 = vpop.f32.mrb[0].mxu0
    %v2283 = vadd.f32 %v520, %v2282
    %v2284 = vpop.f32.mrb[0].mxu0
    %2285 = vdwg.mxu0
    %v2286 = vxor.u32 %v2283, 2147483648
    %v2287 = vmul.f32 %v2286, 1.442695
    %v2288 = vpow.pop %v2287
    %v2289 = vadd.f32 %v2288, 1.0
    %v2290 = vrcp.pop %v2289
    %v2291 = vmul.f32 1.0, %v2290
    %v2292 = vtanh.pop %v2283
    %v2293 = vmul.f32 %v2291, %v1880
    %2295 = vrot.lane.b32.xlu0 %v2292, 64
    %v2296 = vpop.permute.xlu0 %2295
    %v2298 = vmul.f32 %v2291, %v2296
    %2300 = vrot.lane.b32.xlu0 %v2298, 32
    %v2301 = vpop.permute.xlu0 %2300
    %v2303 = vadd.f32 %v2293, %v2301
    %v2304 = vtanh.pop %v2303
    %2306 = vrot.lane.b32.xlu0 %v2304, 64
    %v2307 = vpop.permute.xlu0 %2306
    %v2309 = vmul.f32 %v2291, %v2307
    %v2310 = vrot.slane %v1992, 6
    %2311 = vrot.lane.b32.xlu0 %v2310, 32
    %v2312 = vpop.permute.xlu0 %2311
    %v2313 = vsel %vm412, %v2312, 0
    %2315 = vmatprep.subr.mxu0 0.0
    %2316 = vmatpush1.msra.mxu0 %v399
    %2317 = vmatprep.subr.mxu0 0.0
    %2318 = vmatpush1.msra.mxu0 %v400
    %2319 = vmatprep.subr.mxu0 0.0
    %2320 = vmatpush1.msra.mxu0 %v401
    %2321 = vmatprep.subr.mxu0 0.0
    %2322 = vmatpush1.msra.mxu0 %v402
    %2323 = vmatprep.subr.mxu0 0.0
    %2324 = vmatpush1.msra.mxu0 0.0
    %2325 = vmatprep.subr.mxu0 0.0
    %2326 = vmatpush1.msra.mxu0 0.0
    %2327 = vmatprep.subr.mxu0 0.0
    %2328 = vmatpush1.msra.mxu0 0.0
    %2329 = vmatprep.subr.mxu0 0.0
    %2330 = vmatpush1.msra.mxu0 0.0
    %2331 = vmatprep.subr.mxu0 0.0
    %2332 = vmatpush1.msra.mxu0 0.0
    %2333 = vmatprep.subr.mxu0 0.0
    %2334 = vmatpush1.msra.mxu0 0.0
    %2335 = vmatprep.subr.mxu0 0.0
    %2336 = vmatpush1.msra.mxu0 0.0
    %2337 = vmatprep.subr.mxu0 0.0
    %2338 = vmatpush1.msra.mxu0 0.0
    %2339 = vmatprep.subr.mxu0 0.0
    %2340 = vmatpush1.msra.mxu0 0.0
    %2341 = vmatprep.subr.mxu0 0.0
    %2342 = vmatpush1.msra.mxu0 0.0
    %2343 = vmatprep.subr.mxu0 0.0
    %2344 = vmatpush1.msra.mxu0 0.0
    %2345 = vmatprep.subr.mxu0 0.0
    %2346 = vmatpush1.msra.mxu0 0.0
    %2347 = vmatprep.subr.mxu0 0.0
    %2348 = vmatpush1.msra.mxu0 0.0
    %2349 = vmatprep.subr.mxu0 0.0
    %2350 = vmatpush1.msra.mxu0 0.0
    %2351 = vmatprep.subr.mxu0 0.0
    %2352 = vmatpush1.msra.mxu0 0.0
    %2353 = vmatprep.subr.mxu0 0.0
    %2354 = vmatpush1.msra.mxu0 0.0
    %2355 = vmatprep.subr.mxu0 0.0
    %2356 = vmatpush1.msra.mxu0 0.0
    %2357 = vmatprep.subr.mxu0 0.0
    %2358 = vmatpush1.msra.mxu0 0.0
    %2359 = vmatprep.subr.mxu0 0.0
    %2360 = vmatpush1.msra.mxu0 0.0
    %2361 = vmatprep.subr.mxu0 0.0
    %2362 = vmatpush1.msra.mxu0 0.0
    %2363 = vmatprep.subr.mxu0 0.0
    %2364 = vmatpush1.msra.mxu0 0.0
    %2365 = vmatprep.subr.mxu0 0.0
    %2366 = vmatpush1.msra.mxu0 0.0
    %2367 = vmatprep.subr.mxu0 0.0
    %2368 = vmatpush1.msra.mxu0 0.0
    %2369 = vmatprep.subr.mxu0 0.0
    %2370 = vmatpush1.msra.mxu0 0.0
    %2371 = vmatprep.subr.mxu0 0.0
    %2372 = vmatpush1.msra.mxu0 0.0
    %2373 = vmatprep.subr.mxu0 0.0
    %2374 = vmatpush1.msra.mxu0 0.0
    %2375 = vmatprep.subr.mxu0 0.0
    %2376 = vmatpush1.msra.mxu0 0.0
    %2377 = vmatprep.subr.mxu0 0.0
    %2378 = vmatpush1.msra.mxu0 0.0
    %2379 = vmatprep.mubr.f32.mxu0 0.0
    %2380 = vmatmul.mubr.f32.gmra.mrb[0].mxu0 %v2313
    %v2381 = vpop.f32.mrb[0].mxu0
    %v2382 = vadd.f32 0.0, %v2381
    %v2383 = vpop.f32.mrb[0].mxu0
    %2384 = vdwg.mxu0
    %v2385 = vadd.f32 %v383, %v2382
    %v2386 = vxor.u32 %v2385, 2147483648
    %v2387 = vmul.f32 %v2386, 1.442695
    %v2388 = vpow.pop %v2387
    %v2389 = vadd.f32 %v2388, 1.0
    %v2390 = vrcp.pop %v2389
    %v2391 = vmul.f32 1.0, %v2390
    %v2392 = vtanh.pop %v2385
    %v2394 = vrot.slane %v1986, 6
    %v2396 = vmul.f32 %v2391, %v2394
    %2398 = vrot.lane.b32.xlu0 %v2392, 64
    %v2399 = vpop.permute.xlu0 %2398
    %v2401 = vmul.f32 %v2391, %v2399
    %2403 = vrot.lane.b32.xlu0 %v2401, 32
    %v2404 = vpop.permute.xlu0 %2403
    %v2406 = vadd.f32 %v2396, %v2404
    %v2407 = vtanh.pop %v2406
    %2409 = vrot.lane.b32.xlu0 %v2407, 64
    %v2410 = vpop.permute.xlu0 %2409
    %v2412 = vmul.f32 %v2391, %v2410
    %2414 = vrot.lane.b32.xlu0 %v2412, 32
    %v2415 = vpop.permute.xlu0 %2414
    %2418 = vrot.lane.b32.xlu0 %v2100, 64
    %v2419 = vpop.permute.xlu0 %2418
    %v2421 = vsel %vm412, %v2415, %v2419
    %v2423 = vsel %vm522, %v2421, 0
    %2425 = vmatprep.subr.mxu0 0.0
    %2426 = vmatpush1.msra.mxu0 %v403
    %2427 = vmatprep.subr.mxu0 0.0
    %2428 = vmatpush1.msra.mxu0 %v404
    %2429 = vmatprep.subr.mxu0 0.0
    %2430 = vmatpush1.msra.mxu0 %v405
    %2431 = vmatprep.subr.mxu0 0.0
    %2432 = vmatpush1.msra.mxu0 %v406
    %2433 = vmatprep.subr.mxu0 0.0
    %2434 = vmatpush1.msra.mxu0 %v407
    %2435 = vmatprep.subr.mxu0 0.0
    %2436 = vmatpush1.msra.mxu0 %v408
    %2437 = vmatprep.subr.mxu0 0.0
    %2438 = vmatpush1.msra.mxu0 %v409
    %2439 = vmatprep.subr.mxu0 0.0
    %2440 = vmatpush1.msra.mxu0 %v410
    %2441 = vmatprep.subr.mxu0 0.0
    %2442 = vmatpush1.msra.mxu0 0.0
    %2443 = vmatprep.subr.mxu0 0.0
    %2444 = vmatpush1.msra.mxu0 0.0
    %2445 = vmatprep.subr.mxu0 0.0
    %2446 = vmatpush1.msra.mxu0 0.0
    %2447 = vmatprep.subr.mxu0 0.0
    %2448 = vmatpush1.msra.mxu0 0.0
    %2449 = vmatprep.subr.mxu0 0.0
    %2450 = vmatpush1.msra.mxu0 0.0
    %2451 = vmatprep.subr.mxu0 0.0
    %2452 = vmatpush1.msra.mxu0 0.0
    %2453 = vmatprep.subr.mxu0 0.0
    %2454 = vmatpush1.msra.mxu0 0.0
    %2455 = vmatprep.subr.mxu0 0.0
    %2456 = vmatpush1.msra.mxu0 0.0
    %2457 = vmatprep.subr.mxu0 0.0
    %2458 = vmatpush1.msra.mxu0 0.0
    %2459 = vmatprep.subr.mxu0 0.0
    %2460 = vmatpush1.msra.mxu0 0.0
    %2461 = vmatprep.subr.mxu0 0.0
    %2462 = vmatpush1.msra.mxu0 0.0
    %2463 = vmatprep.subr.mxu0 0.0
    %2464 = vmatpush1.msra.mxu0 0.0
    %2465 = vmatprep.subr.mxu0 0.0
    %2466 = vmatpush1.msra.mxu0 0.0
    %2467 = vmatprep.subr.mxu0 0.0
    %2468 = vmatpush1.msra.mxu0 0.0
    %2469 = vmatprep.subr.mxu0 0.0
    %2470 = vmatpush1.msra.mxu0 0.0
    %2471 = vmatprep.subr.mxu0 0.0
    %2472 = vmatpush1.msra.mxu0 0.0
    %2473 = vmatprep.subr.mxu0 0.0
    %2474 = vmatpush1.msra.mxu0 0.0
    %2475 = vmatprep.subr.mxu0 0.0
    %2476 = vmatpush1.msra.mxu0 0.0
    %2477 = vmatprep.subr.mxu0 0.0
    %2478 = vmatpush1.msra.mxu0 0.0
    %2479 = vmatprep.subr.mxu0 0.0
    %2480 = vmatpush1.msra.mxu0 0.0
    %2481 = vmatprep.subr.mxu0 0.0
    %2482 = vmatpush1.msra.mxu0 0.0
    %2483 = vmatprep.subr.mxu0 0.0
    %2484 = vmatpush1.msra.mxu0 0.0
    %2485 = vmatprep.subr.mxu0 0.0
    %2486 = vmatpush1.msra.mxu0 0.0
    %2487 = vmatprep.subr.mxu0 0.0
    %2488 = vmatpush1.msra.mxu0 0.0
    %2489 = vmatprep.mubr.f32.mxu0 0.0
    %2490 = vmatmul.mubr.f32.gmra.mrb[0].mxu0 %v2423
    %v2491 = vpop.f32.mrb[0].mxu0
    %v2492 = vadd.f32 %v724, %v2491
    %v2493 = vpop.f32.mrb[0].mxu0
    %2494 = vdwg.mxu0
    %v2495 = vxor.u32 %v2492, 2147483648
    %v2496 = vmul.f32 %v2495, 1.442695
    %v2497 = vpow.pop %v2496
    %v2498 = vadd.f32 %v2497, 1.0
    %v2499 = vrcp.pop %v2498
    %v2500 = vmul.f32 1.0, %v2499
    %v2501 = vtanh.pop %v2492
    %v2502 = vmul.f32 %v2500, %v2094
    %2504 = vrot.lane.b32.xlu0 %v2501, 64
    %v2505 = vpop.permute.xlu0 %2504
    %v2507 = vmul.f32 %v2500, %v2505
    %2509 = vrot.lane.b32.xlu0 %v2507, 32
    %v2510 = vpop.permute.xlu0 %2509
    %v2512 = vadd.f32 %v2502, %v2510
    %v2513 = vtanh.pop %v2512
    %2515 = vrot.lane.b32.xlu0 %v2513, 64
    %v2516 = vpop.permute.xlu0 %2515
    %v2518 = vmul.f32 %v2500, %v2516
    %v2519 = vsel %vm412, %v2206, 0
    %2521 = vmatprep.subr.mxu0 0.0
    %2522 = vmatpush1.msra.mxu0 %v386
    %2523 = vmatprep.subr.mxu0 0.0
    %2524 = vmatpush1.msra.mxu0 %v387
    %2525 = vmatprep.subr.mxu0 0.0
    %2526 = vmatpush1.msra.mxu0 %v388
    %2527 = vmatprep.subr.mxu0 0.0
    %2528 = vmatpush1.msra.mxu0 %v389
    %2529 = vmatprep.subr.mxu0 0.0
    %2530 = vmatpush1.msra.mxu0 0.0
    %2531 = vmatprep.subr.mxu0 0.0
    %2532 = vmatpush1.msra.mxu0 0.0
    %2533 = vmatprep.subr.mxu0 0.0
    %2534 = vmatpush1.msra.mxu0 0.0
    %2535 = vmatprep.subr.mxu0 0.0
    %2536 = vmatpush1.msra.mxu0 0.0
    %2537 = vmatprep.subr.mxu0 0.0
    %2538 = vmatpush1.msra.mxu0 0.0
    %2539 = vmatprep.subr.mxu0 0.0
    %2540 = vmatpush1.msra.mxu0 0.0
    %2541 = vmatprep.subr.mxu0 0.0
    %2542 = vmatpush1.msra.mxu0 0.0
    %2543 = vmatprep.subr.mxu0 0.0
    %2544 = vmatpush1.msra.mxu0 0.0
    %2545 = vmatprep.subr.mxu0 0.0
    %2546 = vmatpush1.msra.mxu0 0.0
    %2547 = vmatprep.subr.mxu0 0.0
    %2548 = vmatpush1.msra.mxu0 0.0
    %2549 = vmatprep.subr.mxu0 0.0
    %2550 = vmatpush1.msra.mxu0 0.0
    %2551 = vmatprep.subr.mxu0 0.0
    %2552 = vmatpush1.msra.mxu0 0.0
    %2553 = vmatprep.subr.mxu0 0.0
    %2554 = vmatpush1.msra.mxu0 0.0
    %2555 = vmatprep.subr.mxu0 0.0
    %2556 = vmatpush1.msra.mxu0 0.0
    %2557 = vmatprep.subr.mxu0 0.0
    %2558 = vmatpush1.msra.mxu0 0.0
    %2559 = vmatprep.subr.mxu0 0.0
    %2560 = vmatpush1.msra.mxu0 0.0
    %2561 = vmatprep.subr.mxu0 0.0
    %2562 = vmatpush1.msra.mxu0 0.0
    %2563 = vmatprep.subr.mxu0 0.0
    %2564 = vmatpush1.msra.mxu0 0.0
    %2565 = vmatprep.subr.mxu0 0.0
    %2566 = vmatpush1.msra.mxu0 0.0
    %2567 = vmatprep.subr.mxu0 0.0
    %2568 = vmatpush1.msra.mxu0 0.0
    %2569 = vmatprep.subr.mxu0 0.0
    %2570 = vmatpush1.msra.mxu0 0.0
    %2571 = vmatprep.subr.mxu0 0.0
    %2572 = vmatpush1.msra.mxu0 0.0
    %2573 = vmatprep.subr.mxu0 0.0
    %2574 = vmatpush1.msra.mxu0 0.0
    %2575 = vmatprep.subr.mxu0 0.0
    %2576 = vmatpush1.msra.mxu0 0.0
    %2577 = vmatprep.subr.mxu0 0.0
    %2578 = vmatpush1.msra.mxu0 0.0
    %2579 = vmatprep.subr.mxu0 0.0
    %2580 = vmatpush1.msra.mxu0 0.0
    %2581 = vmatprep.subr.mxu0 0.0
    %2582 = vmatpush1.msra.mxu0 0.0
    %2583 = vmatprep.subr.mxu0 0.0
    %2584 = vmatpush1.msra.mxu0 0.0
    %2585 = vmatprep.mubr.f32.mxu0 0.0
    %2586 = vmatmul.mubr.f32.gmra.mrb[0].mxu0 %v2519
    %v2587 = vpop.f32.mrb[0].mxu0
    %v2588 = vadd.f32 0.0, %v2587
    %v2589 = vpop.f32.mrb[0].mxu0
    %2590 = vdwg.mxu0
    %v2592 = vrot.slane %v2588, 6
    %v2594 = vadd.f32 %v292, %v2592
    %v2595 = vxor.u32 %v2594, 2147483648
    %v2596 = vmul.f32 %v2595, 1.442695
    %v2597 = vpow.pop %v2596
    %v2598 = vadd.f32 %v2597, 1.0
    %v2599 = vrcp.pop %v2598
    %v2600 = vmul.f32 1.0, %v2599
    %v2601 = vtanh.pop %v2594
    %v2603 = vrot.slane %v2197, 6
    %v2605 = vmul.f32 %v2600, %v2603
    %2607 = vrot.lane.b32.xlu0 %v2601, 64
    %v2608 = vpop.permute.xlu0 %2607
    %v2610 = vmul.f32 %v2600, %v2608
    %2612 = vrot.lane.b32.xlu0 %v2610, 32
    %v2613 = vpop.permute.xlu0 %2612
    %v2615 = vadd.f32 %v2605, %v2613
    %v2616 = vtanh.pop %v2615
    %2618 = vrot.lane.b32.xlu0 %v2616, 64
    %v2619 = vpop.permute.xlu0 %2618
    %v2621 = vmul.f32 %v2600, %v2619
    %2623 = vrot.lane.b32.xlu0 %v2621, 32
    %v2624 = vpop.permute.xlu0 %2623
    %v2627 = vrot.slane %v2309, 6
    %2628 = vrot.lane.b32.xlu0 %v2627, 64
    %v2629 = vpop.permute.xlu0 %2628
    %v2631 = vsel %vm412, %v2624, %v2629
    %v2633 = vrot.slane %v2631, 2
    %v2634 = vsel %vm522, %v2633, 0
    %2636 = vmatprep.subr.mxu0 0.0
    %2637 = vmatpush1.msra.mxu0 %v390
    %2638 = vmatprep.subr.mxu0 0.0
    %2639 = vmatpush1.msra.mxu0 %v391
    %2640 = vmatprep.subr.mxu0 0.0
    %2641 = vmatpush1.msra.mxu0 %v392
    %2642 = vmatprep.subr.mxu0 0.0
    %2643 = vmatpush1.msra.mxu0 %v393
    %2644 = vmatprep.subr.mxu0 0.0
    %2645 = vmatpush1.msra.mxu0 %v394
    %2646 = vmatprep.subr.mxu0 0.0
    %2647 = vmatpush1.msra.mxu0 %v395
    %2648 = vmatprep.subr.mxu0 0.0
    %2649 = vmatpush1.msra.mxu0 %v396
    %2650 = vmatprep.subr.mxu0 0.0
    %2651 = vmatpush1.msra.mxu0 %v397
    %2652 = vmatprep.subr.mxu0 0.0
    %2653 = vmatpush1.msra.mxu0 0.0
    %2654 = vmatprep.subr.mxu0 0.0
    %2655 = vmatpush1.msra.mxu0 0.0
    %2656 = vmatprep.subr.mxu0 0.0
    %2657 = vmatpush1.msra.mxu0 0.0
    %2658 = vmatprep.subr.mxu0 0.0
    %2659 = vmatpush1.msra.mxu0 0.0
    %2660 = vmatprep.subr.mxu0 0.0
    %2661 = vmatpush1.msra.mxu0 0.0
    %2662 = vmatprep.subr.mxu0 0.0
    %2663 = vmatpush1.msra.mxu0 0.0
    %2664 = vmatprep.subr.mxu0 0.0
    %2665 = vmatpush1.msra.mxu0 0.0
    %2666 = vmatprep.subr.mxu0 0.0
    %2667 = vmatpush1.msra.mxu0 0.0
    %2668 = vmatprep.subr.mxu0 0.0
    %2669 = vmatpush1.msra.mxu0 0.0
    %2670 = vmatprep.subr.mxu0 0.0
    %2671 = vmatpush1.msra.mxu0 0.0
    %2672 = vmatprep.subr.mxu0 0.0
    %2673 = vmatpush1.msra.mxu0 0.0
    %2674 = vmatprep.subr.mxu0 0.0
    %2675 = vmatpush1.msra.mxu0 0.0
    %2676 = vmatprep.subr.mxu0 0.0
    %2677 = vmatpush1.msra.mxu0 0.0
    %2678 = vmatprep.subr.mxu0 0.0
    %2679 = vmatpush1.msra.mxu0 0.0
    %2680 = vmatprep.subr.mxu0 0.0
    %2681 = vmatpush1.msra.mxu0 0.0
    %2682 = vmatprep.subr.mxu0 0.0
    %2683 = vmatpush1.msra.mxu0 0.0
    %2684 = vmatprep.subr.mxu0 0.0
    %2685 = vmatpush1.msra.mxu0 0.0
    %2686 = vmatprep.subr.mxu0 0.0
    %2687 = vmatpush1.msra.mxu0 0.0
    %2688 = vmatprep.subr.mxu0 0.0
    %2689 = vmatpush1.msra.mxu0 0.0
    %2690 = vmatprep.subr.mxu0 0.0
    %2691 = vmatpush1.msra.mxu0 0.0
    %2692 = vmatprep.subr.mxu0 0.0
    %2693 = vmatpush1.msra.mxu0 0.0
    %2694 = vmatprep.subr.mxu0 0.0
    %2695 = vmatpush1.msra.mxu0 0.0
    %2696 = vmatprep.subr.mxu0 0.0
    %2697 = vmatpush1.msra.mxu0 0.0
    %2698 = vmatprep.subr.mxu0 0.0
    %2699 = vmatpush1.msra.mxu0 0.0
    %2700 = vmatprep.mubr.f32.mxu0 0.0
    %2701 = vmatmul.mubr.f32.gmra.mrb[0].mxu0 %v2634
    %v2702 = vpop.f32.mrb[0].mxu0
    %v2703 = vadd.f32 %v520, %v2702
    %v2704 = vpop.f32.mrb[0].mxu0
    %2705 = vdwg.mxu0
    %v2706 = vxor.u32 %v2703, 2147483648
    %v2707 = vmul.f32 %v2706, 1.442695
    %v2708 = vpow.pop %v2707
    %v2709 = vadd.f32 %v2708, 1.0
    %v2710 = vrcp.pop %v2709
    %v2711 = vmul.f32 1.0, %v2710
    %v2712 = vtanh.pop %v2703
    %v2713 = vmul.f32 %v2711, %v2303
    %2715 = vrot.lane.b32.xlu0 %v2712, 64
    %v2716 = vpop.permute.xlu0 %2715
    %v2718 = vmul.f32 %v2711, %v2716
    %2720 = vrot.lane.b32.xlu0 %v2718, 32
    %v2721 = vpop.permute.xlu0 %2720
    %v2723 = vadd.f32 %v2713, %v2721
    %v2724 = vtanh.pop %v2723
    %2726 = vrot.lane.b32.xlu0 %v2724, 64
    %v2727 = vpop.permute.xlu0 %2726
    %v2729 = vmul.f32 %v2711, %v2727
    %v2730 = vsel %vm412, %v2415, 0
    %2732 = vmatprep.subr.mxu0 0.0
    %2733 = vmatpush1.msra.mxu0 %v399
    %2734 = vmatprep.subr.mxu0 0.0
    %2735 = vmatpush1.msra.mxu0 %v400
    %2736 = vmatprep.subr.mxu0 0.0
    %2737 = vmatpush1.msra.mxu0 %v401
    %2738 = vmatprep.subr.mxu0 0.0
    %2739 = vmatpush1.msra.mxu0 %v402
    %2740 = vmatprep.subr.mxu0 0.0
    %2741 = vmatpush1.msra.mxu0 0.0
    %2742 = vmatprep.subr.mxu0 0.0
    %2743 = vmatpush1.msra.mxu0 0.0
    %2744 = vmatprep.subr.mxu0 0.0
    %2745 = vmatpush1.msra.mxu0 0.0
    %2746 = vmatprep.subr.mxu0 0.0
    %2747 = vmatpush1.msra.mxu0 0.0
    %2748 = vmatprep.subr.mxu0 0.0
    %2749 = vmatpush1.msra.mxu0 0.0
    %2750 = vmatprep.subr.mxu0 0.0
    %2751 = vmatpush1.msra.mxu0 0.0
    %2752 = vmatprep.subr.mxu0 0.0
    %2753 = vmatpush1.msra.mxu0 0.0
    %2754 = vmatprep.subr.mxu0 0.0
    %2755 = vmatpush1.msra.mxu0 0.0
    %2756 = vmatprep.subr.mxu0 0.0
    %2757 = vmatpush1.msra.mxu0 0.0
    %2758 = vmatprep.subr.mxu0 0.0
    %2759 = vmatpush1.msra.mxu0 0.0
    %2760 = vmatprep.subr.mxu0 0.0
    %2761 = vmatpush1.msra.mxu0 0.0
    %2762 = vmatprep.subr.mxu0 0.0
    %2763 = vmatpush1.msra.mxu0 0.0
    %2764 = vmatprep.subr.mxu0 0.0
    %2765 = vmatpush1.msra.mxu0 0.0
    %2766 = vmatprep.subr.mxu0 0.0
    %2767 = vmatpush1.msra.mxu0 0.0
    %2768 = vmatprep.subr.mxu0 0.0
    %2769 = vmatpush1.msra.mxu0 0.0
    %2770 = vmatprep.subr.mxu0 0.0
    %2771 = vmatpush1.msra.mxu0 0.0
    %2772 = vmatprep.subr.mxu0 0.0
    %2773 = vmatpush1.msra.mxu0 0.0
    %2774 = vmatprep.subr.mxu0 0.0
    %2775 = vmatpush1.msra.mxu0 0.0
    %2776 = vmatprep.subr.mxu0 0.0
    %2777 = vmatpush1.msra.mxu0 0.0
    %2778 = vmatprep.subr.mxu0 0.0
    %2779 = vmatpush1.msra.mxu0 0.0
    %2780 = vmatprep.subr.mxu0 0.0
    %2781 = vmatpush1.msra.mxu0 0.0
    %2782 = vmatprep.subr.mxu0 0.0
    %2783 = vmatpush1.msra.mxu0 0.0
    %2784 = vmatprep.subr.mxu0 0.0
    %2785 = vmatpush1.msra.mxu0 0.0
    %2786 = vmatprep.subr.mxu0 0.0
    %2787 = vmatpush1.msra.mxu0 0.0
    %2788 = vmatprep.subr.mxu0 0.0
    %2789 = vmatpush1.msra.mxu0 0.0
    %2790 = vmatprep.subr.mxu0 0.0
    %2791 = vmatpush1.msra.mxu0 0.0
    %2792 = vmatprep.subr.mxu0 0.0
    %2793 = vmatpush1.msra.mxu0 0.0
    %2794 = vmatprep.subr.mxu0 0.0
    %2795 = vmatpush1.msra.mxu0 0.0
    %2796 = vmatprep.mubr.f32.mxu0 0.0
    %2797 = vmatmul.mubr.f32.gmra.mrb[0].mxu0 %v2730
    %v2798 = vpop.f32.mrb[0].mxu0
    %v2799 = vadd.f32 0.0, %v2798
    %v2800 = vpop.f32.mrb[0].mxu0
    %2801 = vdwg.mxu0
    %v2803 = vrot.slane %v2799, 6
    %v2805 = vadd.f32 %v383, %v2803
    %v2806 = vxor.u32 %v2805, 2147483648
    %v2807 = vmul.f32 %v2806, 1.442695
    %v2808 = vpow.pop %v2807
    %v2809 = vadd.f32 %v2808, 1.0
    %v2810 = vrcp.pop %v2809
    %v2811 = vmul.f32 1.0, %v2810
    %v2812 = vtanh.pop %v2805
    %v2814 = vrot.slane %v2406, 6
    %v2816 = vmul.f32 %v2811, %v2814
    %2818 = vrot.lane.b32.xlu0 %v2812, 64
    %v2819 = vpop.permute.xlu0 %2818
    %v2821 = vmul.f32 %v2811, %v2819
    %2823 = vrot.lane.b32.xlu0 %v2821, 32
    %v2824 = vpop.permute.xlu0 %2823
    %v2826 = vadd.f32 %v2816, %v2824
    %v2827 = vtanh.pop %v2826
    %2829 = vrot.lane.b32.xlu0 %v2827, 64
    %v2830 = vpop.permute.xlu0 %2829
    %v2832 = vmul.f32 %v2811, %v2830
    %2834 = vrot.lane.b32.xlu0 %v2832, 32
    %v2835 = vpop.permute.xlu0 %2834
    %v2838 = vrot.slane %v2518, 6
    %2839 = vrot.lane.b32.xlu0 %v2838, 64
    %v2840 = vpop.permute.xlu0 %2839
    %v2842 = vsel %vm412, %v2835, %v2840
    %v2844 = vrot.slane %v2842, 2
    %v2845 = vsel %vm522, %v2844, 0
    %2847 = vmatprep.subr.mxu0 0.0
    %2848 = vmatpush1.msra.mxu0 %v403
    %2849 = vmatprep.subr.mxu0 0.0
    %2850 = vmatpush1.msra.mxu0 %v404
    %2851 = vmatprep.subr.mxu0 0.0
    %2852 = vmatpush1.msra.mxu0 %v405
    %2853 = vmatprep.subr.mxu0 0.0
    %2854 = vmatpush1.msra.mxu0 %v406
    %2855 = vmatprep.subr.mxu0 0.0
    %2856 = vmatpush1.msra.mxu0 %v407
    %2857 = vmatprep.subr.mxu0 0.0
    %2858 = vmatpush1.msra.mxu0 %v408
    %2859 = vmatprep.subr.mxu0 0.0
    %2860 = vmatpush1.msra.mxu0 %v409
    %2861 = vmatprep.subr.mxu0 0.0
    %2862 = vmatpush1.msra.mxu0 %v410
    %2863 = vmatprep.subr.mxu0 0.0
    %2864 = vmatpush1.msra.mxu0 0.0
    %2865 = vmatprep.subr.mxu0 0.0
    %2866 = vmatpush1.msra.mxu0 0.0
    %2867 = vmatprep.subr.mxu0 0.0
    %2868 = vmatpush1.msra.mxu0 0.0
    %2869 = vmatprep.subr.mxu0 0.0
    %2870 = vmatpush1.msra.mxu0 0.0
    %2871 = vmatprep.subr.mxu0 0.0
    %2872 = vmatpush1.msra.mxu0 0.0
    %2873 = vmatprep.subr.mxu0 0.0
    %2874 = vmatpush1.msra.mxu0 0.0
    %2875 = vmatprep.subr.mxu0 0.0
    %2876 = vmatpush1.msra.mxu0 0.0
    %2877 = vmatprep.subr.mxu0 0.0
    %2878 = vmatpush1.msra.mxu0 0.0
    %2879 = vmatprep.subr.mxu0 0.0
    %2880 = vmatpush1.msra.mxu0 0.0
    %2881 = vmatprep.subr.mxu0 0.0
    %2882 = vmatpush1.msra.mxu0 0.0
    %2883 = vmatprep.subr.mxu0 0.0
    %2884 = vmatpush1.msra.mxu0 0.0
    %2885 = vmatprep.subr.mxu0 0.0
    %2886 = vmatpush1.msra.mxu0 0.0
    %2887 = vmatprep.subr.mxu0 0.0
    %2888 = vmatpush1.msra.mxu0 0.0
    %2889 = vmatprep.subr.mxu0 0.0
    %2890 = vmatpush1.msra.mxu0 0.0
    %2891 = vmatprep.subr.mxu0 0.0
    %2892 = vmatpush1.msra.mxu0 0.0
    %2893 = vmatprep.subr.mxu0 0.0
    %2894 = vmatpush1.msra.mxu0 0.0
    %2895 = vmatprep.subr.mxu0 0.0
    %2896 = vmatpush1.msra.mxu0 0.0
    %2897 = vmatprep.subr.mxu0 0.0
    %2898 = vmatpush1.msra.mxu0 0.0
    %2899 = vmatprep.subr.mxu0 0.0
    %2900 = vmatpush1.msra.mxu0 0.0
    %2901 = vmatprep.subr.mxu0 0.0
    %2902 = vmatpush1.msra.mxu0 0.0
    %2903 = vmatprep.subr.mxu0 0.0
    %2904 = vmatpush1.msra.mxu0 0.0
    %2905 = vmatprep.subr.mxu0 0.0
    %2906 = vmatpush1.msra.mxu0 0.0
    %2907 = vmatprep.subr.mxu0 0.0
    %2908 = vmatpush1.msra.mxu0 0.0
    %2909 = vmatprep.subr.mxu0 0.0
    %2910 = vmatpush1.msra.mxu0 0.0
    %2911 = vmatprep.mubr.f32.mxu0 0.0
    %2912 = vmatmul.mubr.f32.gmra.mrb[0].mxu0 %v2845
    %v2913 = vpop.f32.mrb[0].mxu0
    %v2914 = vadd.f32 %v724, %v2913
    %v2915 = vpop.f32.mrb[0].mxu0
    %2916 = vdwg.mxu0
    %v2917 = vxor.u32 %v2914, 2147483648
    %v2918 = vmul.f32 %v2917, 1.442695
    %v2919 = vpow.pop %v2918
    %v2920 = vadd.f32 %v2919, 1.0
    %v2921 = vrcp.pop %v2920
    %v2922 = vmul.f32 1.0, %v2921
    %v2923 = vtanh.pop %v2914
    %v2924 = vmul.f32 %v2922, %v2512
    %2926 = vrot.lane.b32.xlu0 %v2923, 64
    %v2927 = vpop.permute.xlu0 %2926
    %v2929 = vmul.f32 %v2922, %v2927
    %2931 = vrot.lane.b32.xlu0 %v2929, 32
    %v2932 = vpop.permute.xlu0 %2931
    %v2934 = vadd.f32 %v2924, %v2932
    %v2935 = vtanh.pop %v2934
    %2937 = vrot.lane.b32.xlu0 %v2935, 64
    %v2938 = vpop.permute.xlu0 %2937
    %v2940 = vmul.f32 %v2922, %v2938
    %v2941 = vrot.slane %v2621, 2
    %2942 = vrot.lane.b32.xlu0 %v2941, 32
    %v2943 = vpop.permute.xlu0 %2942
    %v2944 = vsel %vm412, %v2943, 0
    %2946 = vmatprep.subr.mxu0 0.0
    %2947 = vmatpush1.msra.mxu0 %v386
    %2948 = vmatprep.subr.mxu0 0.0
    %2949 = vmatpush1.msra.mxu0 %v387
    %2950 = vmatprep.subr.mxu0 0.0
    %2951 = vmatpush1.msra.mxu0 %v388
    %2952 = vmatprep.subr.mxu0 0.0
    %2953 = vmatpush1.msra.mxu0 %v389
    %2954 = vmatprep.subr.mxu0 0.0
    %2955 = vmatpush1.msra.mxu0 0.0
    %2956 = vmatprep.subr.mxu0 0.0
    %2957 = vmatpush1.msra.mxu0 0.0
    %2958 = vmatprep.subr.mxu0 0.0
    %2959 = vmatpush1.msra.mxu0 0.0
    %2960 = vmatprep.subr.mxu0 0.0
    %2961 = vmatpush1.msra.mxu0 0.0
    %2962 = vmatprep.subr.mxu0 0.0
    %2963 = vmatpush1.msra.mxu0 0.0
    %2964 = vmatprep.subr.mxu0 0.0
    %2965 = vmatpush1.msra.mxu0 0.0
    %2966 = vmatprep.subr.mxu0 0.0
    %2967 = vmatpush1.msra.mxu0 0.0
    %2968 = vmatprep.subr.mxu0 0.0
    %2969 = vmatpush1.msra.mxu0 0.0
    %2970 = vmatprep.subr.mxu0 0.0
    %2971 = vmatpush1.msra.mxu0 0.0
    %2972 = vmatprep.subr.mxu0 0.0
    %2973 = vmatpush1.msra.mxu0 0.0
    %2974 = vmatprep.subr.mxu0 0.0
    %2975 = vmatpush1.msra.mxu0 0.0
    %2976 = vmatprep.subr.mxu0 0.0
    %2977 = vmatpush1.msra.mxu0 0.0
    %2978 = vmatprep.subr.mxu0 0.0
    %2979 = vmatpush1.msra.mxu0 0.0
    %2980 = vmatprep.subr.mxu0 0.0
    %2981 = vmatpush1.msra.mxu0 0.0
    %2982 = vmatprep.subr.mxu0 0.0
    %2983 = vmatpush1.msra.mxu0 0.0
    %2984 = vmatprep.subr.mxu0 0.0
    %2985 = vmatpush1.msra.mxu0 0.0
    %2986 = vmatprep.subr.mxu0 0.0
    %2987 = vmatpush1.msra.mxu0 0.0
    %2988 = vmatprep.subr.mxu0 0.0
    %2989 = vmatpush1.msra.mxu0 0.0
    %2990 = vmatprep.subr.mxu0 0.0
    %2991 = vmatpush1.msra.mxu0 0.0
    %2992 = vmatprep.subr.mxu0 0.0
    %2993 = vmatpush1.msra.mxu0 0.0
    %2994 = vmatprep.subr.mxu0 0.0
    %2995 = vmatpush1.msra.mxu0 0.0
    %2996 = vmatprep.subr.mxu0 0.0
    %2997 = vmatpush1.msra.mxu0 0.0
    %2998 = vmatprep.subr.mxu0 0.0
    %2999 = vmatpush1.msra.mxu0 0.0
    %3000 = vmatprep.subr.mxu0 0.0
    %3001 = vmatpush1.msra.mxu0 0.0
    %3002 = vmatprep.subr.mxu0 0.0
    %3003 = vmatpush1.msra.mxu0 0.0
    %3004 = vmatprep.subr.mxu0 0.0
    %3005 = vmatpush1.msra.mxu0 0.0
    %3006 = vmatprep.subr.mxu0 0.0
    %3007 = vmatpush1.msra.mxu0 0.0
    %3008 = vmatprep.subr.mxu0 0.0
    %3009 = vmatpush1.msra.mxu0 0.0
    %3010 = vmatprep.mubr.f32.mxu0 0.0
    %3011 = vmatmul.mubr.f32.gmra.mrb[0].mxu0 %v2944
    %v3012 = vpop.f32.mrb[0].mxu0
    %v3013 = vadd.f32 0.0, %v3012
    %v3014 = vpop.f32.mrb[0].mxu0
    %3015 = vdwg.mxu0
    %v3017 = vrot.slane %v3013, 4
    %v3019 = vadd.f32 %v292, %v3017
    %v3020 = vxor.u32 %v3019, 2147483648
    %v3021 = vmul.f32 %v3020, 1.442695
    %v3022 = vpow.pop %v3021
    %v3023 = vadd.f32 %v3022, 1.0
    %v3024 = vrcp.pop %v3023
    %v3025 = vmul.f32 1.0, %v3024
    %v3026 = vtanh.pop %v3019
    %v3028 = vrot.slane %v2615, 6
    %v3030 = vmul.f32 %v3025, %v3028
    %3032 = vrot.lane.b32.xlu0 %v3026, 64
    %v3033 = vpop.permute.xlu0 %3032
    %v3035 = vmul.f32 %v3025, %v3033
    %3037 = vrot.lane.b32.xlu0 %v3035, 32
    %v3038 = vpop.permute.xlu0 %3037
    %v3040 = vadd.f32 %v3030, %v3038
    %v3041 = vtanh.pop %v3040
    %3043 = vrot.lane.b32.xlu0 %v3041, 64
    %v3044 = vpop.permute.xlu0 %3043
    %v3046 = vmul.f32 %v3025, %v3044
    %3048 = vrot.lane.b32.xlu0 %v3046, 32
    %v3049 = vpop.permute.xlu0 %3048
    %v3052 = vrot.slane %v2729, 4
    %3053 = vrot.lane.b32.xlu0 %v3052, 64
    %v3054 = vpop.permute.xlu0 %3053
    %v3056 = vsel %vm412, %v3049, %v3054
    %v3058 = vrot.slane %v3056, 4
    %v3059 = vsel %vm522, %v3058, 0
    %3061 = vmatprep.subr.mxu0 0.0
    %3062 = vmatpush1.msra.mxu0 %v390
    %3063 = vmatprep.subr.mxu0 0.0
    %3064 = vmatpush1.msra.mxu0 %v391
    %3065 = vmatprep.subr.mxu0 0.0
    %3066 = vmatpush1.msra.mxu0 %v392
    %3067 = vmatprep.subr.mxu0 0.0
    %3068 = vmatpush1.msra.mxu0 %v393
    %3069 = vmatprep.subr.mxu0 0.0
    %3070 = vmatpush1.msra.mxu0 %v394
    %3071 = vmatprep.subr.mxu0 0.0
    %3072 = vmatpush1.msra.mxu0 %v395
    %3073 = vmatprep.subr.mxu0 0.0
    %3074 = vmatpush1.msra.mxu0 %v396
    %3075 = vmatprep.subr.mxu0 0.0
    %3076 = vmatpush1.msra.mxu0 %v397
    %3077 = vmatprep.subr.mxu0 0.0
    %3078 = vmatpush1.msra.mxu0 0.0
    %3079 = vmatprep.subr.mxu0 0.0
    %3080 = vmatpush1.msra.mxu0 0.0
    %3081 = vmatprep.subr.mxu0 0.0
    %3082 = vmatpush1.msra.mxu0 0.0
    %3083 = vmatprep.subr.mxu0 0.0
    %3084 = vmatpush1.msra.mxu0 0.0
    %3085 = vmatprep.subr.mxu0 0.0
    %3086 = vmatpush1.msra.mxu0 0.0
    %3087 = vmatprep.subr.mxu0 0.0
    %3088 = vmatpush1.msra.mxu0 0.0
    %3089 = vmatprep.subr.mxu0 0.0
    %3090 = vmatpush1.msra.mxu0 0.0
    %3091 = vmatprep.subr.mxu0 0.0
    %3092 = vmatpush1.msra.mxu0 0.0
    %3093 = vmatprep.subr.mxu0 0.0
    %3094 = vmatpush1.msra.mxu0 0.0
    %3095 = vmatprep.subr.mxu0 0.0
    %3096 = vmatpush1.msra.mxu0 0.0
    %3097 = vmatprep.subr.mxu0 0.0
    %3098 = vmatpush1.msra.mxu0 0.0
    %3099 = vmatprep.subr.mxu0 0.0
    %3100 = vmatpush1.msra.mxu0 0.0
    %3101 = vmatprep.subr.mxu0 0.0
    %3102 = vmatpush1.msra.mxu0 0.0
    %3103 = vmatprep.subr.mxu0 0.0
    %3104 = vmatpush1.msra.mxu0 0.0
    %3105 = vmatprep.subr.mxu0 0.0
    %3106 = vmatpush1.msra.mxu0 0.0
    %3107 = vmatprep.subr.mxu0 0.0
    %3108 = vmatpush1.msra.mxu0 0.0
    %3109 = vmatprep.subr.mxu0 0.0
    %3110 = vmatpush1.msra.mxu0 0.0
    %3111 = vmatprep.subr.mxu0 0.0
    %3112 = vmatpush1.msra.mxu0 0.0
    %3113 = vmatprep.subr.mxu0 0.0
    %3114 = vmatpush1.msra.mxu0 0.0
    %3115 = vmatprep.subr.mxu0 0.0
    %3116 = vmatpush1.msra.mxu0 0.0
    %3117 = vmatprep.subr.mxu0 0.0
    %3118 = vmatpush1.msra.mxu0 0.0
    %3119 = vmatprep.subr.mxu0 0.0
    %3120 = vmatpush1.msra.mxu0 0.0
    %3121 = vmatprep.subr.mxu0 0.0
    %3122 = vmatpush1.msra.mxu0 0.0
    %3123 = vmatprep.subr.mxu0 0.0
    %3124 = vmatpush1.msra.mxu0 0.0
    %3125 = vmatprep.mubr.f32.mxu0 0.0
    %3126 = vmatmul.mubr.f32.gmra.mrb[0].mxu0 %v3059
    %v3127 = vpop.f32.mrb[0].mxu0
    %v3128 = vadd.f32 %v520, %v3127
    %v3129 = vpop.f32.mrb[0].mxu0
    %3130 = vdwg.mxu0
    %v3131 = vxor.u32 %v3128, 2147483648
    %v3132 = vmul.f32 %v3131, 1.442695
    %v3133 = vpow.pop %v3132
    %v3134 = vadd.f32 %v3133, 1.0
    %v3135 = vrcp.pop %v3134
    %v3136 = vmul.f32 1.0, %v3135
    %v3137 = vtanh.pop %v3128
    %v3138 = vmul.f32 %v3136, %v2723
    %3140 = vrot.lane.b32.xlu0 %v3137, 64
    %v3141 = vpop.permute.xlu0 %3140
    %v3143 = vmul.f32 %v3136, %v3141
    %3145 = vrot.lane.b32.xlu0 %v3143, 32
    %v3146 = vpop.permute.xlu0 %3145
    %v3148 = vadd.f32 %v3138, %v3146
    %v3149 = vtanh.pop %v3148
    %3151 = vrot.lane.b32.xlu0 %v3149, 64
    %v3152 = vpop.permute.xlu0 %3151
    %v3154 = vmul.f32 %v3136, %v3152
    %v3155 = vrot.slane %v2832, 2
    %3156 = vrot.lane.b32.xlu0 %v3155, 32
    %v3157 = vpop.permute.xlu0 %3156
    %v3158 = vsel %vm412, %v3157, 0
    %3160 = vmatprep.subr.mxu0 0.0
    %3161 = vmatpush1.msra.mxu0 %v399
    %3162 = vmatprep.subr.mxu0 0.0
    %3163 = vmatpush1.msra.mxu0 %v400
    %3164 = vmatprep.subr.mxu0 0.0
    %3165 = vmatpush1.msra.mxu0 %v401
    %3166 = vmatprep.subr.mxu0 0.0
    %3167 = vmatpush1.msra.mxu0 %v402
    %3168 = vmatprep.subr.mxu0 0.0
    %3169 = vmatpush1.msra.mxu0 0.0
    %3170 = vmatprep.subr.mxu0 0.0
    %3171 = vmatpush1.msra.mxu0 0.0
    %3172 = vmatprep.subr.mxu0 0.0
    %3173 = vmatpush1.msra.mxu0 0.0
    %3174 = vmatprep.subr.mxu0 0.0
    %3175 = vmatpush1.msra.mxu0 0.0
    %3176 = vmatprep.subr.mxu0 0.0
    %3177 = vmatpush1.msra.mxu0 0.0
    %3178 = vmatprep.subr.mxu0 0.0
    %3179 = vmatpush1.msra.mxu0 0.0
    %3180 = vmatprep.subr.mxu0 0.0
    %3181 = vmatpush1.msra.mxu0 0.0
    %3182 = vmatprep.subr.mxu0 0.0
    %3183 = vmatpush1.msra.mxu0 0.0
    %3184 = vmatprep.subr.mxu0 0.0
    %3185 = vmatpush1.msra.mxu0 0.0
    %3186 = vmatprep.subr.mxu0 0.0
    %3187 = vmatpush1.msra.mxu0 0.0
    %3188 = vmatprep.subr.mxu0 0.0
    %3189 = vmatpush1.msra.mxu0 0.0
    %3190 = vmatprep.subr.mxu0 0.0
    %3191 = vmatpush1.msra.mxu0 0.0
    %3192 = vmatprep.subr.mxu0 0.0
    %3193 = vmatpush1.msra.mxu0 0.0
    %3194 = vmatprep.subr.mxu0 0.0
    %3195 = vmatpush1.msra.mxu0 0.0
    %3196 = vmatprep.subr.mxu0 0.0
    %3197 = vmatpush1.msra.mxu0 0.0
    %3198 = vmatprep.subr.mxu0 0.0
    %3199 = vmatpush1.msra.mxu0 0.0
    %3200 = vmatprep.subr.mxu0 0.0
    %3201 = vmatpush1.msra.mxu0 0.0
    %3202 = vmatprep.subr.mxu0 0.0
    %3203 = vmatpush1.msra.mxu0 0.0
    %3204 = vmatprep.subr.mxu0 0.0
    %3205 = vmatpush1.msra.mxu0 0.0
    %3206 = vmatprep.subr.mxu0 0.0
    %3207 = vmatpush1.msra.mxu0 0.0
    %3208 = vmatprep.subr.mxu0 0.0
    %3209 = vmatpush1.msra.mxu0 0.0
    %3210 = vmatprep.subr.mxu0 0.0
    %3211 = vmatpush1.msra.mxu0 0.0
    %3212 = vmatprep.subr.mxu0 0.0
    %3213 = vmatpush1.msra.mxu0 0.0
    %3214 = vmatprep.subr.mxu0 0.0
    %3215 = vmatpush1.msra.mxu0 0.0
    %3216 = vmatprep.subr.mxu0 0.0
    %3217 = vmatpush1.msra.mxu0 0.0
    %3218 = vmatprep.subr.mxu0 0.0
    %3219 = vmatpush1.msra.mxu0 0.0
    %3220 = vmatprep.subr.mxu0 0.0
    %3221 = vmatpush1.msra.mxu0 0.0
    %3222 = vmatprep.subr.mxu0 0.0
    %3223 = vmatpush1.msra.mxu0 0.0
    %3224 = vmatprep.mubr.f32.mxu0 0.0
    %3225 = vmatmul.mubr.f32.gmra.mrb[0].mxu0 %v3158
    %v3226 = vpop.f32.mrb[0].mxu0
    %v3227 = vadd.f32 0.0, %v3226
    %v3228 = vpop.f32.mrb[0].mxu0
    %3229 = vdwg.mxu0
    %v3231 = vrot.slane %v3227, 4
    %v3233 = vadd.f32 %v383, %v3231
    %v3234 = vxor.u32 %v3233, 2147483648
    %v3235 = vmul.f32 %v3234, 1.442695
    %v3236 = vpow.pop %v3235
    %v3237 = vadd.f32 %v3236, 1.0
    %v3238 = vrcp.pop %v3237
    %v3239 = vmul.f32 1.0, %v3238
    %v3240 = vtanh.pop %v3233
    %v3242 = vrot.slane %v2826, 6
    %v3244 = vmul.f32 %v3239, %v3242
    %3246 = vrot.lane.b32.xlu0 %v3240, 64
    %v3247 = vpop.permute.xlu0 %3246
    %v3249 = vmul.f32 %v3239, %v3247
    %3251 = vrot.lane.b32.xlu0 %v3249, 32
    %v3252 = vpop.permute.xlu0 %3251
    %v3254 = vadd.f32 %v3244, %v3252
    %v3255 = vtanh.pop %v3254
    %3257 = vrot.lane.b32.xlu0 %v3255, 64
    %v3258 = vpop.permute.xlu0 %3257
    %v3260 = vmul.f32 %v3239, %v3258
    %3262 = vrot.lane.b32.xlu0 %v3260, 32
    %v3263 = vpop.permute.xlu0 %3262
    %v3266 = vrot.slane %v2940, 4
    %3267 = vrot.lane.b32.xlu0 %v3266, 64
    %v3268 = vpop.permute.xlu0 %3267
    %v3270 = vsel %vm412, %v3263, %v3268
    %v3272 = vrot.slane %v3270, 4
    %v3273 = vsel %vm522, %v3272, 0
    %3275 = vmatprep.subr.mxu0 0.0
    %3276 = vmatpush1.msra.mxu0 %v403
    %3277 = vmatprep.subr.mxu0 0.0
    %3278 = vmatpush1.msra.mxu0 %v404
    %3279 = vmatprep.subr.mxu0 0.0
    %3280 = vmatpush1.msra.mxu0 %v405
    %3281 = vmatprep.subr.mxu0 0.0
    %3282 = vmatpush1.msra.mxu0 %v406
    %3283 = vmatprep.subr.mxu0 0.0
    %3284 = vmatpush1.msra.mxu0 %v407
    %3285 = vmatprep.subr.mxu0 0.0
    %3286 = vmatpush1.msra.mxu0 %v408
    %3287 = vmatprep.subr.mxu0 0.0
    %3288 = vmatpush1.msra.mxu0 %v409
    %3289 = vmatprep.subr.mxu0 0.0
    %3290 = vmatpush1.msra.mxu0 %v410
    %3291 = vmatprep.subr.mxu0 0.0
    %3292 = vmatpush1.msra.mxu0 0.0
    %3293 = vmatprep.subr.mxu0 0.0
    %3294 = vmatpush1.msra.mxu0 0.0
    %3295 = vmatprep.subr.mxu0 0.0
    %3296 = vmatpush1.msra.mxu0 0.0
    %3297 = vmatprep.subr.mxu0 0.0
    %3298 = vmatpush1.msra.mxu0 0.0
    %3299 = vmatprep.subr.mxu0 0.0
    %3300 = vmatpush1.msra.mxu0 0.0
    %3301 = vmatprep.subr.mxu0 0.0
    %3302 = vmatpush1.msra.mxu0 0.0
    %3303 = vmatprep.subr.mxu0 0.0
    %3304 = vmatpush1.msra.mxu0 0.0
    %3305 = vmatprep.subr.mxu0 0.0
    %3306 = vmatpush1.msra.mxu0 0.0
    %3307 = vmatprep.subr.mxu0 0.0
    %3308 = vmatpush1.msra.mxu0 0.0
    %3309 = vmatprep.subr.mxu0 0.0
    %3310 = vmatpush1.msra.mxu0 0.0
    %3311 = vmatprep.subr.mxu0 0.0
    %3312 = vmatpush1.msra.mxu0 0.0
    %3313 = vmatprep.subr.mxu0 0.0
    %3314 = vmatpush1.msra.mxu0 0.0
    %3315 = vmatprep.subr.mxu0 0.0
    %3316 = vmatpush1.msra.mxu0 0.0
    %3317 = vmatprep.subr.mxu0 0.0
    %3318 = vmatpush1.msra.mxu0 0.0
    %3319 = vmatprep.subr.mxu0 0.0
    %3320 = vmatpush1.msra.mxu0 0.0
    %3321 = vmatprep.subr.mxu0 0.0
    %3322 = vmatpush1.msra.mxu0 0.0
    %3323 = vmatprep.subr.mxu0 0.0
    %3324 = vmatpush1.msra.mxu0 0.0
    %3325 = vmatprep.subr.mxu0 0.0
    %3326 = vmatpush1.msra.mxu0 0.0
    %3327 = vmatprep.subr.mxu0 0.0
    %3328 = vmatpush1.msra.mxu0 0.0
    %3329 = vmatprep.subr.mxu0 0.0
    %3330 = vmatpush1.msra.mxu0 0.0
    %3331 = vmatprep.subr.mxu0 0.0
    %3332 = vmatpush1.msra.mxu0 0.0
    %3333 = vmatprep.subr.mxu0 0.0
    %3334 = vmatpush1.msra.mxu0 0.0
    %3335 = vmatprep.subr.mxu0 0.0
    %3336 = vmatpush1.msra.mxu0 0.0
    %3337 = vmatprep.subr.mxu0 0.0
    %3338 = vmatpush1.msra.mxu0 0.0
    %3339 = vmatprep.mubr.f32.mxu0 0.0
    %3340 = vmatmul.mubr.f32.gmra.mrb[0].mxu0 %v3273
    %v3341 = vpop.f32.mrb[0].mxu0
    %v3342 = vadd.f32 %v724, %v3341
    %v3343 = vpop.f32.mrb[0].mxu0
    %3344 = vdwg.mxu0
    %v3345 = vxor.u32 %v3342, 2147483648
    %v3346 = vmul.f32 %v3345, 1.442695
    %v3347 = vpow.pop %v3346
    %v3348 = vadd.f32 %v3347, 1.0
    %v3349 = vrcp.pop %v3348
    %v3350 = vmul.f32 1.0, %v3349
    %v3351 = vtanh.pop %v3342
    %v3352 = vmul.f32 %v3350, %v2934
    %3354 = vrot.lane.b32.xlu0 %v3351, 64
    %v3355 = vpop.permute.xlu0 %3354
    %v3357 = vmul.f32 %v3350, %v3355
    %3359 = vrot.lane.b32.xlu0 %v3357, 32
    %v3360 = vpop.permute.xlu0 %3359
    %v3362 = vadd.f32 %v3352, %v3360
    %v3363 = vtanh.pop %v3362
    %3365 = vrot.lane.b32.xlu0 %v3363, 64
    %v3366 = vpop.permute.xlu0 %3365
    %v3368 = vmul.f32 %v3350, %v3366
    %v3369 = vrot.slane %v3046, 4
    %3370 = vrot.lane.b32.xlu0 %v3369, 32
    %v3371 = vpop.permute.xlu0 %3370
    %v3372 = vsel %vm412, %v3371, 0
    %3374 = vmatprep.subr.mxu0 0.0
    %3375 = vmatpush1.msra.mxu0 %v386
    %3376 = vmatprep.subr.mxu0 0.0
    %3377 = vmatpush1.msra.mxu0 %v387
    %3378 = vmatprep.subr.mxu0 0.0
    %3379 = vmatpush1.msra.mxu0 %v388
    %3380 = vmatprep.subr.mxu0 0.0
    %3381 = vmatpush1.msra.mxu0 %v389
    %3382 = vmatprep.subr.mxu0 0.0
    %3383 = vmatpush1.msra.mxu0 0.0
    %3384 = vmatprep.subr.mxu0 0.0
    %3385 = vmatpush1.msra.mxu0 0.0
    %3386 = vmatprep.subr.mxu0 0.0
    %3387 = vmatpush1.msra.mxu0 0.0
    %3388 = vmatprep.subr.mxu0 0.0
    %3389 = vmatpush1.msra.mxu0 0.0
    %3390 = vmatprep.subr.mxu0 0.0
    %3391 = vmatpush1.msra.mxu0 0.0
    %3392 = vmatprep.subr.mxu0 0.0
    %3393 = vmatpush1.msra.mxu0 0.0
    %3394 = vmatprep.subr.mxu0 0.0
    %3395 = vmatpush1.msra.mxu0 0.0
    %3396 = vmatprep.subr.mxu0 0.0
    %3397 = vmatpush1.msra.mxu0 0.0
    %3398 = vmatprep.subr.mxu0 0.0
    %3399 = vmatpush1.msra.mxu0 0.0
    %3400 = vmatprep.subr.mxu0 0.0
    %3401 = vmatpush1.msra.mxu0 0.0
    %3402 = vmatprep.subr.mxu0 0.0
    %3403 = vmatpush1.msra.mxu0 0.0
    %3404 = vmatprep.subr.mxu0 0.0
    %3405 = vmatpush1.msra.mxu0 0.0
    %3406 = vmatprep.subr.mxu0 0.0
    %3407 = vmatpush1.msra.mxu0 0.0
    %3408 = vmatprep.subr.mxu0 0.0
    %3409 = vmatpush1.msra.mxu0 0.0
    %3410 = vmatprep.subr.mxu0 0.0
    %3411 = vmatpush1.msra.mxu0 0.0
    %3412 = vmatprep.subr.mxu0 0.0
    %3413 = vmatpush1.msra.mxu0 0.0
    %3414 = vmatprep.subr.mxu0 0.0
    %3415 = vmatpush1.msra.mxu0 0.0
    %3416 = vmatprep.subr.mxu0 0.0
    %3417 = vmatpush1.msra.mxu0 0.0
    %3418 = vmatprep.subr.mxu0 0.0
    %3419 = vmatpush1.msra.mxu0 0.0
    %3420 = vmatprep.subr.mxu0 0.0
    %3421 = vmatpush1.msra.mxu0 0.0
    %3422 = vmatprep.subr.mxu0 0.0
    %3423 = vmatpush1.msra.mxu0 0.0
    %3424 = vmatprep.subr.mxu0 0.0
    %3425 = vmatpush1.msra.mxu0 0.0
    %3426 = vmatprep.subr.mxu0 0.0
    %3427 = vmatpush1.msra.mxu0 0.0
    %3428 = vmatprep.subr.mxu0 0.0
    %3429 = vmatpush1.msra.mxu0 0.0
    %3430 = vmatprep.subr.mxu0 0.0
    %3431 = vmatpush1.msra.mxu0 0.0
    %3432 = vmatprep.subr.mxu0 0.0
    %3433 = vmatpush1.msra.mxu0 0.0
    %3434 = vmatprep.subr.mxu0 0.0
    %3435 = vmatpush1.msra.mxu0 0.0
    %3436 = vmatprep.subr.mxu0 0.0
    %3437 = vmatpush1.msra.mxu0 0.0
    %3438 = vmatprep.mubr.f32.mxu0 0.0
    %3439 = vmatmul.mubr.f32.gmra.mrb[0].mxu0 %v3372
    %v3440 = vpop.f32.mrb[0].mxu0
    %v3441 = vadd.f32 0.0, %v3440
    %v3442 = vpop.f32.mrb[0].mxu0
    %3443 = vdwg.mxu0
    %v3445 = vrot.slane %v3441, 2
    %v3447 = vadd.f32 %v292, %v3445
    %v3448 = vxor.u32 %v3447, 2147483648
    %v3449 = vmul.f32 %v3448, 1.442695
    %v3450 = vpow.pop %v3449
    %v3451 = vadd.f32 %v3450, 1.0
    %v3452 = vrcp.pop %v3451
    %v3453 = vmul.f32 1.0, %v3452
    %v3454 = vtanh.pop %v3447
    %v3456 = vrot.slane %v3040, 6
    %v3458 = vmul.f32 %v3453, %v3456
    %3460 = vrot.lane.b32.xlu0 %v3454, 64
    %v3461 = vpop.permute.xlu0 %3460
    %v3463 = vmul.f32 %v3453, %v3461
    %3465 = vrot.lane.b32.xlu0 %v3463, 32
    %v3466 = vpop.permute.xlu0 %3465
    %v3468 = vadd.f32 %v3458, %v3466
    %v3469 = vtanh.pop %v3468
    %3471 = vrot.lane.b32.xlu0 %v3469, 64
    %v3472 = vpop.permute.xlu0 %3471
    %v3474 = vmul.f32 %v3453, %v3472
    %3476 = vrot.lane.b32.xlu0 %v3474, 32
    %v3477 = vpop.permute.xlu0 %3476
    %v3480 = vrot.slane %v3154, 2
    %3481 = vrot.lane.b32.xlu0 %v3480, 64
    %v3482 = vpop.permute.xlu0 %3481
    %v3484 = vsel %vm412, %v3477, %v3482
    %v3486 = vrot.slane %v3484, 6
    %v3487 = vsel %vm522, %v3486, 0
    %3489 = vmatprep.subr.mxu0 0.0
    %3490 = vmatpush1.msra.mxu0 %v390
    %3491 = vmatprep.subr.mxu0 0.0
    %3492 = vmatpush1.msra.mxu0 %v391
    %3493 = vmatprep.subr.mxu0 0.0
    %3494 = vmatpush1.msra.mxu0 %v392
    %3495 = vmatprep.subr.mxu0 0.0
    %3496 = vmatpush1.msra.mxu0 %v393
    %3497 = vmatprep.subr.mxu0 0.0
    %3498 = vmatpush1.msra.mxu0 %v394
    %3499 = vmatprep.subr.mxu0 0.0
    %3500 = vmatpush1.msra.mxu0 %v395
    %3501 = vmatprep.subr.mxu0 0.0
    %3502 = vmatpush1.msra.mxu0 %v396
    %3503 = vmatprep.subr.mxu0 0.0
    %3504 = vmatpush1.msra.mxu0 %v397
    %3505 = vmatprep.subr.mxu0 0.0
    %3506 = vmatpush1.msra.mxu0 0.0
    %3507 = vmatprep.subr.mxu0 0.0
    %3508 = vmatpush1.msra.mxu0 0.0
    %3509 = vmatprep.subr.mxu0 0.0
    %3510 = vmatpush1.msra.mxu0 0.0
    %3511 = vmatprep.subr.mxu0 0.0
    %3512 = vmatpush1.msra.mxu0 0.0
    %3513 = vmatprep.subr.mxu0 0.0
    %3514 = vmatpush1.msra.mxu0 0.0
    %3515 = vmatprep.subr.mxu0 0.0
    %3516 = vmatpush1.msra.mxu0 0.0
    %3517 = vmatprep.subr.mxu0 0.0
    %3518 = vmatpush1.msra.mxu0 0.0
    %3519 = vmatprep.subr.mxu0 0.0
    %3520 = vmatpush1.msra.mxu0 0.0
    %3521 = vmatprep.subr.mxu0 0.0
    %3522 = vmatpush1.msra.mxu0 0.0
    %3523 = vmatprep.subr.mxu0 0.0
    %3524 = vmatpush1.msra.mxu0 0.0
    %3525 = vmatprep.subr.mxu0 0.0
    %3526 = vmatpush1.msra.mxu0 0.0
    %3527 = vmatprep.subr.mxu0 0.0
    %3528 = vmatpush1.msra.mxu0 0.0
    %3529 = vmatprep.subr.mxu0 0.0
    %3530 = vmatpush1.msra.mxu0 0.0
    %3531 = vmatprep.subr.mxu0 0.0
    %3532 = vmatpush1.msra.mxu0 0.0
    %3533 = vmatprep.subr.mxu0 0.0
    %3534 = vmatpush1.msra.mxu0 0.0
    %3535 = vmatprep.subr.mxu0 0.0
    %3536 = vmatpush1.msra.mxu0 0.0
    %3537 = vmatprep.subr.mxu0 0.0
    %3538 = vmatpush1.msra.mxu0 0.0
    %3539 = vmatprep.subr.mxu0 0.0
    %3540 = vmatpush1.msra.mxu0 0.0
    %3541 = vmatprep.subr.mxu0 0.0
    %3542 = vmatpush1.msra.mxu0 0.0
    %3543 = vmatprep.subr.mxu0 0.0
    %3544 = vmatpush1.msra.mxu0 0.0
    %3545 = vmatprep.subr.mxu0 0.0
    %3546 = vmatpush1.msra.mxu0 0.0
    %3547 = vmatprep.subr.mxu0 0.0
    %3548 = vmatpush1.msra.mxu0 0.0
    %3549 = vmatprep.subr.mxu0 0.0
    %3550 = vmatpush1.msra.mxu0 0.0
    %3551 = vmatprep.subr.mxu0 0.0
    %3552 = vmatpush1.msra.mxu0 0.0
    %3553 = vmatprep.mubr.f32.mxu0 0.0
    %3554 = vmatmul.mubr.f32.gmra.mrb[0].mxu0 %v3487
    %v3555 = vpop.f32.mrb[0].mxu0
    %v3556 = vadd.f32 %v520, %v3555
    %v3557 = vpop.f32.mrb[0].mxu0
    %3558 = vdwg.mxu0
    %v3559 = vxor.u32 %v3556, 2147483648
    %v3560 = vmul.f32 %v3559, 1.442695
    %v3561 = vpow.pop %v3560
    %v3562 = vadd.f32 %v3561, 1.0
    %v3563 = vrcp.pop %v3562
    %v3564 = vmul.f32 1.0, %v3563
    %v3565 = vtanh.pop %v3556
    %v3566 = vmul.f32 %v3564, %v3148
    %3568 = vrot.lane.b32.xlu0 %v3565, 64
    %v3569 = vpop.permute.xlu0 %3568
    %v3571 = vmul.f32 %v3564, %v3569
    %3573 = vrot.lane.b32.xlu0 %v3571, 32
    %v3574 = vpop.permute.xlu0 %3573
    %v3576 = vadd.f32 %v3566, %v3574
    %v3577 = vtanh.pop %v3576
    %3579 = vrot.lane.b32.xlu0 %v3577, 64
    %v3580 = vpop.permute.xlu0 %3579
    %v3582 = vmul.f32 %v3564, %v3580
    %v3583 = vrot.slane %v3260, 4
    %3584 = vrot.lane.b32.xlu0 %v3583, 32
    %v3585 = vpop.permute.xlu0 %3584
    %v3586 = vsel %vm412, %v3585, 0
    %3588 = vmatprep.subr.mxu0 0.0
    %3589 = vmatpush1.msra.mxu0 %v399
    %3590 = vmatprep.subr.mxu0 0.0
    %3591 = vmatpush1.msra.mxu0 %v400
    %3592 = vmatprep.subr.mxu0 0.0
    %3593 = vmatpush1.msra.mxu0 %v401
    %3594 = vmatprep.subr.mxu0 0.0
    %3595 = vmatpush1.msra.mxu0 %v402
    %3596 = vmatprep.subr.mxu0 0.0
    %3597 = vmatpush1.msra.mxu0 0.0
    %3598 = vmatprep.subr.mxu0 0.0
    %3599 = vmatpush1.msra.mxu0 0.0
    %3600 = vmatprep.subr.mxu0 0.0
    %3601 = vmatpush1.msra.mxu0 0.0
    %3602 = vmatprep.subr.mxu0 0.0
    %3603 = vmatpush1.msra.mxu0 0.0
    %3604 = vmatprep.subr.mxu0 0.0
    %3605 = vmatpush1.msra.mxu0 0.0
    %3606 = vmatprep.subr.mxu0 0.0
    %3607 = vmatpush1.msra.mxu0 0.0
    %3608 = vmatprep.subr.mxu0 0.0
    %3609 = vmatpush1.msra.mxu0 0.0
    %3610 = vmatprep.subr.mxu0 0.0
    %3611 = vmatpush1.msra.mxu0 0.0
    %3612 = vmatprep.subr.mxu0 0.0
    %3613 = vmatpush1.msra.mxu0 0.0
    %3614 = vmatprep.subr.mxu0 0.0
    %3615 = vmatpush1.msra.mxu0 0.0
    %3616 = vmatprep.subr.mxu0 0.0
    %3617 = vmatpush1.msra.mxu0 0.0
    %3618 = vmatprep.subr.mxu0 0.0
    %3619 = vmatpush1.msra.mxu0 0.0
    %3620 = vmatprep.subr.mxu0 0.0
    %3621 = vmatpush1.msra.mxu0 0.0
    %3622 = vmatprep.subr.mxu0 0.0
    %3623 = vmatpush1.msra.mxu0 0.0
    %3624 = vmatprep.subr.mxu0 0.0
    %3625 = vmatpush1.msra.mxu0 0.0
    %3626 = vmatprep.subr.mxu0 0.0
    %3627 = vmatpush1.msra.mxu0 0.0
    %3628 = vmatprep.subr.mxu0 0.0
    %3629 = vmatpush1.msra.mxu0 0.0
    %3630 = vmatprep.subr.mxu0 0.0
    %3631 = vmatpush1.msra.mxu0 0.0
    %3632 = vmatprep.subr.mxu0 0.0
    %3633 = vmatpush1.msra.mxu0 0.0
    %3634 = vmatprep.subr.mxu0 0.0
    %3635 = vmatpush1.msra.mxu0 0.0
    %3636 = vmatprep.subr.mxu0 0.0
    %3637 = vmatpush1.msra.mxu0 0.0
    %3638 = vmatprep.subr.mxu0 0.0
    %3639 = vmatpush1.msra.mxu0 0.0
    %3640 = vmatprep.subr.mxu0 0.0
    %3641 = vmatpush1.msra.mxu0 0.0
    %3642 = vmatprep.subr.mxu0 0.0
    %3643 = vmatpush1.msra.mxu0 0.0
    %3644 = vmatprep.subr.mxu0 0.0
    %3645 = vmatpush1.msra.mxu0 0.0
    %3646 = vmatprep.subr.mxu0 0.0
    %3647 = vmatpush1.msra.mxu0 0.0
    %3648 = vmatprep.subr.mxu0 0.0
    %3649 = vmatpush1.msra.mxu0 0.0
    %3650 = vmatprep.subr.mxu0 0.0
    %3651 = vmatpush1.msra.mxu0 0.0
    %3652 = vmatprep.mubr.f32.mxu0 0.0
    %3653 = vmatmul.mubr.f32.gmra.mrb[0].mxu0 %v3586
    %v3654 = vpop.f32.mrb[0].mxu0
    %v3655 = vadd.f32 0.0, %v3654
    %v3656 = vpop.f32.mrb[0].mxu0
    %3657 = vdwg.mxu0
    %v3659 = vrot.slane %v3655, 2
    %v3661 = vadd.f32 %v383, %v3659
    %v3662 = vxor.u32 %v3661, 2147483648
    %v3663 = vmul.f32 %v3662, 1.442695
    %v3664 = vpow.pop %v3663
    %v3665 = vadd.f32 %v3664, 1.0
    %v3666 = vrcp.pop %v3665
    %v3667 = vmul.f32 1.0, %v3666
    %v3668 = vtanh.pop %v3661
    %v3670 = vrot.slane %v3254, 6
    %v3672 = vmul.f32 %v3667, %v3670
    %3674 = vrot.lane.b32.xlu0 %v3668, 64
    %v3675 = vpop.permute.xlu0 %3674
    %v3677 = vmul.f32 %v3667, %v3675
    %3679 = vrot.lane.b32.xlu0 %v3677, 32
    %v3680 = vpop.permute.xlu0 %3679
    %v3682 = vadd.f32 %v3672, %v3680
    %v3683 = vtanh.pop %v3682
    %3685 = vrot.lane.b32.xlu0 %v3683, 64
    %v3686 = vpop.permute.xlu0 %3685
    %v3688 = vmul.f32 %v3667, %v3686
    %3690 = vrot.lane.b32.xlu0 %v3688, 32
    %v3691 = vpop.permute.xlu0 %3690
    %v3694 = vrot.slane %v3368, 2
    %3695 = vrot.lane.b32.xlu0 %v3694, 64
    %v3696 = vpop.permute.xlu0 %3695
    %v3698 = vsel %vm412, %v3691, %v3696
    %v3700 = vrot.slane %v3698, 6
    %v3701 = vsel %vm522, %v3700, 0
    %3703 = vmatprep.subr.mxu0 0.0
    %3704 = vmatpush1.msra.mxu0 %v403
    %3705 = vmatprep.subr.mxu0 0.0
    %3706 = vmatpush1.msra.mxu0 %v404
    %3707 = vmatprep.subr.mxu0 0.0
    %3708 = vmatpush1.msra.mxu0 %v405
    %3709 = vmatprep.subr.mxu0 0.0
    %3710 = vmatpush1.msra.mxu0 %v406
    %3711 = vmatprep.subr.mxu0 0.0
    %3712 = vmatpush1.msra.mxu0 %v407
    %3713 = vmatprep.subr.mxu0 0.0
    %3714 = vmatpush1.msra.mxu0 %v408
    %3715 = vmatprep.subr.mxu0 0.0
    %3716 = vmatpush1.msra.mxu0 %v409
    %3717 = vmatprep.subr.mxu0 0.0
    %3718 = vmatpush1.msra.mxu0 %v410
    %3719 = vmatprep.subr.mxu0 0.0
    %3720 = vmatpush1.msra.mxu0 0.0
    %3721 = vmatprep.subr.mxu0 0.0
    %3722 = vmatpush1.msra.mxu0 0.0
    %3723 = vmatprep.subr.mxu0 0.0
    %3724 = vmatpush1.msra.mxu0 0.0
    %3725 = vmatprep.subr.mxu0 0.0
    %3726 = vmatpush1.msra.mxu0 0.0
    %3727 = vmatprep.subr.mxu0 0.0
    %3728 = vmatpush1.msra.mxu0 0.0
    %3729 = vmatprep.subr.mxu0 0.0
    %3730 = vmatpush1.msra.mxu0 0.0
    %3731 = vmatprep.subr.mxu0 0.0
    %3732 = vmatpush1.msra.mxu0 0.0
    %3733 = vmatprep.subr.mxu0 0.0
    %3734 = vmatpush1.msra.mxu0 0.0
    %3735 = vmatprep.subr.mxu0 0.0
    %3736 = vmatpush1.msra.mxu0 0.0
    %3737 = vmatprep.subr.mxu0 0.0
    %3738 = vmatpush1.msra.mxu0 0.0
    %3739 = vmatprep.subr.mxu0 0.0
    %3740 = vmatpush1.msra.mxu0 0.0
    %3741 = vmatprep.subr.mxu0 0.0
    %3742 = vmatpush1.msra.mxu0 0.0
    %3743 = vmatprep.subr.mxu0 0.0
    %3744 = vmatpush1.msra.mxu0 0.0
    %3745 = vmatprep.subr.mxu0 0.0
    %3746 = vmatpush1.msra.mxu0 0.0
    %3747 = vmatprep.subr.mxu0 0.0
    %3748 = vmatpush1.msra.mxu0 0.0
    %3749 = vmatprep.subr.mxu0 0.0
    %3750 = vmatpush1.msra.mxu0 0.0
    %3751 = vmatprep.subr.mxu0 0.0
    %3752 = vmatpush1.msra.mxu0 0.0
    %3753 = vmatprep.subr.mxu0 0.0
    %3754 = vmatpush1.msra.mxu0 0.0
    %3755 = vmatprep.subr.mxu0 0.0
    %3756 = vmatpush1.msra.mxu0 0.0
    %3757 = vmatprep.subr.mxu0 0.0
    %3758 = vmatpush1.msra.mxu0 0.0
    %3759 = vmatprep.subr.mxu0 0.0
    %3760 = vmatpush1.msra.mxu0 0.0
    %3761 = vmatprep.subr.mxu0 0.0
    %3762 = vmatpush1.msra.mxu0 0.0
    %3763 = vmatprep.subr.mxu0 0.0
    %3764 = vmatpush1.msra.mxu0 0.0
    %3765 = vmatprep.subr.mxu0 0.0
    %3766 = vmatpush1.msra.mxu0 0.0
    %3767 = vmatprep.mubr.f32.mxu0 0.0
    %3768 = vmatmul.mubr.f32.gmra.mrb[0].mxu0 %v3701
    %v3769 = vpop.f32.mrb[0].mxu0
    %v3770 = vadd.f32 %v724, %v3769
    %v3771 = vpop.f32.mrb[0].mxu0
    %3772 = vdwg.mxu0
    %v3773 = vxor.u32 %v3770, 2147483648
    %v3774 = vmul.f32 %v3773, 1.442695
    %v3775 = vpow.pop %v3774
    %v3776 = vadd.f32 %v3775, 1.0
    %v3777 = vrcp.pop %v3776
    %v3778 = vmul.f32 1.0, %v3777
    %v3779 = vtanh.pop %v3770
    %v3780 = vmul.f32 %v3778, %v3362
    %3782 = vrot.lane.b32.xlu0 %v3779, 64
    %v3783 = vpop.permute.xlu0 %3782
    %v3785 = vmul.f32 %v3778, %v3783
    %3787 = vrot.lane.b32.xlu0 %v3785, 32
    %v3788 = vpop.permute.xlu0 %3787
    %v3790 = vadd.f32 %v3780, %v3788
    %v3791 = vtanh.pop %v3790
    %3793 = vrot.lane.b32.xlu0 %v3791, 64
    %v3794 = vpop.permute.xlu0 %3793
    %v3796 = vmul.f32 %v3778, %v3794
    %v3797 = vrot.slane %v619, 1
    %v3799 = vrot.slane %v1458, 7
    %v3801 = vrot.slane %v1886, 6
    %v3803 = vrot.slane %v2309, 5
    %v3806 = vrot.slane %v3154, 3
    %v3809 = vrot.slane %v3582, 2
    %vm3811 = vcmask 1040384
    %v3812 = vsel %vm3811, %v3797, %v1033
    %vm3813 = vcmask 1041408
    %v3814 = vsel %vm3813, %v3812, %v3799
    %vm3815 = vcmask 1042432
    %v3816 = vsel %vm3815, %v3814, %v3801
    %vm3817 = vcmask 1043456
    %v3818 = vsel %vm3817, %v3816, %v3803
    %vm3819 = vcmask 1044480
    %v3820 = vsel %vm3819, %v3818, %v3052
    %vm3821 = vcmask 1045504
    %v3822 = vsel %vm3821, %v3820, %v3806
    %vm3823 = vcmask 1046528
    %v3824 = vsel %vm3823, %v3822, %v3809
    %v3825 = vrot.slane %v822, 1
    %v3827 = vrot.slane %v1672, 7
    %v3829 = vrot.slane %v2100, 6
    %v3831 = vrot.slane %v2518, 5
    %v3834 = vrot.slane %v3368, 3
    %v3837 = vrot.slane %v3796, 2
    %v3839 = vsel %vm3811, %v3825, %v1244
    %v3840 = vsel %vm3813, %v3839, %v3827
    %v3841 = vsel %vm3815, %v3840, %v3829
    %v3842 = vsel %vm3817, %v3841, %v3831
    %v3843 = vsel %vm3819, %v3842, %v3266
    %v3844 = vsel %vm3821, %v3843, %v3834
    %v3845 = vsel %vm3823, %v3844, %v3837
    %v3846 = vld [vmem:[%s8] sm:$0xff]
    %v3847 = vld [vmem:[%s8 + $0x8] sm:$0xff]
    %v3848 = vld [vmem:[%s8 + $0x10] sm:$0xff]
    %v3849 = vld [vmem:[%s8 + $0x18] sm:$0xff]
    %v3850 = vld [vmem:[#allocation8] sm:$0x1]
    %v3852 = vlaneseq
    %v3853 = vshrl.u32 %v3852, 7
    %v3854 = vsub.s32 0, %v3853
    %v3855 = vrot.slane %v3850, %v3854
    %3858 = vrot.lane.b32.xlu0 %v3824, 32
    %v3859 = vpop.permute.xlu0 %3858
    %v3860 = vsel %vm412, %v3859, 0
    %3862 = vmatprep.subr.mxu0 0.0
    %3863 = vmatpush1.msra.mxu0 %v3846
    %3864 = vmatprep.subr.mxu0 0.0
    %3865 = vmatpush1.msra.mxu0 %v3847
    %3866 = vmatprep.subr.mxu0 0.0
    %3867 = vmatpush1.msra.mxu0 %v3848
    %3868 = vmatprep.subr.mxu0 0.0
    %3869 = vmatpush1.msra.mxu0 %v3849
    %3870 = vmatprep.subr.mxu0 0.0
    %3871 = vmatpush1.msra.mxu0 0.0
    %3872 = vmatprep.subr.mxu0 0.0
    %3873 = vmatpush1.msra.mxu0 0.0
    %3874 = vmatprep.subr.mxu0 0.0
    %3875 = vmatpush1.msra.mxu0 0.0
    %3876 = vmatprep.subr.mxu0 0.0
    %3877 = vmatpush1.msra.mxu0 0.0
    %3878 = vmatprep.subr.mxu0 0.0
    %3879 = vmatpush1.msra.mxu0 0.0
    %3880 = vmatprep.subr.mxu0 0.0
    %3881 = vmatpush1.msra.mxu0 0.0
    %3882 = vmatprep.subr.mxu0 0.0
    %3883 = vmatpush1.msra.mxu0 0.0
    %3884 = vmatprep.subr.mxu0 0.0
    %3885 = vmatpush1.msra.mxu0 0.0
    %3886 = vmatprep.subr.mxu0 0.0
    %3887 = vmatpush1.msra.mxu0 0.0
    %3888 = vmatprep.subr.mxu0 0.0
    %3889 = vmatpush1.msra.mxu0 0.0
    %3890 = vmatprep.subr.mxu0 0.0
    %3891 = vmatpush1.msra.mxu0 0.0
    %3892 = vmatprep.subr.mxu0 0.0
    %3893 = vmatpush1.msra.mxu0 0.0
    %3894 = vmatprep.subr.mxu0 0.0
    %3895 = vmatpush1.msra.mxu0 0.0
    %3896 = vmatprep.subr.mxu0 0.0
    %3897 = vmatpush1.msra.mxu0 0.0
    %3898 = vmatprep.subr.mxu0 0.0
    %3899 = vmatpush1.msra.mxu0 0.0
    %3900 = vmatprep.subr.mxu0 0.0
    %3901 = vmatpush1.msra.mxu0 0.0
    %3902 = vmatprep.subr.mxu0 0.0
    %3903 = vmatpush1.msra.mxu0 0.0
    %3904 = vmatprep.subr.mxu0 0.0
    %3905 = vmatpush1.msra.mxu0 0.0
    %3906 = vmatprep.subr.mxu0 0.0
    %3907 = vmatpush1.msra.mxu0 0.0
    %3908 = vmatprep.subr.mxu0 0.0
    %3909 = vmatpush1.msra.mxu0 0.0
    %3910 = vmatprep.subr.mxu0 0.0
    %3911 = vmatpush1.msra.mxu0 0.0
    %3912 = vmatprep.subr.mxu0 0.0
    %3913 = vmatpush1.msra.mxu0 0.0
    %3914 = vmatprep.subr.mxu0 0.0
    %3915 = vmatpush1.msra.mxu0 0.0
    %3916 = vmatprep.subr.mxu0 0.0
    %3917 = vmatpush1.msra.mxu0 0.0
    %3918 = vmatprep.subr.mxu0 0.0
    %3919 = vmatpush1.msra.mxu0 0.0
    %3920 = vmatprep.subr.mxu0 0.0
    %3921 = vmatpush1.msra.mxu0 0.0
    %3922 = vmatprep.subr.mxu0 0.0
    %3923 = vmatpush1.msra.mxu0 0.0
    %3924 = vmatprep.subr.mxu0 0.0
    %3925 = vmatpush1.msra.mxu0 0.0
    %3926 = vmatprep.mubr.f32.mxu0 0.0
    %3927 = vmatmul.mubr.f32.gmra.mrb[0].mxu0 %v3860
    %v3928 = vpop.f32.mrb[0].mxu0
    %v3929 = vadd.f32 %v3855, %v3928
    %v3930 = vpop.f32.mrb[0].mxu0
    %3931 = vdwg.mxu0
    %v3932 = vld [vmem:[%s15] sm:$0xff]
    %v3933 = vld [vmem:[%s15 + $0x8] sm:$0xff]
    %v3934 = vld [vmem:[%s15 + $0x10] sm:$0xff]
    %v3935 = vld [vmem:[%s15 + $0x18] sm:$0xff]
    %v3936 = vld [vmem:[%s16] sm:$0x1]
    %v3938 = vlaneseq
    %v3939 = vshrl.u32 %v3938, 7
    %v3940 = vsub.s32 0, %v3939
    %v3941 = vrot.slane %v3936, %v3940
    %3944 = vrot.lane.b32.xlu0 %v3845, 32
    %v3945 = vpop.permute.xlu0 %3944
    %v3946 = vsel %vm412, %v3945, 0
    %3948 = vmatprep.subr.mxu0 0.0
    %3949 = vmatpush1.msra.mxu0 %v3932
    %3950 = vmatprep.subr.mxu0 0.0
    %3951 = vmatpush1.msra.mxu0 %v3933
    %3952 = vmatprep.subr.mxu0 0.0
    %3953 = vmatpush1.msra.mxu0 %v3934
    %3954 = vmatprep.subr.mxu0 0.0
    %3955 = vmatpush1.msra.mxu0 %v3935
    %3956 = vmatprep.subr.mxu0 0.0
    %3957 = vmatpush1.msra.mxu0 0.0
    %3958 = vmatprep.subr.mxu0 0.0
    %3959 = vmatpush1.msra.mxu0 0.0
    %3960 = vmatprep.subr.mxu0 0.0
    %3961 = vmatpush1.msra.mxu0 0.0
    %3962 = vmatprep.subr.mxu0 0.0
    %3963 = vmatpush1.msra.mxu0 0.0
    %3964 = vmatprep.subr.mxu0 0.0
    %3965 = vmatpush1.msra.mxu0 0.0
    %3966 = vmatprep.subr.mxu0 0.0
    %3967 = vmatpush1.msra.mxu0 0.0
    %3968 = vmatprep.subr.mxu0 0.0
    %3969 = vmatpush1.msra.mxu0 0.0
    %3970 = vmatprep.subr.mxu0 0.0
    %3971 = vmatpush1.msra.mxu0 0.0
    %3972 = vmatprep.subr.mxu0 0.0
    %3973 = vmatpush1.msra.mxu0 0.0
    %3974 = vmatprep.subr.mxu0 0.0
    %3975 = vmatpush1.msra.mxu0 0.0
    %3976 = vmatprep.subr.mxu0 0.0
    %3977 = vmatpush1.msra.mxu0 0.0
    %3978 = vmatprep.subr.mxu0 0.0
    %3979 = vmatpush1.msra.mxu0 0.0
    %3980 = vmatprep.subr.mxu0 0.0
    %3981 = vmatpush1.msra.mxu0 0.0
    %3982 = vmatprep.subr.mxu0 0.0
    %3983 = vmatpush1.msra.mxu0 0.0
    %3984 = vmatprep.subr.mxu0 0.0
    %3985 = vmatpush1.msra.mxu0 0.0
    %3986 = vmatprep.subr.mxu0 0.0
    %3987 = vmatpush1.msra.mxu0 0.0
    %3988 = vmatprep.subr.mxu0 0.0
    %3989 = vmatpush1.msra.mxu0 0.0
    %3990 = vmatprep.subr.mxu0 0.0
    %3991 = vmatpush1.msra.mxu0 0.0
    %3992 = vmatprep.subr.mxu0 0.0
    %3993 = vmatpush1.msra.mxu0 0.0
    %3994 = vmatprep.subr.mxu0 0.0
    %3995 = vmatpush1.msra.mxu0 0.0
    %3996 = vmatprep.subr.mxu0 0.0
    %3997 = vmatpush1.msra.mxu0 0.0
    %3998 = vmatprep.subr.mxu0 0.0
    %3999 = vmatpush1.msra.mxu0 0.0
    %4000 = vmatprep.subr.mxu0 0.0
    %4001 = vmatpush1.msra.mxu0 0.0
    %4002 = vmatprep.subr.mxu0 0.0
    %4003 = vmatpush1.msra.mxu0 0.0
    %4004 = vmatprep.subr.mxu0 0.0
    %4005 = vmatpush1.msra.mxu0 0.0
    %4006 = vmatprep.subr.mxu0 0.0
    %4007 = vmatpush1.msra.mxu0 0.0
    %4008 = vmatprep.subr.mxu0 0.0
    %4009 = vmatpush1.msra.mxu0 0.0
    %4010 = vmatprep.subr.mxu0 0.0
    %4011 = vmatpush1.msra.mxu0 0.0
    %4012 = vmatprep.mubr.f32.mxu0 0.0
    %4013 = vmatmul.mubr.f32.gmra.mrb[0].mxu0 %v3946
    %v4014 = vpop.f32.mrb[0].mxu0
    %v4015 = vadd.f32 %v3941, %v4014
    %v4016 = vpop.f32.mrb[0].mxu0
    %4017 = vdwg.mxu0
    %v4018 = vld [vmem:[#allocation14] sm:$0xff]
    %v4019 = vld [vmem:[#allocation16] sm:$0xff]
    %v4021 = vsel %vm213, %v4015, 0
    %4023 = vmatprep.subr.mxu0 0.0
    %4024 = vmatpush1.msra.mxu0 %v4019
    %4025 = vmatprep.subr.mxu0 0.0
    %4026 = vmatpush1.msra.mxu0 0.0
    %4027 = vmatprep.subr.mxu0 0.0
    %4028 = vmatpush1.msra.mxu0 0.0
    %4029 = vmatprep.subr.mxu0 0.0
    %4030 = vmatpush1.msra.mxu0 0.0
    %4031 = vmatprep.subr.mxu0 0.0
    %4032 = vmatpush1.msra.mxu0 0.0
    %4033 = vmatprep.subr.mxu0 0.0
    %4034 = vmatpush1.msra.mxu0 0.0
    %4035 = vmatprep.subr.mxu0 0.0
    %4036 = vmatpush1.msra.mxu0 0.0
    %4037 = vmatprep.subr.mxu0 0.0
    %4038 = vmatpush1.msra.mxu0 0.0
    %4039 = vmatprep.subr.mxu0 0.0
    %4040 = vmatpush1.msra.mxu0 0.0
    %4041 = vmatprep.subr.mxu0 0.0
    %4042 = vmatpush1.msra.mxu0 0.0
    %4043 = vmatprep.subr.mxu0 0.0
    %4044 = vmatpush1.msra.mxu0 0.0
    %4045 = vmatprep.subr.mxu0 0.0
    %4046 = vmatpush1.msra.mxu0 0.0
    %4047 = vmatprep.subr.mxu0 0.0
    %4048 = vmatpush1.msra.mxu0 0.0
    %4049 = vmatprep.subr.mxu0 0.0
    %4050 = vmatpush1.msra.mxu0 0.0
    %4051 = vmatprep.subr.mxu0 0.0
    %4052 = vmatpush1.msra.mxu0 0.0
    %4053 = vmatprep.subr.mxu0 0.0
    %4054 = vmatpush1.msra.mxu0 0.0
    %4055 = vmatprep.subr.mxu0 0.0
    %4056 = vmatpush1.msra.mxu0 0.0
    %4057 = vmatprep.subr.mxu0 0.0
    %4058 = vmatpush1.msra.mxu0 0.0
    %4059 = vmatprep.subr.mxu0 0.0
    %4060 = vmatpush1.msra.mxu0 0.0
    %4061 = vmatprep.subr.mxu0 0.0
    %4062 = vmatpush1.msra.mxu0 0.0
    %4063 = vmatprep.subr.mxu0 0.0
    %4064 = vmatpush1.msra.mxu0 0.0
    %4065 = vmatprep.subr.mxu0 0.0
    %4066 = vmatpush1.msra.mxu0 0.0
    %4067 = vmatprep.subr.mxu0 0.0
    %4068 = vmatpush1.msra.mxu0 0.0
    %4069 = vmatprep.subr.mxu0 0.0
    %4070 = vmatpush1.msra.mxu0 0.0
    %4071 = vmatprep.subr.mxu0 0.0
    %4072 = vmatpush1.msra.mxu0 0.0
    %4073 = vmatprep.subr.mxu0 0.0
    %4074 = vmatpush1.msra.mxu0 0.0
    %4075 = vmatprep.subr.mxu0 0.0
    %4076 = vmatpush1.msra.mxu0 0.0
    %4077 = vmatprep.subr.mxu0 0.0
    %4078 = vmatpush1.msra.mxu0 0.0
    %4079 = vmatprep.subr.mxu0 0.0
    %4080 = vmatpush1.msra.mxu0 0.0
    %4081 = vmatprep.subr.mxu0 0.0
    %4082 = vmatpush1.msra.mxu0 0.0
    %4083 = vmatprep.subr.mxu0 0.0
    %4084 = vmatpush1.msra.mxu0 0.0
    %4085 = vmatprep.subr.mxu0 0.0
    %4086 = vmatpush1.msra.mxu0 0.0
    %4087 = vmatprep.mubr.f32.mxu0 0.0
    %4088 = vmatmul.mubr.f32.gmra.mrb[0].mxu0 %v4021
    %v4089 = vpop.f32.mrb[0].mxu0
    %v4090 = vadd.f32 0.0, %v4089
    %v4091 = vpop.f32.mrb[0].mxu0
    %4092 = vdwg.mxu0
    %v4094 = vsel %vm213, %v3929, 0
    %4096 = vmatprep.subr.mxu0 0.0
    %4097 = vmatpush1.msra.mxu0 %v4018
    %4098 = vmatprep.subr.mxu0 0.0
    %4099 = vmatpush1.msra.mxu0 0.0
    %4100 = vmatprep.subr.mxu0 0.0
    %4101 = vmatpush1.msra.mxu0 0.0
    %4102 = vmatprep.subr.mxu0 0.0
    %4103 = vmatpush1.msra.mxu0 0.0
    %4104 = vmatprep.subr.mxu0 0.0
    %4105 = vmatpush1.msra.mxu0 0.0
    %4106 = vmatprep.subr.mxu0 0.0
    %4107 = vmatpush1.msra.mxu0 0.0
    %4108 = vmatprep.subr.mxu0 0.0
    %4109 = vmatpush1.msra.mxu0 0.0
    %4110 = vmatprep.subr.mxu0 0.0
    %4111 = vmatpush1.msra.mxu0 0.0
    %4112 = vmatprep.subr.mxu0 0.0
    %4113 = vmatpush1.msra.mxu0 0.0
    %4114 = vmatprep.subr.mxu0 0.0
    %4115 = vmatpush1.msra.mxu0 0.0
    %4116 = vmatprep.subr.mxu0 0.0
    %4117 = vmatpush1.msra.mxu0 0.0
    %4118 = vmatprep.subr.mxu0 0.0
    %4119 = vmatpush1.msra.mxu0 0.0
    %4120 = vmatprep.subr.mxu0 0.0
    %4121 = vmatpush1.msra.mxu0 0.0
    %4122 = vmatprep.subr.mxu0 0.0
    %4123 = vmatpush1.msra.mxu0 0.0
    %4124 = vmatprep.subr.mxu0 0.0
    %4125 = vmatpush1.msra.mxu0 0.0
    %4126 = vmatprep.subr.mxu0 0.0
    %4127 = vmatpush1.msra.mxu0 0.0
    %4128 = vmatprep.subr.mxu0 0.0
    %4129 = vmatpush1.msra.mxu0 0.0
    %4130 = vmatprep.subr.mxu0 0.0
    %4131 = vmatpush1.msra.mxu0 0.0
    %4132 = vmatprep.subr.mxu0 0.0
    %4133 = vmatpush1.msra.mxu0 0.0
    %4134 = vmatprep.subr.mxu0 0.0
    %4135 = vmatpush1.msra.mxu0 0.0
    %4136 = vmatprep.subr.mxu0 0.0
    %4137 = vmatpush1.msra.mxu0 0.0
    %4138 = vmatprep.subr.mxu0 0.0
    %4139 = vmatpush1.msra.mxu0 0.0
    %4140 = vmatprep.subr.mxu0 0.0
    %4141 = vmatpush1.msra.mxu0 0.0
    %4142 = vmatprep.subr.mxu0 0.0
    %4143 = vmatpush1.msra.mxu0 0.0
    %4144 = vmatprep.subr.mxu0 0.0
    %4145 = vmatpush1.msra.mxu0 0.0
    %4146 = vmatprep.subr.mxu0 0.0
    %4147 = vmatpush1.msra.mxu0 0.0
    %4148 = vmatprep.subr.mxu0 0.0
    %4149 = vmatpush1.msra.mxu0 0.0
    %4150 = vmatprep.subr.mxu0 0.0
    %4151 = vmatpush1.msra.mxu0 0.0
    %4152 = vmatprep.subr.mxu0 0.0
    %4153 = vmatpush1.msra.mxu0 0.0
    %4154 = vmatprep.subr.mxu0 0.0
    %4155 = vmatpush1.msra.mxu0 0.0
    %4156 = vmatprep.subr.mxu0 0.0
    %4157 = vmatpush1.msra.mxu0 0.0
    %4158 = vmatprep.subr.mxu0 0.0
    %4159 = vmatpush1.msra.mxu0 0.0
    %4160 = vmatprep.mubr.f32.mxu0 0.0
    %4161 = vmatmul.mubr.f32.gmra.mrb[0].mxu0 %v4094
    %v4162 = vpop.f32.mrb[0].mxu0
    %v4163 = vadd.f32 %v4090, %v4162
    %v4164 = vpop.f32.mrb[0].mxu0
    %4165 = vdwg.mxu0
    %v4166 = vld [vmem:[%s2] sm:$0xff]
    %v4167 = vld [vmem:[#allocation17] sm:$0xff]
    %v4169 = vsel %vm213, %v4166, 0
    %4171 = vmatprep.subr.mxu0 0.0
    %4172 = vmatpush1.msra.mxu0 %v4167
    %4173 = vmatprep.subr.mxu0 0.0
    %4174 = vmatpush1.msra.mxu0 0.0
    %4175 = vmatprep.subr.mxu0 0.0
    %4176 = vmatpush1.msra.mxu0 0.0
    %4177 = vmatprep.subr.mxu0 0.0
    %4178 = vmatpush1.msra.mxu0 0.0
    %4179 = vmatprep.subr.mxu0 0.0
    %4180 = vmatpush1.msra.mxu0 0.0
    %4181 = vmatprep.subr.mxu0 0.0
    %4182 = vmatpush1.msra.mxu0 0.0
    %4183 = vmatprep.subr.mxu0 0.0
    %4184 = vmatpush1.msra.mxu0 0.0
    %4185 = vmatprep.subr.mxu0 0.0
    %4186 = vmatpush1.msra.mxu0 0.0
    %4187 = vmatprep.subr.mxu0 0.0
    %4188 = vmatpush1.msra.mxu0 0.0
    %4189 = vmatprep.subr.mxu0 0.0
    %4190 = vmatpush1.msra.mxu0 0.0
    %4191 = vmatprep.subr.mxu0 0.0
    %4192 = vmatpush1.msra.mxu0 0.0
    %4193 = vmatprep.subr.mxu0 0.0
    %4194 = vmatpush1.msra.mxu0 0.0
    %4195 = vmatprep.subr.mxu0 0.0
    %4196 = vmatpush1.msra.mxu0 0.0
    %4197 = vmatprep.subr.mxu0 0.0
    %4198 = vmatpush1.msra.mxu0 0.0
    %4199 = vmatprep.subr.mxu0 0.0
    %4200 = vmatpush1.msra.mxu0 0.0
    %4201 = vmatprep.subr.mxu0 0.0
    %4202 = vmatpush1.msra.mxu0 0.0
    %4203 = vmatprep.subr.mxu0 0.0
    %4204 = vmatpush1.msra.mxu0 0.0
    %4205 = vmatprep.subr.mxu0 0.0
    %4206 = vmatpush1.msra.mxu0 0.0
    %4207 = vmatprep.subr.mxu0 0.0
    %4208 = vmatpush1.msra.mxu0 0.0
    %4209 = vmatprep.subr.mxu0 0.0
    %4210 = vmatpush1.msra.mxu0 0.0
    %4211 = vmatprep.subr.mxu0 0.0
    %4212 = vmatpush1.msra.mxu0 0.0
    %4213 = vmatprep.subr.mxu0 0.0
    %4214 = vmatpush1.msra.mxu0 0.0
    %4215 = vmatprep.subr.mxu0 0.0
    %4216 = vmatpush1.msra.mxu0 0.0
    %4217 = vmatprep.subr.mxu0 0.0
    %4218 = vmatpush1.msra.mxu0 0.0
    %4219 = vmatprep.subr.mxu0 0.0
    %4220 = vmatpush1.msra.mxu0 0.0
    %4221 = vmatprep.subr.mxu0 0.0
    %4222 = vmatpush1.msra.mxu0 0.0
    %4223 = vmatprep.subr.mxu0 0.0
    %4224 = vmatpush1.msra.mxu0 0.0
    %4225 = vmatprep.subr.mxu0 0.0
    %4226 = vmatpush1.msra.mxu0 0.0
    %4227 = vmatprep.subr.mxu0 0.0
    %4228 = vmatpush1.msra.mxu0 0.0
    %4229 = vmatprep.subr.mxu0 0.0
    %4230 = vmatpush1.msra.mxu0 0.0
    %4231 = vmatprep.subr.mxu0 0.0
    %4232 = vmatpush1.msra.mxu0 0.0
    %4233 = vmatprep.subr.mxu0 0.0
    %4234 = vmatpush1.msra.mxu0 0.0
    %4235 = vmatprep.mubr.f32.mxu0 0.0
    %4236 = vmatmul.mubr.f32.gmra.mrb[0].mxu0 %v4169
    %v4237 = vpop.f32.mrb[0].mxu0
    %v4238 = vadd.f32 0.0, %v4237
    %v4239 = vpop.f32.mrb[0].mxu0
    %4240 = vdwg.mxu0
    %v4241 = vadd.f32 %v4163, %v4238
    %v4242 = vld [vmem:[#allocation19] sm:$0x1]
    %v4244 = vlaneseq
    %v4245 = vshrl.u32 %v4244, 7
    %v4246 = vsub.s32 0, %v4245
    %v4247 = vrot.slane %v4242, %v4246
    %v4249 = vadd.f32 %v4241, %v4247
    %v4250 = vmax.f32 %v4249, 0.0
    %v4251 = vld [vmem:[%s21] sm:$0xff]
    %v4252 = vld [vmem:[%s21 + $0x8] sm:$0xf]
    %v4253 = vld [vmem:[#allocation2] sm:$0x1]
    %v4255 = vlaneseq
    %v4256 = vshrl.u32 %v4255, 7
    %v4257 = vsub.s32 0, %v4256
    %v4258 = vrot.slane %v4253, %v4257
    %vm4260 = vcmask 97280
    %v4262 = vsel %vm4260, %v4250, 0
    %v4265 = vsel %vm3817, %v4252, 0
    %4267 = vmatprep.subr.mxu0 0.0
    %4268 = vmatpush1.msra.mxu0 %v4251
    %4269 = vmatprep.subr.mxu0 0.0
    %4270 = vmatpush1.msra.mxu0 %v4265
    %4271 = vmatprep.subr.mxu0 0.0
    %4272 = vmatpush1.msra.mxu0 0.0
    %4273 = vmatprep.subr.mxu0 0.0
    %4274 = vmatpush1.msra.mxu0 0.0
    %4275 = vmatprep.subr.mxu0 0.0
    %4276 = vmatpush1.msra.mxu0 0.0
    %4277 = vmatprep.subr.mxu0 0.0
    %4278 = vmatpush1.msra.mxu0 0.0
    %4279 = vmatprep.subr.mxu0 0.0
    %4280 = vmatpush1.msra.mxu0 0.0
    %4281 = vmatprep.subr.mxu0 0.0
    %4282 = vmatpush1.msra.mxu0 0.0
    %4283 = vmatprep.subr.mxu0 0.0
    %4284 = vmatpush1.msra.mxu0 0.0
    %4285 = vmatprep.subr.mxu0 0.0
    %4286 = vmatpush1.msra.mxu0 0.0
    %4287 = vmatprep.subr.mxu0 0.0
    %4288 = vmatpush1.msra.mxu0 0.0
    %4289 = vmatprep.subr.mxu0 0.0
    %4290 = vmatpush1.msra.mxu0 0.0
    %4291 = vmatprep.subr.mxu0 0.0
    %4292 = vmatpush1.msra.mxu0 0.0
    %4293 = vmatprep.subr.mxu0 0.0
    %4294 = vmatpush1.msra.mxu0 0.0
    %4295 = vmatprep.subr.mxu0 0.0
    %4296 = vmatpush1.msra.mxu0 0.0
    %4297 = vmatprep.subr.mxu0 0.0
    %4298 = vmatpush1.msra.mxu0 0.0
    %4299 = vmatprep.subr.mxu0 0.0
    %4300 = vmatpush1.msra.mxu0 0.0
    %4301 = vmatprep.subr.mxu0 0.0
    %4302 = vmatpush1.msra.mxu0 0.0
    %4303 = vmatprep.subr.mxu0 0.0
    %4304 = vmatpush1.msra.mxu0 0.0
    %4305 = vmatprep.subr.mxu0 0.0
    %4306 = vmatpush1.msra.mxu0 0.0
    %4307 = vmatprep.subr.mxu0 0.0
    %4308 = vmatpush1.msra.mxu0 0.0
    %4309 = vmatprep.subr.mxu0 0.0
    %4310 = vmatpush1.msra.mxu0 0.0
    %4311 = vmatprep.subr.mxu0 0.0
    %4312 = vmatpush1.msra.mxu0 0.0
    %4313 = vmatprep.subr.mxu0 0.0
    %4314 = vmatpush1.msra.mxu0 0.0
    %4315 = vmatprep.subr.mxu0 0.0
    %4316 = vmatpush1.msra.mxu0 0.0
    %4317 = vmatprep.subr.mxu0 0.0
    %4318 = vmatpush1.msra.mxu0 0.0
    %4319 = vmatprep.subr.mxu0 0.0
    %4320 = vmatpush1.msra.mxu0 0.0
    %4321 = vmatprep.subr.mxu0 0.0
    %4322 = vmatpush1.msra.mxu0 0.0
    %4323 = vmatprep.subr.mxu0 0.0
    %4324 = vmatpush1.msra.mxu0 0.0
    %4325 = vmatprep.subr.mxu0 0.0
    %4326 = vmatpush1.msra.mxu0 0.0
    %4327 = vmatprep.subr.mxu0 0.0
    %4328 = vmatpush1.msra.mxu0 0.0
    %4329 = vmatprep.subr.mxu0 0.0
    %4330 = vmatpush1.msra.mxu0 0.0
    %4331 = vmatprep.mubr.f32.mxu0 0.0
    %4332 = vmatmul.mubr.f32.gmra.mrb[0].mxu0 %v4262
    %v4333 = vpop.f32.mrb[0].mxu0
    %v4334 = vadd.f32 %v4258, %v4333
    %v4335 = vpop.f32.mrb[0].mxu0
    %4336 = vdwg.mxu0
    %v4337 = vxor.u32 %v4334, 2147483648
    %v4338 = vmul.f32 %v4337, 1.442695
    %v4339 = vpow.pop %v4338
    %v4340 = vadd.f32 %v4339, 1.0
    %v4341 = vrcp.pop %v4340
    %v4342 = vmul.f32 1.0, %v4341
    %vm4343 = vcmask 7168
    %4344 = vst.msk [vmem:[%s23] sm:$0xff] %vm4343, %v4342
    // Predicated region
    $region138: #{lstm_model_forward.1} parent=1 // pred_check
      _
    $region139: #{lstm_model_forward.1} parent=1 // pred_check_branch
      %4346 = sbr.rel (0) target = $region141
    $region140: #{lstm_model_forward.1} parent=1 // pred_region
      _
    $region141: #{lstm_model_forward.1} parent=1 // pred_fallthru
      _
    // Predicated region
    $region142: #{lstm_model_forward.1} parent=1 // pred_check
      _
    $region143: #{lstm_model_forward.1} parent=1 // pred_check_branch
      %4348 = sbr.rel (0) target = $region145
    $region144: #{lstm_model_forward.1} parent=1 // pred_region
      _
    $region145: #{lstm_model_forward.1} parent=1 // pred_fallthru
      _
    %4349 = vsyncpa [#allocation4], 1
    %4350 = vsyncpa [#allocation6], 1
    %4351 = vsyncpa [#allocation9], 1
    %4352 = vsyncpa [#allocation12], 1
    %4353 = vsyncpa [#allocation15], 1
    %4354 = vsyncpa [#allocation18], 1

</llo_original>
